<compile_context>
chip_gen: v6e
topology: v6e:2x2x1
jax: 0.10.0
libtpu: 0.0.40
codegen_flags: <defaults>
</compile_context>

<pallas_src>
import functools

import jax
import jax.numpy as jnp
from jax import lax
from jax.experimental import pallas as pl
from jax.experimental.pallas import tpu as pltpu

# ----- hyperparameters (mimic args) -----
K = 10            # args.K
ALPHA = 0.1       # args.gpr_alpha
# args.dropout / args.dprate only act in training mode -> identity here.


def _gprgnn_kernel(n_valid, adj_resident,          # static (functools.partial)
                   gamma_ref,                      # SMEM [K+1] f32 (scalar prefetch)
                   x_ref, w1_ref, b1_ref, w2_ref, b2_ref, adj_ref,
                   out_ref,                        # VMEM [npad, cp] f32, resident accumulator
                   z_ref):                         # VMEM scratch [2, npad, cp] bf16 ping-pong
    k = pl.program_id(0)            # GPR power step (outer, "arbitrary")
    i = pl.program_id(1)            # node-row tile  (inner)
    tm = x_ref.shape[0]
    row = pl.multiple_of(i * tm, tm)

    @pl.when(k == 0)
    def _mlp_and_init():
        # h = relu(x W1 + b1) ; z = h W2 + b2   (bf16 MXU inputs, f32 acc)
        h = jnp.dot(x_ref[...], w1_ref[...],
                    preferred_element_type=jnp.float32) + b1_ref[...]
        h = jnp.maximum(h, 0.0)
        z = jnp.dot(h.astype(w2_ref.dtype), w2_ref[...],
                    preferred_element_type=jnp.float32) + b2_ref[...]
        # Explicitly zero rows past the true node count so padded rows never
        # feed the propagation (no longer relying on zero adjacency columns).
        ridx = row + lax.broadcasted_iota(jnp.int32, z.shape, 0)
        z = jnp.where(ridx < n_valid, z, 0.0)
        z_ref[0, pl.ds(row, tm), :] = z.astype(z_ref.dtype)
        out_ref[pl.ds(row, tm), :] = gamma_ref[0] * z          # gamma_0 * z

    @pl.when(k > 0)
    def _propagate():
        g = gamma_ref[k]            # SMEM scalar read up front
        if adj_resident:
            a_tile = adj_ref[pl.ds(row, tm), :]   # full A_hat resident in VMEM
        else:
            a_tile = adj_ref[...]                 # streamed (tm, npad) row tile

        def step(src_ref, dst_ref):
            # z^{(k)}[rows] = A_hat[rows, :] @ z^{(k-1)}  (bf16 x bf16, f32 acc)
            z_new = jnp.dot(a_tile, src_ref[...],
                            preferred_element_type=jnp.float32)
            dst_ref[pl.ds(row, tm), :] = z_new.astype(z_ref.dtype)
            out_ref[pl.ds(row, tm), :] = (
                out_ref[pl.ds(row, tm), :] + g * z_new)

        odd = (k % 2) == 1

        @pl.when(odd)                       # odd k: read slot 0, write slot 1
        def _():
            step(z_ref.at[0], z_ref.at[1])

        @pl.when(jnp.logical_not(odd))      # even k >= 2: read slot 1, write slot 0
        def _():
            step(z_ref.at[1], z_ref.at[0])


@functools.partial(jax.jit, static_argnames=("tm",))
def gprgnn_forward(x, adj, w1_t, b1, w2_t, b2, gammas, *, tm=256):
    """x: [N, Fin], adj: [N, N] (gcn-normalized, f32), w1_t: [Fin, H], b1: [1, H],
       w2_t: [H, C], b2: [1, C], gammas: [K+1]."""
    n, fin = x.shape
    hid = w1_t.shape[1]
    out_c = w2_t.shape[1]
    nsteps = gammas.shape[0]                       # K + 1

    def round_up(a, m):
        return ((a + m - 1) // m) * m

    tm = max(16, min(tm, round_up(n, 16)))         # bf16 sublane tile is 16
    npad = round_up(n, tm)
    nt = npad // tm
    cp = round_up(out_c, 128)                      # lane-dense class dim

    bf16, f32 = jnp.bfloat16, jnp.float32
    xp = jnp.pad(x.astype(f32), ((0, npad - n), (0, 0))).astype(bf16)
    adjp = jnp.pad(adj.astype(f32),
                   ((0, npad - n), (0, npad - n))).astype(bf16)
    w1p = w1_t.astype(bf16)
    b1p = b1.reshape(1, hid).astype(f32)
    w2p = jnp.pad(w2_t.astype(f32), ((0, 0), (0, cp - out_c))).astype(bf16)
    b2p = jnp.pad(b2.reshape(1, out_c).astype(f32), ((0, 0), (0, cp - out_c)))
    gam = gammas.astype(f32)

    # ---- VMEM budget (bytes), assuming 2-deep buffering everywhere ----
    base_need = (2 * npad * cp * 4                  # resident f32 out/accumulator
                 + 2 * npad * cp * 2                # z ping-pong scratch (bf16)
                 + 2 * tm * fin * 2                 # x tile (bf16)
                 + 2 * (fin * hid + hid * cp) * 2   # W1, W2 (bf16)
                 + 2 * (hid + cp) * 4)              # b1, b2 (f32)
    adj_res_need = 2 * npad * npad * 2
    adj_stream_need = 2 * tm * npad * 2
    # Resident only if it fits comfortably under the v7x 64 MiB/TC budget.
    adj_resident = (base_need + adj_res_need) <= 40 * 1024 * 1024
    total_need = base_need + (adj_res_need if adj_resident else adj_stream_need)
    vmem_limit = int(min(max(total_need + (8 << 20), 32 << 20), 100 << 20))

    if adj_resident:
        # Full A_hat with a constant block index: DMA'd once, stays in VMEM.
        adj_spec = pl.BlockSpec((npad, npad), lambda k, i, g: (0, 0))
    else:
        # Streamed (tm, npad) row tiles, double-buffered across i.  Block index
        # frozen during k == 0 so the MLP pass does not re-stream A_hat and
        # tile 0 is pre-staged for (k=1, i=0).
        adj_spec = pl.BlockSpec((tm, npad),
                                lambda k, i, g: (jnp.where(k == 0, 0, i), 0))

    grid_spec = pltpu.PrefetchScalarGridSpec(
        num_scalar_prefetch=1,                     # gammas -> SMEM
        grid=(nsteps, nt),
        in_specs=[
            # x row tile: only consumed at k == 0; freeze its block index to
            # the last tile fetched so it is never re-fetched for k > 0.
            pl.BlockSpec((tm, fin),
                         lambda k, i, g: (jnp.where(k == 0, i, nt - 1), 0)),
            pl.BlockSpec((fin, hid), lambda k, i, g: (0, 0)),   # W1 (resident)
            pl.BlockSpec((1, hid), lambda k, i, g: (0, 0)),     # b1
            pl.BlockSpec((hid, cp), lambda k, i, g: (0, 0)),    # W2 (lane-padded)
            pl.BlockSpec((1, cp), lambda k, i, g: (0, 0)),      # b2
            adj_spec,                                           # A_hat (bf16)
        ],
        # Constant block index -> output stays resident in VMEM for the whole
        # grid (used as the f32 accumulator), written to HBM once at the end.
        out_specs=pl.BlockSpec((npad, cp), lambda k, i, g: (0, 0)),
        scratch_shapes=[pltpu.VMEM((2, npad, cp), jnp.bfloat16)],  # z ping-pong
    )

    out = pl.pallas_call(
        functools.partial(_gprgnn_kernel, n, adj_resident),
        out_shape=jax.ShapeDtypeStruct((npad, cp), jnp.float32),
        grid_spec=grid_spec,
        compiler_params=pltpu.CompilerParams(
            dimension_semantics=("arbitrary", "arbitrary"),
            vmem_limit_bytes=vmem_limit,
        ),
    )(gam, xp, w1p, b1p, w2p, b2p, adjp)
    return out[:n, :out_c]


def build_normalized_adjacency(edge_index, num_nodes):
    """Dense gcn_norm: A_hat = D^{-1/2} (A + I) D^{-1/2}  (glue, plain JAX)."""
    a = jnp.zeros((num_nodes, num_nodes), jnp.float32)
    a = a.at[edge_index[0], edge_index[1]].set(1.0)
    a = jnp.maximum(a, jnp.eye(num_nodes, dtype=jnp.float32))   # add self loops
    deg = a.sum(axis=1)
    d_inv_sqrt = 1.0 / jnp.sqrt(deg)
    return d_inv_sqrt[:, None] * a * d_inv_sqrt[None, :]


if __name__ == "__main__":
    # ----- small deterministic setup -----
    N, IN_C, HID_C, OUT_C = 512, 64, 128, 8
    key = jax.random.PRNGKey(0)
    k_x, k_w1, k_b1, k_w2, k_b2 = jax.random.split(key, 5)

    # node features
    x = jax.random.normal(k_x, (N, IN_C), jnp.float32)

    # simple undirected ring graph -> edge_index [2, E]
    src = jnp.arange(N)
    dst = (src + 1) % N
    edge_index = jnp.stack(
        [jnp.concatenate([src, dst]), jnp.concatenate([dst, src])], axis=0)
    a_hat = build_normalized_adjacency(edge_index, N)

    # Linear params (PyTorch-style uniform(-1/sqrt(fan_in), 1/sqrt(fan_in))),
    # stored already transposed for the x @ W^T convention.
    bnd1 = 1.0 / (IN_C ** 0.5)
    w1_t = jax.random.uniform(k_w1, (IN_C, HID_C), jnp.float32, -bnd1, bnd1)
    b1 = jax.random.uniform(k_b1, (1, HID_C), jnp.float32, -bnd1, bnd1)
    bnd2 = 1.0 / (HID_C ** 0.5)
    w2_t = jax.random.uniform(k_w2, (HID_C, OUT_C), jnp.float32, -bnd2, bnd2)
    b2 = jax.random.uniform(k_b2, (1, OUT_C), jnp.float32, -bnd2, bnd2)

    # GPR_prop PPR gammas: gamma_k = alpha*(1-alpha)^k, gamma_K = (1-alpha)^K
    ks = jnp.arange(K + 1, dtype=jnp.float32)
    gammas = ALPHA * (1.0 - ALPHA) ** ks
    gammas = gammas.at[K].set((1.0 - ALPHA) ** K)

    # ----- run kernel -----
    out = gprgnn_forward(x, a_hat, w1_t, b1, w2_t, b2, gammas)
    out = jax.block_until_ready(out)

    # ----- reference checks (plain JAX) -----
    # (a) quantization-aware: bf16 x/W1/W2 MLP, bf16 A_hat and bf16 z carry,
    #     f32 accumulation everywhere (mirrors the kernel exactly).
    xb = x.astype(jnp.bfloat16)
    w1b = w1_t.astype(jnp.bfloat16)
    w2b = w2_t.astype(jnp.bfloat16)
    a_q = a_hat.astype(jnp.bfloat16)
    h_q = jnp.maximum(
        jnp.dot(xb, w1b, preferred_element_type=jnp.float32) + b1, 0.0)
    z_q = jnp.dot(h_q.astype(jnp.bfloat16), w2b,
                  preferred_element_type=jnp.float32) + b2
    acc_q = gammas[0] * z_q
    zc = z_q.astype(jnp.bfloat16)
    # (b) pure f32 reference, loose tolerance.
    h_ref = jnp.maximum(x @ w1_t + b1, 0.0)
    z_ref = h_ref @ w2_t + b2
    acc_f = gammas[0] * z_ref
    zf = z_ref
    for kk in range(1, K + 1):
        z_next = jnp.dot(a_q, zc, preferred_element_type=jnp.float32)
        acc_q = acc_q + gammas[kk] * z_next
        zc = z_next.astype(jnp.bfloat16)
        zf = a_hat @ zf
        acc_f = acc_f + gammas[kk] * zf

    assert out.shape == (N, OUT_C)
    assert jnp.allclose(out, acc_q, atol=2e-2, rtol=2e-2), \
        "mismatch vs bf16-aware reference"
    assert jnp.allclose(out, acc_f, atol=1e-1, rtol=1e-1), \
        "mismatch vs f32 reference"
    print("KERNEL_OK")
</pallas_src>

<mosaic_0001>
module attributes {stable_mosaic.version = 11 : i64} {
  func.func @_gprgnn_kernel(%arg0: i32, %arg1: i32, %arg2: memref<11xf32, #tpu.memory_space<smem>>, %arg3: memref<256x64xbf16, #tpu.memory_space<vmem>>, %arg4: memref<64x128xbf16, #tpu.memory_space<vmem>>, %arg5: memref<1x128xf32, #tpu.memory_space<vmem>>, %arg6: memref<128x128xbf16, #tpu.memory_space<vmem>>, %arg7: memref<1x128xf32, #tpu.memory_space<vmem>>, %arg8: memref<512x512xbf16, #tpu.memory_space<vmem>>, %arg9: memref<512x128xf32, #tpu.memory_space<vmem>>, %arg10: memref<2x512x128xbf16, #tpu.memory_space<vmem>>) attributes {dimension_semantics = [#tpu.dimension_semantics<arbitrary>, #tpu.dimension_semantics<arbitrary>], iteration_bounds = array<i64: 11, 2>, scalar_prefetch = 1 : i64, scratch_operands = 1 : i64, tpu.core_type = #tpu.core_type<tc>, window_params = [{transform_indices = @transform_0, window_bounds = array<i64: 256, 64>}, {pipeline_mode = #tpu.pipeline_mode<synchronous>, transform_indices = @transform_1, window_bounds = array<i64: 64, 128>}, {pipeline_mode = #tpu.pipeline_mode<synchronous>, transform_indices = @transform_2, window_bounds = array<i64: 1, 128>}, {pipeline_mode = #tpu.pipeline_mode<synchronous>, transform_indices = @transform_3, window_bounds = array<i64: 128, 128>}, {pipeline_mode = #tpu.pipeline_mode<synchronous>, transform_indices = @transform_4, window_bounds = array<i64: 1, 128>}, {pipeline_mode = #tpu.pipeline_mode<synchronous>, transform_indices = @transform_5, window_bounds = array<i64: 512, 512>}, {pipeline_mode = #tpu.pipeline_mode<synchronous>, transform_indices = @transform_6, window_bounds = array<i64: 512, 128>}]} {
    %c256_i32 = arith.constant 256 : i32
    %0 = arith.muli %arg1, %c256_i32 : i32
    %1 = tpu.assume_multiple %0, 256 : i32
    %c0_i32 = arith.constant 0 : i32
    %2 = arith.cmpi eq, %arg0, %c0_i32 : i32
    %3 = arith.extui %2 : i1 to i32
    %c0_i32_0 = arith.constant 0 : i32
    %4 = arith.cmpi ne, %3, %c0_i32_0 : i32
    scf.if %4 {
      %c0 = arith.constant 0 : index
      %c0_3 = arith.constant 0 : index
      %8 = vector.load %arg3[%c0, %c0_3] : memref<256x64xbf16, #tpu.memory_space<vmem>>, vector<256x64xbf16>
      %c0_4 = arith.constant 0 : index
      %c0_5 = arith.constant 0 : index
      %9 = vector.load %arg4[%c0_4, %c0_5] : memref<64x128xbf16, #tpu.memory_space<vmem>>, vector<64x128xbf16>
      %cst = arith.constant dense<0.000000e+00> : vector<256x128xf32>
      %10 = tpu.matmul %8, %9, %cst {dimension_numbers = #tpu.dot_dimension_numbers<[1], [0], [0], [1], [0, 0, 1, 1], [], []>} : vector<256x64xbf16>, vector<64x128xbf16>, vector<256x128xf32> -> vector<256x128xf32>
      %c0_6 = arith.constant 0 : index
      %c0_7 = arith.constant 0 : index
      %11 = vector.load %arg5[%c0_6, %c0_7] : memref<1x128xf32, #tpu.memory_space<vmem>>, vector<1x128xf32>
      %12 = vector.broadcast %11 : vector<1x128xf32> to vector<256x128xf32>
      %13 = arith.addf %10, %12 : vector<256x128xf32>
      %cst_8 = arith.constant 0.000000e+00 : f32
      %14 = vector.broadcast %cst_8 : f32 to vector<256x128xf32>
      %15 = arith.maximumf %13, %14 : vector<256x128xf32>
      %16 = arith.truncf %15 : vector<256x128xf32> to vector<256x128xbf16>
      %c0_9 = arith.constant 0 : index
      %c0_10 = arith.constant 0 : index
      %17 = vector.load %arg6[%c0_9, %c0_10] : memref<128x128xbf16, #tpu.memory_space<vmem>>, vector<128x128xbf16>
      %cst_11 = arith.constant dense<0.000000e+00> : vector<256x128xf32>
      %18 = tpu.matmul %16, %17, %cst_11 {dimension_numbers = #tpu.dot_dimension_numbers<[1], [0], [0], [1], [0, 0, 1, 1], [], []>} : vector<256x128xbf16>, vector<128x128xbf16>, vector<256x128xf32> -> vector<256x128xf32>
      %c0_12 = arith.constant 0 : index
      %c0_13 = arith.constant 0 : index
      %19 = vector.load %arg7[%c0_12, %c0_13] : memref<1x128xf32, #tpu.memory_space<vmem>>, vector<1x128xf32>
      %20 = vector.broadcast %19 : vector<1x128xf32> to vector<256x128xf32>
      %21 = arith.addf %18, %20 : vector<256x128xf32>
      %22 = tpu.iota {dimensions = array<i32: 0>} : vector<256x128xi32>
      %23 = vector.broadcast %1 : i32 to vector<256x128xi32>
      %24 = arith.addi %23, %22 : vector<256x128xi32>
      %c512_i32 = arith.constant 512 : i32
      %25 = vector.broadcast %c512_i32 : i32 to vector<256x128xi32>
      %26 = arith.cmpi slt, %24, %25 : vector<256x128xi32>
      %cst_14 = arith.constant 0.000000e+00 : f32
      %27 = vector.broadcast %cst_14 : f32 to vector<256x128xf32>
      %28 = arith.select %26, %21, %27 : vector<256x128xi1>, vector<256x128xf32>
      %29 = arith.truncf %28 : vector<256x128xf32> to vector<256x128xbf16>
      %c0_15 = arith.constant 0 : index
      %30 = arith.index_cast %1 : i32 to index
      %c0_16 = arith.constant 0 : index
      %31 = vector.load %arg10[%c0_15, %30, %c0_16] : memref<2x512x128xbf16, #tpu.memory_space<vmem>>, vector<1x256x128xbf16>
      %32 = vector.shape_cast %31 : vector<1x256x128xbf16> to vector<256x128xbf16>
      %33 = vector.shape_cast %29 : vector<256x128xbf16> to vector<1x256x128xbf16>
      tpu.vector_store %arg10[%c0_15, %30, %c0_16], %33 {strides = array<i32>} : memref<2x512x128xbf16, #tpu.memory_space<vmem>>, vector<1x256x128xbf16>,
      %c0_17 = arith.constant 0 : index
      %34 = memref.load %arg2[%c0_17] : memref<11xf32, #tpu.memory_space<smem>>
      %35 = vector.broadcast %34 : f32 to vector<256x128xf32>
      %36 = arith.mulf %35, %28 : vector<256x128xf32>
      %37 = arith.index_cast %1 : i32 to index
      %c0_18 = arith.constant 0 : index
      %38 = vector.load %arg9[%37, %c0_18] : memref<512x128xf32, #tpu.memory_space<vmem>>, vector<256x128xf32>
      tpu.vector_store %arg9[%37, %c0_18], %36 {strides = array<i32>} : memref<512x128xf32, #tpu.memory_space<vmem>>, vector<256x128xf32>,
    } else {
    }
    %c0_i32_1 = arith.constant 0 : i32
    %5 = arith.cmpi sgt, %arg0, %c0_i32_1 : i32
    %6 = arith.extui %5 : i1 to i32
    %c0_i32_2 = arith.constant 0 : i32
    %7 = arith.cmpi ne, %6, %c0_i32_2 : i32
    scf.if %7 {
      %8 = arith.index_cast %arg0 : i32 to index
      %9 = memref.load %arg2[%8] : memref<11xf32, #tpu.memory_space<smem>>
      %10 = arith.index_cast %1 : i32 to index
      %c0 = arith.constant 0 : index
      %11 = vector.load %arg8[%10, %c0] : memref<512x512xbf16, #tpu.memory_space<vmem>>, vector<256x512xbf16>
      %c2_i32 = arith.constant 2 : i32
      %c0_i32_3 = arith.constant 0 : i32
      %12 = arith.cmpi eq, %c2_i32, %c0_i32_3 : i32
      %c1_i32 = arith.constant 1 : i32
      %13 = arith.select %12, %c1_i32, %c2_i32 : i32
      %14 = arith.remsi %arg0, %13 : i32
      %c0_i32_4 = arith.constant 0 : i32
      %15 = arith.cmpi ne, %14, %c0_i32_4 : i32
      %c0_i32_5 = arith.constant 0 : i32
      %16 = arith.cmpi slt, %14, %c0_i32_5 : i32
      %c0_i32_6 = arith.constant 0 : i32
      %17 = arith.cmpi slt, %13, %c0_i32_6 : i32
      %18 = arith.xori %16, %17 : i1
      %19 = arith.andi %18, %15 : i1
      %20 = arith.addi %14, %13 : i32
      %21 = arith.select %19, %20, %14 : i32
      %c1_i32_7 = arith.constant 1 : i32
      %22 = arith.cmpi eq, %21, %c1_i32_7 : i32
      %23 = arith.extui %22 : i1 to i32
      %c0_i32_8 = arith.constant 0 : i32
      %24 = arith.cmpi ne, %23, %c0_i32_8 : i32
      scf.if %24 {
        %c0_10 = arith.constant 0 : index
        %c0_11 = arith.constant 0 : index
        %c0_12 = arith.constant 0 : index
        %28 = vector.load %arg10[%c0_10, %c0_11, %c0_12] : memref<2x512x128xbf16, #tpu.memory_space<vmem>>, vector<1x512x128xbf16>
        %29 = vector.shape_cast %28 : vector<1x512x128xbf16> to vector<512x128xbf16>
        %cst = arith.constant dense<0.000000e+00> : vector<256x128xf32>
        %30 = tpu.matmul %11, %29, %cst {dimension_numbers = #tpu.dot_dimension_numbers<[1], [0], [0], [1], [0, 0, 1, 1], [], []>} : vector<256x512xbf16>, vector<512x128xbf16>, vector<256x128xf32> -> vector<256x128xf32>
        %31 = arith.truncf %30 : vector<256x128xf32> to vector<256x128xbf16>
        %c1_i32_13 = arith.constant 1 : i32
        %c0_i32_14 = arith.constant 0 : i32
        %c0_i32_15 = arith.constant 0 : i32
        %32 = tpu.memref_slice %arg10[%c1_i32_13, %c0_i32_14, %c0_i32_15] : memref<2x512x128xbf16, #tpu.memory_space<vmem>> -> memref<1x512x128xbf16, #tpu.memory_space<vmem>>
        %33 = tpu.memref_squeeze %32 : memref<1x512x128xbf16, #tpu.memory_space<vmem>> -> memref<512x128xbf16, #tpu.memory_space<vmem>>
        %34 = arith.index_cast %1 : i32 to index
        %c0_16 = arith.constant 0 : index
        %35 = vector.load %33[%34, %c0_16] : memref<512x128xbf16, #tpu.memory_space<vmem>>, vector<256x128xbf16>
        tpu.vector_store %33[%34, %c0_16], %31 {strides = array<i32>} : memref<512x128xbf16, #tpu.memory_space<vmem>>, vector<256x128xbf16>,
        %36 = arith.index_cast %1 : i32 to index
        %c0_17 = arith.constant 0 : index
        %37 = vector.load %arg9[%36, %c0_17] : memref<512x128xf32, #tpu.memory_space<vmem>>, vector<256x128xf32>
        %38 = vector.broadcast %9 : f32 to vector<256x128xf32>
        %39 = arith.mulf %38, %30 : vector<256x128xf32>
        %40 = arith.addf %37, %39 : vector<256x128xf32>
        %41 = arith.index_cast %1 : i32 to index
        %c0_18 = arith.constant 0 : index
        %42 = vector.load %arg9[%41, %c0_18] : memref<512x128xf32, #tpu.memory_space<vmem>>, vector<256x128xf32>
        tpu.vector_store %arg9[%41, %c0_18], %40 {strides = array<i32>} : memref<512x128xf32, #tpu.memory_space<vmem>>, vector<256x128xf32>,
      } else {
      }
      %true = arith.constant true
      %25 = arith.xori %22, %true : i1
      %26 = arith.extui %25 : i1 to i32
      %c0_i32_9 = arith.constant 0 : i32
      %27 = arith.cmpi ne, %26, %c0_i32_9 : i32
      scf.if %27 {
        %c1 = arith.constant 1 : index
        %c0_10 = arith.constant 0 : index
        %c0_11 = arith.constant 0 : index
        %28 = vector.load %arg10[%c1, %c0_10, %c0_11] : memref<2x512x128xbf16, #tpu.memory_space<vmem>>, vector<1x512x128xbf16>
        %29 = vector.shape_cast %28 : vector<1x512x128xbf16> to vector<512x128xbf16>
        %cst = arith.constant dense<0.000000e+00> : vector<256x128xf32>
        %30 = tpu.matmul %11, %29, %cst {dimension_numbers = #tpu.dot_dimension_numbers<[1], [0], [0], [1], [0, 0, 1, 1], [], []>} : vector<256x512xbf16>, vector<512x128xbf16>, vector<256x128xf32> -> vector<256x128xf32>
        %31 = arith.truncf %30 : vector<256x128xf32> to vector<256x128xbf16>
        %c0_i32_12 = arith.constant 0 : i32
        %c0_i32_13 = arith.constant 0 : i32
        %c0_i32_14 = arith.constant 0 : i32
        %32 = tpu.memref_slice %arg10[%c0_i32_12, %c0_i32_13, %c0_i32_14] : memref<2x512x128xbf16, #tpu.memory_space<vmem>> -> memref<1x512x128xbf16, #tpu.memory_space<vmem>>
        %33 = tpu.memref_squeeze %32 : memref<1x512x128xbf16, #tpu.memory_space<vmem>> -> memref<512x128xbf16, #tpu.memory_space<vmem>>
        %34 = arith.index_cast %1 : i32 to index
        %c0_15 = arith.constant 0 : index
        %35 = vector.load %33[%34, %c0_15] : memref<512x128xbf16, #tpu.memory_space<vmem>>, vector<256x128xbf16>
        tpu.vector_store %33[%34, %c0_15], %31 {strides = array<i32>} : memref<512x128xbf16, #tpu.memory_space<vmem>>, vector<256x128xbf16>,
        %36 = arith.index_cast %1 : i32 to index
        %c0_16 = arith.constant 0 : index
        %37 = vector.load %arg9[%36, %c0_16] : memref<512x128xf32, #tpu.memory_space<vmem>>, vector<256x128xf32>
        %38 = vector.broadcast %9 : f32 to vector<256x128xf32>
        %39 = arith.mulf %38, %30 : vector<256x128xf32>
        %40 = arith.addf %37, %39 : vector<256x128xf32>
        %41 = arith.index_cast %1 : i32 to index
        %c0_17 = arith.constant 0 : index
        %42 = vector.load %arg9[%41, %c0_17] : memref<512x128xf32, #tpu.memory_space<vmem>>, vector<256x128xf32>
        tpu.vector_store %arg9[%41, %c0_17], %40 {strides = array<i32>} : memref<512x128xf32, #tpu.memory_space<vmem>>, vector<256x128xf32>,
      } else {
      }
    } else {
    }
    return
  }
  func.func @transform_0(%arg0: i32, %arg1: i32, %arg2: memref<11xf32, #tpu.memory_space<smem>>) -> (i32, i32) {
    %c0_i32 = arith.constant 0 : i32
    %0 = arith.cmpi eq, %arg0, %c0_i32 : i32
    %c1_i32 = arith.constant 1 : i32
    %1 = arith.select %0, %arg1, %c1_i32 : i32
    %c0_i32_0 = arith.constant 0 : i32
    %c0_i32_1 = arith.constant 0 : i32
    return %1, %c0_i32_0 : i32, i32
  }
  func.func @transform_1(%arg0: i32, %arg1: i32, %arg2: memref<11xf32, #tpu.memory_space<smem>>) -> (i32, i32) {
    %c0_i32 = arith.constant 0 : i32
    %c0_i32_0 = arith.constant 0 : i32
    %c0_i32_1 = arith.constant 0 : i32
    return %c0_i32, %c0_i32_0 : i32, i32
  }
  func.func @transform_2(%arg0: i32, %arg1: i32, %arg2: memref<11xf32, #tpu.memory_space<smem>>) -> (i32, i32) {
    %c0_i32 = arith.constant 0 : i32
    %c0_i32_0 = arith.constant 0 : i32
    %c0_i32_1 = arith.constant 0 : i32
    return %c0_i32, %c0_i32_0 : i32, i32
  }
  func.func @transform_3(%arg0: i32, %arg1: i32, %arg2: memref<11xf32, #tpu.memory_space<smem>>) -> (i32, i32) {
    %c0_i32 = arith.constant 0 : i32
    %c0_i32_0 = arith.constant 0 : i32
    %c0_i32_1 = arith.constant 0 : i32
    return %c0_i32, %c0_i32_0 : i32, i32
  }
  func.func @transform_4(%arg0: i32, %arg1: i32, %arg2: memref<11xf32, #tpu.memory_space<smem>>) -> (i32, i32) {
    %c0_i32 = arith.constant 0 : i32
    %c0_i32_0 = arith.constant 0 : i32
    %c0_i32_1 = arith.constant 0 : i32
    return %c0_i32, %c0_i32_0 : i32, i32
  }
  func.func @transform_5(%arg0: i32, %arg1: i32, %arg2: memref<11xf32, #tpu.memory_space<smem>>) -> (i32, i32) {
    %c0_i32 = arith.constant 0 : i32
    %c0_i32_0 = arith.constant 0 : i32
    %c0_i32_1 = arith.constant 0 : i32
    return %c0_i32, %c0_i32_0 : i32, i32
  }
  func.func @transform_6(%arg0: i32, %arg1: i32, %arg2: memref<11xf32, #tpu.memory_space<smem>>) -> (i32, i32) {
    %c0_i32 = arith.constant 0 : i32
    %c0_i32_0 = arith.constant 0 : i32
    %c0_i32_1 = arith.constant 0 : i32
    return %c0_i32, %c0_i32_0 : i32, i32
  }
}

</mosaic_0001>

<llo_original>
// kernel: gprgnn_forward.1
$region0: #{gprgnn_forward.1}
  #allocation0 [shape = 'u32[]', space=smem, size = 0x4, offset = 0x4, fixed_abs, tag = 'smem constant byte address 0x4 - core index']
  #allocation1 [shape = 'u32[144,128]{1,0:T(1,128)}', space=vmem, size = 0x12000, scoped, tag = 'internal scratch']
  #allocation2 [shape = 'bf16[2,512,128]{2,1,0:T(8,128)(2,1)}', space=vmem, size = 0x40000, scoped, tag = 'scratch operand']
  #allocation3 [shape = 's32[1]{0}', space=sflag, size = 0x4, scoped, tag = 'scoped memory for gprgnn_forward.1']
  #allocation4 [shape = 'u8[512]{0}', space=smem, size = 0x200, scoped, tag = 'prefetched SMEM operand 0']
  %s0 = inlined_call_operand.vmem [shape: f32[11], index: 0, kind: input, shape index: {}]
  %s1 = inlined_call_operand.vmem [shape: bf16[512,64], index: 1, kind: input, shape index: {}]
  %s2 = inlined_call_operand.vmem [shape: bf16[64,128], index: 2, kind: input, shape index: {}]
  %s3 = inlined_call_operand.vmem [shape: f32[1,128], index: 3, kind: input, shape index: {}]
  %s4 = inlined_call_operand.vmem [shape: bf16[128,128], index: 4, kind: input, shape index: {}]
  %s5 = inlined_call_operand.vmem [shape: f32[1,128], index: 5, kind: input, shape index: {}]
  %s6 = inlined_call_operand.vmem [shape: bf16[512,512], index: 6, kind: input, shape index: {}]
  %s7 = inlined_call_operand.vmem [shape: f32[512,128], index: 7, kind: output, shape index: {}]
  %s8 = sld [smem:[#allocation0]]
  $region73: #{gprgnn_forward.1} parent=0
    _
  %s10 = ssub.s32 1, %s8
  %s11 = scalar_select 0, %s10, %s8
  %s12 = sshll.u32 %s0, 4
  %s13 = int_to_ptr.vmem [resolvable:$true] %s12
  %15 = dma.vmem_to_smem %s13, 16, [#allocation4], [#allocation3]
  %16 = dma.done [#allocation3], 16
  %17 = sfence
  loop: start=0, step=1, limit=24
  $region2: #{gprgnn_forward.1} parent=0 // loop_pre_header
    _
  $region3: #{gprgnn_forward.1} parent=0 // loop_header
    %s19 = sphi 0, %s23
    %p20 = scmp.ge.s32.totalorder %s19, 24
    %s26 = sphi 0, %s38
    %s27 = sphi 0, %s34
    %s28 = sphi 0, %s26
    %s29 = sphi 0, %s27
    %s30 = sphi 0, %s28
    %s31 = sphi 0, %s29
    %s45 = sphi 0, %s47
    %s48 = sphi 0, %s45
    %s49 = sphi 0, %s48
    %s65 = sphi 0, %s49
    %s69 = sphi 0, %s69
    %s71 = sphi 0, %s69
    %s72 = sphi 0, %s71
    %s86 = sphi 0, %s72
    %s90 = sphi 0, %s90
    %s92 = sphi 0, %s90
    %s93 = sphi 0, %s92
    %s107 = sphi 0, %s93
    %s111 = sphi 0, %s111
    %s113 = sphi 0, %s111
    %s114 = sphi 0, %s113
    %s128 = sphi 0, %s114
    %s132 = sphi 0, %s132
    %s134 = sphi 0, %s132
    %s135 = sphi 0, %s134
    %s149 = sphi 0, %s135
    %s153 = sphi 0, %s153
    %s155 = sphi 0, %s153
    %s156 = sphi 0, %s155
    %s170 = sphi 0, %s156
    %s174 = sphi 0, %s174
    %s176 = sphi 0, %s174
    %s177 = sphi 0, %s176
    %s191 = sphi 0, %s177
  $region4: #{gprgnn_forward.1} parent=0 // loop_header_branch
    %22 = sbr.rel (%p20) target = $region8
  $region5: #{gprgnn_forward.1} parent=0 // loop_body
    %s24 = ssub.s32 %s19, 1
    %s25 = ssub.s32 %s19, 2
    %s32 = sadd.s32 1, %s27
    %p33 = scmp.ge.s32.totalorder %s32, 2
    %s34 = scalar_select %p33, 0, %s32
    %s35 = sadd.s32 1, %s26
    %s36 = scalar_select %p33, %s35, %s26
    %p37 = scmp.ge.s32.totalorder %s36, 11
    %s38 = scalar_select %p37, 0, %s36
    %p39 = scmp.eq.s32.totalorder %s26, 0
    %s40 = scalar_select %p39, %s27, 1
    %p41 = scmp.eq.s32.totalorder %s38, 0
    %s42 = scalar_select %p41, %s34, 1
    %s43 = ssub.s32 %s40, %s42
    %p44 = scmp.eq.s32.totalorder %s43, 0
    %s46 = sadd.s32 %s45, 1
    %s47 = scalar_select %p44, %s45, %s46
    %p50 = pneg %p44
    %p51 = scmp.eq.s32.totalorder %s19, 21
    %p52 = por %p50, %p51
    %p53 = scmp.ne.s32.totalorder %s45, %s48
    %p54 = scmp.eq.s32.totalorder %s19, 0
    %p55 = por %p53, %p54
    %p56 = scmp.ne.s32.totalorder %s45, %s48
    %p57 = scmp.eq.s32.totalorder %s24, 21
    %p58 = por %p56, %p57
    %p59 = scmp.ne.s32.totalorder %s48, %s49
    %p60 = scmp.eq.s32.totalorder %s24, 0
    %p61 = por %p59, %p60
    %p62 = scmp.ne.s32.totalorder %s48, %s49
    %p63 = scmp.eq.s32.totalorder %s25, 21
    %p64 = por %p62, %p63
    %p66 = scmp.ne.s32.totalorder %s49, %s65
    %p67 = scmp.eq.s32.totalorder %s25, 0
    %p68 = por %p66, %p67
    %s70 = sadd.s32 %s69, 1
    %p73 = scmp.eq.s32.totalorder %s19, 21
    %p74 = scmp.ne.s32.totalorder %s69, %s71
    %p75 = scmp.eq.s32.totalorder %s19, 0
    %p76 = por %p74, %p75
    %p77 = scmp.ne.s32.totalorder %s69, %s71
    %p78 = scmp.eq.s32.totalorder %s24, 21
    %p79 = por %p77, %p78
    %p80 = scmp.ne.s32.totalorder %s71, %s72
    %p81 = scmp.eq.s32.totalorder %s24, 0
    %p82 = por %p80, %p81
    %p83 = scmp.ne.s32.totalorder %s71, %s72
    %p84 = scmp.eq.s32.totalorder %s25, 21
    %p85 = por %p83, %p84
    %p87 = scmp.ne.s32.totalorder %s72, %s86
    %p88 = scmp.eq.s32.totalorder %s25, 0
    %p89 = por %p87, %p88
    %s91 = sadd.s32 %s90, 1
    %p94 = scmp.eq.s32.totalorder %s19, 21
    %p95 = scmp.ne.s32.totalorder %s90, %s92
    %p96 = scmp.eq.s32.totalorder %s19, 0
    %p97 = por %p95, %p96
    %p98 = scmp.ne.s32.totalorder %s90, %s92
    %p99 = scmp.eq.s32.totalorder %s24, 21
    %p100 = por %p98, %p99
    %p101 = scmp.ne.s32.totalorder %s92, %s93
    %p102 = scmp.eq.s32.totalorder %s24, 0
    %p103 = por %p101, %p102
    %p104 = scmp.ne.s32.totalorder %s92, %s93
    %p105 = scmp.eq.s32.totalorder %s25, 21
    %p106 = por %p104, %p105
    %p108 = scmp.ne.s32.totalorder %s93, %s107
    %p109 = scmp.eq.s32.totalorder %s25, 0
    %p110 = por %p108, %p109
    %s112 = sadd.s32 %s111, 1
    %p115 = scmp.eq.s32.totalorder %s19, 21
    %p116 = scmp.ne.s32.totalorder %s111, %s113
    %p117 = scmp.eq.s32.totalorder %s19, 0
    %p118 = por %p116, %p117
    %p119 = scmp.ne.s32.totalorder %s111, %s113
    %p120 = scmp.eq.s32.totalorder %s24, 21
    %p121 = por %p119, %p120
    %p122 = scmp.ne.s32.totalorder %s113, %s114
    %p123 = scmp.eq.s32.totalorder %s24, 0
    %p124 = por %p122, %p123
    %p125 = scmp.ne.s32.totalorder %s113, %s114
    %p126 = scmp.eq.s32.totalorder %s25, 21
    %p127 = por %p125, %p126
    %p129 = scmp.ne.s32.totalorder %s114, %s128
    %p130 = scmp.eq.s32.totalorder %s25, 0
    %p131 = por %p129, %p130
    %s133 = sadd.s32 %s132, 1
    %p136 = scmp.eq.s32.totalorder %s19, 21
    %p137 = scmp.ne.s32.totalorder %s132, %s134
    %p138 = scmp.eq.s32.totalorder %s19, 0
    %p139 = por %p137, %p138
    %p140 = scmp.ne.s32.totalorder %s132, %s134
    %p141 = scmp.eq.s32.totalorder %s24, 21
    %p142 = por %p140, %p141
    %p143 = scmp.ne.s32.totalorder %s134, %s135
    %p144 = scmp.eq.s32.totalorder %s24, 0
    %p145 = por %p143, %p144
    %p146 = scmp.ne.s32.totalorder %s134, %s135
    %p147 = scmp.eq.s32.totalorder %s25, 21
    %p148 = por %p146, %p147
    %p150 = scmp.ne.s32.totalorder %s135, %s149
    %p151 = scmp.eq.s32.totalorder %s25, 0
    %p152 = por %p150, %p151
    %s154 = sadd.s32 %s153, 1
    %p157 = scmp.eq.s32.totalorder %s19, 21
    %p158 = scmp.ne.s32.totalorder %s153, %s155
    %p159 = scmp.eq.s32.totalorder %s19, 0
    %p160 = por %p158, %p159
    %p161 = scmp.ne.s32.totalorder %s153, %s155
    %p162 = scmp.eq.s32.totalorder %s24, 21
    %p163 = por %p161, %p162
    %p164 = scmp.ne.s32.totalorder %s155, %s156
    %p165 = scmp.eq.s32.totalorder %s24, 0
    %p166 = por %p164, %p165
    %p167 = scmp.ne.s32.totalorder %s155, %s156
    %p168 = scmp.eq.s32.totalorder %s25, 21
    %p169 = por %p167, %p168
    %p171 = scmp.ne.s32.totalorder %s156, %s170
    %p172 = scmp.eq.s32.totalorder %s25, 0
    %p173 = por %p171, %p172
    %s175 = sadd.s32 %s174, 1
    %p178 = scmp.eq.s32.totalorder %s19, 21
    %p179 = scmp.ne.s32.totalorder %s174, %s176
    %p180 = scmp.eq.s32.totalorder %s19, 0
    %p181 = por %p179, %p180
    %p182 = scmp.ne.s32.totalorder %s174, %s176
    %p183 = scmp.eq.s32.totalorder %s24, 21
    %p184 = por %p182, %p183
    %p185 = scmp.ne.s32.totalorder %s176, %s177
    %p186 = scmp.eq.s32.totalorder %s24, 0
    %p187 = por %p185, %p186
    %p188 = scmp.ne.s32.totalorder %s176, %s177
    %p189 = scmp.eq.s32.totalorder %s25, 21
    %p190 = por %p188, %p189
    %p192 = scmp.ne.s32.totalorder %s177, %s191
    %p193 = scmp.eq.s32.totalorder %s25, 0
    %p194 = por %p192, %p193
    %p195 = scmp.le.s32.totalorder 1, %s19
    %p196 = scmp.lt.s32.totalorder %s19, 23
    %p197 = pnand %p195, %p196
    %p198 = pneg %p197
    // Predicated region
    $region9: #{gprgnn_forward.1} parent=5 // pred_check
      _
    $region10: #{gprgnn_forward.1} parent=5 // pred_check_branch
      %200 = sbr.rel (%p197) target = $region12
    $region11: #{gprgnn_forward.1} parent=5 // pred_region
      %s201 = ssub.s32 %s19, 1
      // Predicated region
      $region13: #{gprgnn_forward.1} parent=11 // pred_check
        %p202 = pneg %p82
      $region14: #{gprgnn_forward.1} parent=11 // pred_check_branch
        %204 = sbr.rel (%p202) target = $region16
      $region15: #{gprgnn_forward.1} parent=11 // pred_region
        _
      $region16: #{gprgnn_forward.1} parent=11 // pred_fallthru
        _
      // Predicated region
      $region17: #{gprgnn_forward.1} parent=11 // pred_check
        %p205 = pneg %p103
      $region18: #{gprgnn_forward.1} parent=11 // pred_check_branch
        %207 = sbr.rel (%p205) target = $region20
      $region19: #{gprgnn_forward.1} parent=11 // pred_region
        _
      $region20: #{gprgnn_forward.1} parent=11 // pred_fallthru
        _
      // Predicated region
      $region21: #{gprgnn_forward.1} parent=11 // pred_check
        %p208 = pneg %p124
      $region22: #{gprgnn_forward.1} parent=11 // pred_check_branch
        %210 = sbr.rel (%p208) target = $region24
      $region23: #{gprgnn_forward.1} parent=11 // pred_region
        _
      $region24: #{gprgnn_forward.1} parent=11 // pred_fallthru
        _
      // Predicated region
      $region25: #{gprgnn_forward.1} parent=11 // pred_check
        %p211 = pneg %p145
      $region26: #{gprgnn_forward.1} parent=11 // pred_check_branch
        %213 = sbr.rel (%p211) target = $region28
      $region27: #{gprgnn_forward.1} parent=11 // pred_region
        _
      $region28: #{gprgnn_forward.1} parent=11 // pred_fallthru
        _
      // Predicated region
      $region29: #{gprgnn_forward.1} parent=11 // pred_check
        %p214 = pneg %p166
      $region30: #{gprgnn_forward.1} parent=11 // pred_check_branch
        %216 = sbr.rel (%p214) target = $region32
      $region31: #{gprgnn_forward.1} parent=11 // pred_region
        _
      $region32: #{gprgnn_forward.1} parent=11 // pred_fallthru
        _
    $region12: #{gprgnn_forward.1} parent=5 // pred_fallthru
      _
    %p217 = scmp.lt.s32.totalorder %s19, 22
    // Predicated region
    $region33: #{gprgnn_forward.1} parent=5 // pred_check
      %p218 = pneg %p217
    $region34: #{gprgnn_forward.1} parent=5 // pred_check_branch
      %220 = sbr.rel (%p218) target = $region36
    $region35: #{gprgnn_forward.1} parent=5 // pred_region
      // Predicated region
      $region37: #{gprgnn_forward.1} parent=35 // pred_check
        %p221 = pneg %p55
      $region38: #{gprgnn_forward.1} parent=35 // pred_check_branch
        %223 = sbr.rel (%p221) target = $region40
      $region39: #{gprgnn_forward.1} parent=35 // pred_region
        %p224 = scmp.eq.s32.totalorder %s26, 0
        %s225 = scalar_select %p224, %s27, 1
        %s226 = smul.u32 32, %s225
        %p227 = scmp.lt.s32.totalorder %s226, 63
        %s228 = scalar_select %p227, %s226, 63
        %s229 = smul.addr %s228, 4
        %s230 = scalar_lea.vmem %s1, %s229
        %p231 = scmp.eq.s32.totalorder %s26, 0
        %s232 = scalar_select %p231, %s27, 1
        %s233 = smul.u32 32, %s232
      $region40: #{gprgnn_forward.1} parent=35 // pred_fallthru
        _
    $region36: #{gprgnn_forward.1} parent=5 // pred_fallthru
      _
    %p234 = scmp.le.s32.totalorder 1, %s19
    %p235 = scmp.lt.s32.totalorder %s19, 23
    %p236 = pnand %p234, %p235
    %p237 = pneg %p236
    // Predicated region
    $region41: #{gprgnn_forward.1} parent=5 // pred_check
      _
    $region42: #{gprgnn_forward.1} parent=5 // pred_check_branch
      %239 = sbr.rel (%p236) target = $region44
    $region43: #{gprgnn_forward.1} parent=5 // pred_region
      %s240 = ssub.s32 %s19, 1
      %p241 = scmp.eq.s32.totalorder %s28, 0
      %s242 = scalar_select %p241, %s29, 1
      %s243 = smul.u32 32, %s242
      %p244 = scmp.lt.s32.totalorder %s243, 63
      %s245 = scalar_select %p244, %s243, 63
      %s246 = smul.addr %s245, 4
      %s247 = scalar_lea.vmem %s1, %s246
      %p248 = pneg %p61
      %p249 = pneg %p58
      %p250 = pneg %p82
      %p251 = pneg %p79
      %p252 = pneg %p103
      %p253 = pneg %p100
      %p254 = pneg %p124
      %p255 = pneg %p121
      %p256 = pneg %p145
      %p257 = pneg %p142
      %p258 = pneg %p166
      %p259 = pneg %p163
      %p260 = pneg %p187
      %p261 = pneg %p184
      %p262 = scmp.eq.s32.totalorder %s28, 0
      %s263 = scalar_select %p262, %s29, 1
      %s264 = smul.u32 32, %s263
      %p265 = scmp.lt.s32.totalorder %s264, 63
      %s266 = scalar_select %p265, %s264, 63
      %s267 = smul.addr %s266, 4
      %s268 = scalar_lea.vmem %s1, %s267
      %p269 = scmp.eq.s32.totalorder %s28, 0
      %s270 = scalar_select %p269, %s29, 1
      %s271 = smul.u32 32, %s270
      %s273 = smul.u32 %s29, 256
      %p274 = scmp.eq.s32.totalorder %s28, 0
      // Predicated region
      $region45: #{gprgnn_forward.1} parent=43 // pred_check
        %p275 = pneg %p274
      $region46: #{gprgnn_forward.1} parent=43 // pred_check_branch
        %277 = sbr.rel (%p275) target = $region48
      $region47: #{gprgnn_forward.1} parent=43 // pred_region
        %v278 = vld [vmem:[%s268] sm:$0xf]
        %v279 = vld [vmem:[%s268 + $0x4] sm:$0xf]
        %v280 = vld [vmem:[%s268 + $0x8] sm:$0xf]
        %v281 = vld [vmem:[%s268 + $0xc] sm:$0xf]
        %v282 = vld [vmem:[%s268 + $0x10] sm:$0xf]
        %v283 = vld [vmem:[%s268 + $0x14] sm:$0xf]
        %v284 = vld [vmem:[%s268 + $0x18] sm:$0xf]
        %v285 = vld [vmem:[%s268 + $0x1c] sm:$0xf]
        %v286 = vld [vmem:[%s268 + $0x20] sm:$0xf]
        %v287 = vld [vmem:[%s268 + $0x24] sm:$0xf]
        %v288 = vld [vmem:[%s268 + $0x28] sm:$0xf]
        %v289 = vld [vmem:[%s268 + $0x2c] sm:$0xf]
        %v290 = vld [vmem:[%s268 + $0x30] sm:$0xf]
        %v291 = vld [vmem:[%s268 + $0x34] sm:$0xf]
        %v292 = vld [vmem:[%s268 + $0x38] sm:$0xf]
        %v293 = vld [vmem:[%s268 + $0x3c] sm:$0xf]
        %v294 = vld [vmem:[%s268 + $0x40] sm:$0xf]
        %v295 = vld [vmem:[%s268 + $0x44] sm:$0xf]
        %v296 = vld [vmem:[%s268 + $0x48] sm:$0xf]
        %v297 = vld [vmem:[%s268 + $0x4c] sm:$0xf]
        %v298 = vld [vmem:[%s268 + $0x50] sm:$0xf]
        %v299 = vld [vmem:[%s268 + $0x54] sm:$0xf]
        %v300 = vld [vmem:[%s268 + $0x58] sm:$0xf]
        %v301 = vld [vmem:[%s268 + $0x5c] sm:$0xf]
        %v302 = vld [vmem:[%s268 + $0x60] sm:$0xf]
        %v303 = vld [vmem:[%s268 + $0x64] sm:$0xf]
        %v304 = vld [vmem:[%s268 + $0x68] sm:$0xf]
        %v305 = vld [vmem:[%s268 + $0x6c] sm:$0xf]
        %v306 = vld [vmem:[%s268 + $0x70] sm:$0xf]
        %v307 = vld [vmem:[%s268 + $0x74] sm:$0xf]
        %v308 = vld [vmem:[%s268 + $0x78] sm:$0xf]
        %v309 = vld [vmem:[%s268 + $0x7c] sm:$0xf]
        %v310 = vld [vmem:[%s2] sm:$0xf]
        %v311 = vld [vmem:[%s2 + $0x4] sm:$0xf]
        %v312 = vld [vmem:[%s2 + $0x8] sm:$0xf]
        %v313 = vld [vmem:[%s2 + $0xc] sm:$0xf]
        %v314 = vld [vmem:[%s2 + $0x10] sm:$0xf]
        %v315 = vld [vmem:[%s2 + $0x14] sm:$0xf]
        %v316 = vld [vmem:[%s2 + $0x18] sm:$0xf]
        %v317 = vld [vmem:[%s2 + $0x1c] sm:$0xf]
        %v318 = vld [vmem:[%s3] sm:$0x1]
        %v320 = vlaneseq
        %v321 = vshrl.u32 %v320, 7
        %v322 = vsub.s32 0, %v321
        %v323 = vrot.slane %v318, %v322
        %v357 = vunpack.c.l.b16 %v278
        %v358 = vunpack.c.l.b16 %v279
        %v359 = vunpack.c.l.b16 %v280
        %v360 = vunpack.c.l.b16 %v281
        %v361 = vunpack.c.l.b16 %v282
        %v362 = vunpack.c.l.b16 %v283
        %v363 = vunpack.c.l.b16 %v284
        %v364 = vunpack.c.l.b16 %v285
        %v365 = vunpack.c.l.b16 %v286
        %v366 = vunpack.c.l.b16 %v287
        %v367 = vunpack.c.l.b16 %v288
        %v368 = vunpack.c.l.b16 %v289
        %v369 = vunpack.c.l.b16 %v290
        %v370 = vunpack.c.l.b16 %v291
        %v371 = vunpack.c.l.b16 %v292
        %v372 = vunpack.c.l.b16 %v293
        %v373 = vunpack.c.l.b16 %v294
        %v374 = vunpack.c.l.b16 %v295
        %v375 = vunpack.c.l.b16 %v296
        %v376 = vunpack.c.l.b16 %v297
        %v377 = vunpack.c.l.b16 %v298
        %v378 = vunpack.c.l.b16 %v299
        %v379 = vunpack.c.l.b16 %v300
        %v380 = vunpack.c.l.b16 %v301
        %v381 = vunpack.c.l.b16 %v302
        %v382 = vunpack.c.l.b16 %v303
        %v383 = vunpack.c.l.b16 %v304
        %v384 = vunpack.c.l.b16 %v305
        %v385 = vunpack.c.l.b16 %v306
        %v386 = vunpack.c.l.b16 %v307
        %v387 = vunpack.c.l.b16 %v308
        %v388 = vunpack.c.l.b16 %v309
        %v389 = vpack.c.b16 %v358, %v357
        %v390 = vpack.c.b16 %v360, %v359
        %v391 = vpack.c.b16 %v362, %v361
        %v392 = vpack.c.b16 %v364, %v363
        %v393 = vpack.c.b16 %v366, %v365
        %v394 = vpack.c.b16 %v368, %v367
        %v395 = vpack.c.b16 %v370, %v369
        %v396 = vpack.c.b16 %v372, %v371
        %v397 = vpack.c.b16 %v374, %v373
        %v398 = vpack.c.b16 %v376, %v375
        %v399 = vpack.c.b16 %v378, %v377
        %v400 = vpack.c.b16 %v380, %v379
        %v401 = vpack.c.b16 %v382, %v381
        %v402 = vpack.c.b16 %v384, %v383
        %v403 = vpack.c.b16 %v386, %v385
        %v404 = vpack.c.b16 %v388, %v387
        %v413 = vunpack.c.l.b16 %v310
        %v414 = vunpack.c.l.b16 %v311
        %v415 = vunpack.c.l.b16 %v312
        %v416 = vunpack.c.l.b16 %v313
        %v417 = vunpack.c.l.b16 %v314
        %v418 = vunpack.c.l.b16 %v315
        %v419 = vunpack.c.l.b16 %v316
        %v420 = vunpack.c.l.b16 %v317
        %v421 = vpack.c.b16 %v414, %v413
        %v422 = vpack.c.b16 %v416, %v415
        %v423 = vpack.c.b16 %v418, %v417
        %v424 = vpack.c.b16 %v420, %v419
        %vm429 = vcmask 523264
        %v431 = vsel %vm429, %v389, 0
        %v434 = vsel %vm429, %v390, 0
        %v437 = vsel %vm429, %v391, 0
        %v440 = vsel %vm429, %v392, 0
        %v443 = vsel %vm429, %v393, 0
        %v446 = vsel %vm429, %v394, 0
        %v449 = vsel %vm429, %v395, 0
        %v452 = vsel %vm429, %v396, 0
        %v455 = vsel %vm429, %v397, 0
        %v458 = vsel %vm429, %v398, 0
        %v461 = vsel %vm429, %v399, 0
        %v464 = vsel %vm429, %v400, 0
        %v467 = vsel %vm429, %v401, 0
        %v470 = vsel %vm429, %v402, 0
        %v473 = vsel %vm429, %v403, 0
        %v476 = vsel %vm429, %v404, 0
        %478 = vmatprep.subr.bf16.mxu0 0
        %479 = vmatpush1.bf16.msra.mxu0 0
        %480 = vmatprep.subr.bf16.mxu0 0
        %481 = vmatpush1.bf16.msra.mxu0 0
        %482 = vmatprep.subr.bf16.mxu0 0
        %483 = vmatpush1.bf16.msra.mxu0 0
        %484 = vmatprep.subr.bf16.mxu0 0
        %485 = vmatpush1.bf16.msra.mxu0 0
        %486 = vmatprep.subr.bf16.mxu0 0
        %487 = vmatpush1.bf16.msra.mxu0 %v424
        %488 = vmatprep.subr.bf16.mxu0 0
        %489 = vmatpush1.bf16.msra.mxu0 %v423
        %490 = vmatprep.subr.bf16.mxu0 0
        %491 = vmatpush1.bf16.msra.mxu0 %v422
        %492 = vmatprep.subr.bf16.mxu0 0
        %493 = vmatpush1.bf16.msra.mxu0 %v421
        %494 = vmatprep.subr.bf16.mxu0 0
        %495 = vmatpush2.bf16.msra.mxu0 0
        %496 = vmatprep.subr.bf16.mxu0 0
        %497 = vmatpush2.bf16.msra.mxu0 0
        %498 = vmatprep.subr.bf16.mxu0 0
        %499 = vmatpush2.bf16.msra.mxu0 0
        %500 = vmatprep.subr.bf16.mxu0 0
        %501 = vmatpush2.bf16.msra.mxu0 0
        %502 = vmatprep.subr.bf16.mxu0 0
        %503 = vmatpush2.bf16.msra.mxu0 0
        %504 = vmatprep.subr.bf16.mxu0 0
        %505 = vmatpush2.bf16.msra.mxu0 0
        %506 = vmatprep.subr.bf16.mxu0 0
        %507 = vmatpush2.bf16.msra.mxu0 0
        %508 = vmatprep.subr.bf16.mxu0 0
        %509 = vmatpush2.bf16.msra.mxu0 0
        %510 = vmatprep.mubr.bf16.mxu0 0
        %511 = vmatmul.mubr.bf16.gmra.mxu0 %v431
        %v512 = vpop.f32.mrf.mxu0
        %v513 = vadd.f32 %v323, %v512
        %v514 = vpop.f32.mrf.mxu0
        %v515 = vpop.f32.mrf.mxu0
        %v516 = vadd.f32 %v323, %v515
        %v517 = vpop.f32.mrf.mxu0
        %518 = vmatprep.mubr.bf16.mxu0 0
        %519 = vmatmul.mubr.bf16.gmra.mxu0 %v434
        %v520 = vpop.f32.mrf.mxu0
        %v521 = vadd.f32 %v323, %v520
        %v522 = vpop.f32.mrf.mxu0
        %v523 = vpop.f32.mrf.mxu0
        %v524 = vadd.f32 %v323, %v523
        %v525 = vpop.f32.mrf.mxu0
        %526 = vmatprep.mubr.bf16.mxu0 0
        %527 = vmatmul.mubr.bf16.gmra.mxu0 %v437
        %v528 = vpop.f32.mrf.mxu0
        %v529 = vadd.f32 %v323, %v528
        %v530 = vpop.f32.mrf.mxu0
        %v531 = vpop.f32.mrf.mxu0
        %v532 = vadd.f32 %v323, %v531
        %v533 = vpop.f32.mrf.mxu0
        %534 = vmatprep.mubr.bf16.mxu0 0
        %535 = vmatmul.mubr.bf16.gmra.mxu0 %v440
        %v536 = vpop.f32.mrf.mxu0
        %v537 = vadd.f32 %v323, %v536
        %v538 = vpop.f32.mrf.mxu0
        %v539 = vpop.f32.mrf.mxu0
        %v540 = vadd.f32 %v323, %v539
        %v541 = vpop.f32.mrf.mxu0
        %542 = vmatprep.mubr.bf16.mxu0 0
        %543 = vmatmul.mubr.bf16.gmra.mxu0 %v443
        %v544 = vpop.f32.mrf.mxu0
        %v545 = vadd.f32 %v323, %v544
        %v546 = vpop.f32.mrf.mxu0
        %v547 = vpop.f32.mrf.mxu0
        %v548 = vadd.f32 %v323, %v547
        %v549 = vpop.f32.mrf.mxu0
        %550 = vmatprep.mubr.bf16.mxu0 0
        %551 = vmatmul.mubr.bf16.gmra.mxu0 %v446
        %v552 = vpop.f32.mrf.mxu0
        %v553 = vadd.f32 %v323, %v552
        %v554 = vpop.f32.mrf.mxu0
        %v555 = vpop.f32.mrf.mxu0
        %v556 = vadd.f32 %v323, %v555
        %v557 = vpop.f32.mrf.mxu0
        %558 = vmatprep.mubr.bf16.mxu0 0
        %559 = vmatmul.mubr.bf16.gmra.mxu0 %v449
        %v560 = vpop.f32.mrf.mxu0
        %v561 = vadd.f32 %v323, %v560
        %v562 = vpop.f32.mrf.mxu0
        %v563 = vpop.f32.mrf.mxu0
        %v564 = vadd.f32 %v323, %v563
        %v565 = vpop.f32.mrf.mxu0
        %566 = vmatprep.mubr.bf16.mxu0 0
        %567 = vmatmul.mubr.bf16.gmra.mxu0 %v452
        %v568 = vpop.f32.mrf.mxu0
        %v569 = vadd.f32 %v323, %v568
        %v570 = vpop.f32.mrf.mxu0
        %v571 = vpop.f32.mrf.mxu0
        %v572 = vadd.f32 %v323, %v571
        %v573 = vpop.f32.mrf.mxu0
        %574 = vmatprep.mubr.bf16.mxu0 0
        %575 = vmatmul.mubr.bf16.gmra.mxu0 %v455
        %v576 = vpop.f32.mrf.mxu0
        %v577 = vadd.f32 %v323, %v576
        %v578 = vpop.f32.mrf.mxu0
        %v579 = vpop.f32.mrf.mxu0
        %v580 = vadd.f32 %v323, %v579
        %v581 = vpop.f32.mrf.mxu0
        %582 = vmatprep.mubr.bf16.mxu0 0
        %583 = vmatmul.mubr.bf16.gmra.mxu0 %v458
        %v584 = vpop.f32.mrf.mxu0
        %v585 = vadd.f32 %v323, %v584
        %v586 = vpop.f32.mrf.mxu0
        %v587 = vpop.f32.mrf.mxu0
        %v588 = vadd.f32 %v323, %v587
        %v589 = vpop.f32.mrf.mxu0
        %590 = vmatprep.mubr.bf16.mxu0 0
        %591 = vmatmul.mubr.bf16.gmra.mxu0 %v461
        %v592 = vpop.f32.mrf.mxu0
        %v593 = vadd.f32 %v323, %v592
        %v594 = vpop.f32.mrf.mxu0
        %v595 = vpop.f32.mrf.mxu0
        %v596 = vadd.f32 %v323, %v595
        %v597 = vpop.f32.mrf.mxu0
        %598 = vmatprep.mubr.bf16.mxu0 0
        %599 = vmatmul.mubr.bf16.gmra.mxu0 %v464
        %v600 = vpop.f32.mrf.mxu0
        %v601 = vadd.f32 %v323, %v600
        %v602 = vpop.f32.mrf.mxu0
        %v603 = vpop.f32.mrf.mxu0
        %v604 = vadd.f32 %v323, %v603
        %v605 = vpop.f32.mrf.mxu0
        %606 = vmatprep.mubr.bf16.mxu0 0
        %607 = vmatmul.mubr.bf16.gmra.mxu0 %v467
        %v608 = vpop.f32.mrf.mxu0
        %v609 = vadd.f32 %v323, %v608
        %v610 = vpop.f32.mrf.mxu0
        %v611 = vpop.f32.mrf.mxu0
        %v612 = vadd.f32 %v323, %v611
        %v613 = vpop.f32.mrf.mxu0
        %614 = vmatprep.mubr.bf16.mxu0 0
        %615 = vmatmul.mubr.bf16.gmra.mxu0 %v470
        %v616 = vpop.f32.mrf.mxu0
        %v617 = vadd.f32 %v323, %v616
        %v618 = vpop.f32.mrf.mxu0
        %v619 = vpop.f32.mrf.mxu0
        %v620 = vadd.f32 %v323, %v619
        %v621 = vpop.f32.mrf.mxu0
        %622 = vmatprep.mubr.bf16.mxu0 0
        %623 = vmatmul.mubr.bf16.gmra.mxu0 %v473
        %v624 = vpop.f32.mrf.mxu0
        %v625 = vadd.f32 %v323, %v624
        %v626 = vpop.f32.mrf.mxu0
        %v627 = vpop.f32.mrf.mxu0
        %v628 = vadd.f32 %v323, %v627
        %v629 = vpop.f32.mrf.mxu0
        %630 = vmatprep.mubr.bf16.mxu0 0
        %631 = vmatmul.mubr.bf16.gmra.mxu0 %v476
        %v632 = vpop.f32.mrf.mxu0
        %v633 = vadd.f32 %v323, %v632
        %v634 = vpop.f32.mrf.mxu0
        %v635 = vpop.f32.mrf.mxu0
        %v636 = vadd.f32 %v323, %v635
        %v637 = vpop.f32.mrf.mxu0
        %638 = vdwg.mxu0
        %v639 = vmax.f32 %v513, 0.0
        %v640 = vmax.f32 %v516, 0.0
        %v641 = vmax.f32 %v521, 0.0
        %v642 = vmax.f32 %v524, 0.0
        %v643 = vmax.f32 %v529, 0.0
        %v644 = vmax.f32 %v532, 0.0
        %v645 = vmax.f32 %v537, 0.0
        %v646 = vmax.f32 %v540, 0.0
        %v647 = vmax.f32 %v545, 0.0
        %v648 = vmax.f32 %v548, 0.0
        %v649 = vmax.f32 %v553, 0.0
        %v650 = vmax.f32 %v556, 0.0
        %v651 = vmax.f32 %v561, 0.0
        %v652 = vmax.f32 %v564, 0.0
        %v653 = vmax.f32 %v569, 0.0
        %v654 = vmax.f32 %v572, 0.0
        %v655 = vmax.f32 %v577, 0.0
        %v656 = vmax.f32 %v580, 0.0
        %v657 = vmax.f32 %v585, 0.0
        %v658 = vmax.f32 %v588, 0.0
        %v659 = vmax.f32 %v593, 0.0
        %v660 = vmax.f32 %v596, 0.0
        %v661 = vmax.f32 %v601, 0.0
        %v662 = vmax.f32 %v604, 0.0
        %v663 = vmax.f32 %v609, 0.0
        %v664 = vmax.f32 %v612, 0.0
        %v665 = vmax.f32 %v617, 0.0
        %v666 = vmax.f32 %v620, 0.0
        %v667 = vmax.f32 %v625, 0.0
        %v668 = vmax.f32 %v628, 0.0
        %v669 = vmax.f32 %v633, 0.0
        %v670 = vmax.f32 %v636, 0.0
        %v671 = vpack.c.bf16 %v640, %v639
        %v672 = vpack.c.bf16 %v642, %v641
        %v673 = vpack.c.bf16 %v644, %v643
        %v674 = vpack.c.bf16 %v646, %v645
        %v675 = vpack.c.bf16 %v648, %v647
        %v676 = vpack.c.bf16 %v650, %v649
        %v677 = vpack.c.bf16 %v652, %v651
        %v678 = vpack.c.bf16 %v654, %v653
        %v679 = vpack.c.bf16 %v656, %v655
        %v680 = vpack.c.bf16 %v658, %v657
        %v681 = vpack.c.bf16 %v660, %v659
        %v682 = vpack.c.bf16 %v662, %v661
        %v683 = vpack.c.bf16 %v664, %v663
        %v684 = vpack.c.bf16 %v666, %v665
        %v685 = vpack.c.bf16 %v668, %v667
        %v686 = vpack.c.bf16 %v670, %v669
        %v687 = vld [vmem:[%s4] sm:$0xf]
        %v688 = vld [vmem:[%s4 + $0x4] sm:$0xf]
        %v689 = vld [vmem:[%s4 + $0x8] sm:$0xf]
        %v690 = vld [vmem:[%s4 + $0xc] sm:$0xf]
        %v691 = vld [vmem:[%s4 + $0x10] sm:$0xf]
        %v692 = vld [vmem:[%s4 + $0x14] sm:$0xf]
        %v693 = vld [vmem:[%s4 + $0x18] sm:$0xf]
        %v694 = vld [vmem:[%s4 + $0x1c] sm:$0xf]
        %v695 = vld [vmem:[%s4 + $0x20] sm:$0xf]
        %v696 = vld [vmem:[%s4 + $0x24] sm:$0xf]
        %v697 = vld [vmem:[%s4 + $0x28] sm:$0xf]
        %v698 = vld [vmem:[%s4 + $0x2c] sm:$0xf]
        %v699 = vld [vmem:[%s4 + $0x30] sm:$0xf]
        %v700 = vld [vmem:[%s4 + $0x34] sm:$0xf]
        %v701 = vld [vmem:[%s4 + $0x38] sm:$0xf]
        %v702 = vld [vmem:[%s4 + $0x3c] sm:$0xf]
        %v703 = vld [vmem:[%s5] sm:$0x1]
        %v705 = vlaneseq
        %v706 = vshrl.u32 %v705, 7
        %v707 = vsub.s32 0, %v706
        %v708 = vrot.slane %v703, %v707
        %v726 = vunpack.c.l.b16 %v687
        %v727 = vunpack.c.l.b16 %v688
        %v728 = vunpack.c.l.b16 %v689
        %v729 = vunpack.c.l.b16 %v690
        %v730 = vunpack.c.l.b16 %v691
        %v731 = vunpack.c.l.b16 %v692
        %v732 = vunpack.c.l.b16 %v693
        %v733 = vunpack.c.l.b16 %v694
        %v734 = vunpack.c.l.b16 %v695
        %v735 = vunpack.c.l.b16 %v696
        %v736 = vunpack.c.l.b16 %v697
        %v737 = vunpack.c.l.b16 %v698
        %v738 = vunpack.c.l.b16 %v699
        %v739 = vunpack.c.l.b16 %v700
        %v740 = vunpack.c.l.b16 %v701
        %v741 = vunpack.c.l.b16 %v702
        %v742 = vpack.c.b16 %v727, %v726
        %v743 = vpack.c.b16 %v729, %v728
        %v744 = vpack.c.b16 %v731, %v730
        %v745 = vpack.c.b16 %v733, %v732
        %v746 = vpack.c.b16 %v735, %v734
        %v747 = vpack.c.b16 %v737, %v736
        %v748 = vpack.c.b16 %v739, %v738
        %v749 = vpack.c.b16 %v741, %v740
        %758 = vmatprep.subr.bf16.mxu0 0
        %759 = vmatpush1.bf16.msra.mxu0 %v749
        %760 = vmatprep.subr.bf16.mxu0 0
        %761 = vmatpush1.bf16.msra.mxu0 %v748
        %762 = vmatprep.subr.bf16.mxu0 0
        %763 = vmatpush1.bf16.msra.mxu0 %v747
        %764 = vmatprep.subr.bf16.mxu0 0
        %765 = vmatpush1.bf16.msra.mxu0 %v746
        %766 = vmatprep.subr.bf16.mxu0 0
        %767 = vmatpush1.bf16.msra.mxu0 %v745
        %768 = vmatprep.subr.bf16.mxu0 0
        %769 = vmatpush1.bf16.msra.mxu0 %v744
        %770 = vmatprep.subr.bf16.mxu0 0
        %771 = vmatpush1.bf16.msra.mxu0 %v743
        %772 = vmatprep.subr.bf16.mxu0 0
        %773 = vmatpush1.bf16.msra.mxu0 %v742
        %774 = vmatprep.subr.bf16.mxu0 0
        %775 = vmatpush2.bf16.msra.mxu0 0
        %776 = vmatprep.subr.bf16.mxu0 0
        %777 = vmatpush2.bf16.msra.mxu0 0
        %778 = vmatprep.subr.bf16.mxu0 0
        %779 = vmatpush2.bf16.msra.mxu0 0
        %780 = vmatprep.subr.bf16.mxu0 0
        %781 = vmatpush2.bf16.msra.mxu0 0
        %782 = vmatprep.subr.bf16.mxu0 0
        %783 = vmatpush2.bf16.msra.mxu0 0
        %784 = vmatprep.subr.bf16.mxu0 0
        %785 = vmatpush2.bf16.msra.mxu0 0
        %786 = vmatprep.subr.bf16.mxu0 0
        %787 = vmatpush2.bf16.msra.mxu0 0
        %788 = vmatprep.subr.bf16.mxu0 0
        %789 = vmatpush2.bf16.msra.mxu0 0
        %790 = vmatprep.mubr.bf16.mxu0 0
        %791 = vmatmul.mubr.bf16.gmra.mxu0 %v671
        %v792 = vpop.f32.mrf.mxu0
        %v793 = vadd.f32 %v708, %v792
        %v794 = vpop.f32.mrf.mxu0
        %v795 = vpop.f32.mrf.mxu0
        %v796 = vadd.f32 %v708, %v795
        %v797 = vpop.f32.mrf.mxu0
        %798 = vmatprep.mubr.bf16.mxu0 0
        %799 = vmatmul.mubr.bf16.gmra.mxu0 %v672
        %v800 = vpop.f32.mrf.mxu0
        %v801 = vadd.f32 %v708, %v800
        %v802 = vpop.f32.mrf.mxu0
        %v803 = vpop.f32.mrf.mxu0
        %v804 = vadd.f32 %v708, %v803
        %v805 = vpop.f32.mrf.mxu0
        %806 = vmatprep.mubr.bf16.mxu0 0
        %807 = vmatmul.mubr.bf16.gmra.mxu0 %v673
        %v808 = vpop.f32.mrf.mxu0
        %v809 = vadd.f32 %v708, %v808
        %v810 = vpop.f32.mrf.mxu0
        %v811 = vpop.f32.mrf.mxu0
        %v812 = vadd.f32 %v708, %v811
        %v813 = vpop.f32.mrf.mxu0
        %814 = vmatprep.mubr.bf16.mxu0 0
        %815 = vmatmul.mubr.bf16.gmra.mxu0 %v674
        %v816 = vpop.f32.mrf.mxu0
        %v817 = vadd.f32 %v708, %v816
        %v818 = vpop.f32.mrf.mxu0
        %v819 = vpop.f32.mrf.mxu0
        %v820 = vadd.f32 %v708, %v819
        %v821 = vpop.f32.mrf.mxu0
        %822 = vmatprep.mubr.bf16.mxu0 0
        %823 = vmatmul.mubr.bf16.gmra.mxu0 %v675
        %v824 = vpop.f32.mrf.mxu0
        %v825 = vadd.f32 %v708, %v824
        %v826 = vpop.f32.mrf.mxu0
        %v827 = vpop.f32.mrf.mxu0
        %v828 = vadd.f32 %v708, %v827
        %v829 = vpop.f32.mrf.mxu0
        %830 = vmatprep.mubr.bf16.mxu0 0
        %831 = vmatmul.mubr.bf16.gmra.mxu0 %v676
        %v832 = vpop.f32.mrf.mxu0
        %v833 = vadd.f32 %v708, %v832
        %v834 = vpop.f32.mrf.mxu0
        %v835 = vpop.f32.mrf.mxu0
        %v836 = vadd.f32 %v708, %v835
        %v837 = vpop.f32.mrf.mxu0
        %838 = vmatprep.mubr.bf16.mxu0 0
        %839 = vmatmul.mubr.bf16.gmra.mxu0 %v677
        %v840 = vpop.f32.mrf.mxu0
        %v841 = vadd.f32 %v708, %v840
        %v842 = vpop.f32.mrf.mxu0
        %v843 = vpop.f32.mrf.mxu0
        %v844 = vadd.f32 %v708, %v843
        %v845 = vpop.f32.mrf.mxu0
        %846 = vmatprep.mubr.bf16.mxu0 0
        %847 = vmatmul.mubr.bf16.gmra.mxu0 %v678
        %v848 = vpop.f32.mrf.mxu0
        %v849 = vadd.f32 %v708, %v848
        %v850 = vpop.f32.mrf.mxu0
        %v851 = vpop.f32.mrf.mxu0
        %v852 = vadd.f32 %v708, %v851
        %v853 = vpop.f32.mrf.mxu0
        %854 = vmatprep.mubr.bf16.mxu0 0
        %855 = vmatmul.mubr.bf16.gmra.mxu0 %v679
        %v856 = vpop.f32.mrf.mxu0
        %v857 = vadd.f32 %v708, %v856
        %v858 = vpop.f32.mrf.mxu0
        %v859 = vpop.f32.mrf.mxu0
        %v860 = vadd.f32 %v708, %v859
        %v861 = vpop.f32.mrf.mxu0
        %862 = vmatprep.mubr.bf16.mxu0 0
        %863 = vmatmul.mubr.bf16.gmra.mxu0 %v680
        %v864 = vpop.f32.mrf.mxu0
        %v865 = vadd.f32 %v708, %v864
        %v866 = vpop.f32.mrf.mxu0
        %v867 = vpop.f32.mrf.mxu0
        %v868 = vadd.f32 %v708, %v867
        %v869 = vpop.f32.mrf.mxu0
        %870 = vmatprep.mubr.bf16.mxu0 0
        %871 = vmatmul.mubr.bf16.gmra.mxu0 %v681
        %v872 = vpop.f32.mrf.mxu0
        %v873 = vadd.f32 %v708, %v872
        %v874 = vpop.f32.mrf.mxu0
        %v875 = vpop.f32.mrf.mxu0
        %v876 = vadd.f32 %v708, %v875
        %v877 = vpop.f32.mrf.mxu0
        %878 = vmatprep.mubr.bf16.mxu0 0
        %879 = vmatmul.mubr.bf16.gmra.mxu0 %v682
        %v880 = vpop.f32.mrf.mxu0
        %v881 = vadd.f32 %v708, %v880
        %v882 = vpop.f32.mrf.mxu0
        %v883 = vpop.f32.mrf.mxu0
        %v884 = vadd.f32 %v708, %v883
        %v885 = vpop.f32.mrf.mxu0
        %886 = vmatprep.mubr.bf16.mxu0 0
        %887 = vmatmul.mubr.bf16.gmra.mxu0 %v683
        %v888 = vpop.f32.mrf.mxu0
        %v889 = vadd.f32 %v708, %v888
        %v890 = vpop.f32.mrf.mxu0
        %v891 = vpop.f32.mrf.mxu0
        %v892 = vadd.f32 %v708, %v891
        %v893 = vpop.f32.mrf.mxu0
        %894 = vmatprep.mubr.bf16.mxu0 0
        %895 = vmatmul.mubr.bf16.gmra.mxu0 %v684
        %v896 = vpop.f32.mrf.mxu0
        %v897 = vadd.f32 %v708, %v896
        %v898 = vpop.f32.mrf.mxu0
        %v899 = vpop.f32.mrf.mxu0
        %v900 = vadd.f32 %v708, %v899
        %v901 = vpop.f32.mrf.mxu0
        %902 = vmatprep.mubr.bf16.mxu0 0
        %903 = vmatmul.mubr.bf16.gmra.mxu0 %v685
        %v904 = vpop.f32.mrf.mxu0
        %v905 = vadd.f32 %v708, %v904
        %v906 = vpop.f32.mrf.mxu0
        %v907 = vpop.f32.mrf.mxu0
        %v908 = vadd.f32 %v708, %v907
        %v909 = vpop.f32.mrf.mxu0
        %910 = vmatprep.mubr.bf16.mxu0 0
        %911 = vmatmul.mubr.bf16.gmra.mxu0 %v686
        %v912 = vpop.f32.mrf.mxu0
        %v913 = vadd.f32 %v708, %v912
        %v914 = vpop.f32.mrf.mxu0
        %v915 = vpop.f32.mrf.mxu0
        %v916 = vadd.f32 %v708, %v915
        %v917 = vpop.f32.mrf.mxu0
        %918 = vdwg.mxu0
        %v919 = vlaneseq
        %v920 = vshrl.u32 %v919, 7
        %v921 = vadd.s32 %v920, 8
        %v922 = vadd.s32 %v920, 16
        %v923 = vadd.s32 %v920, 24
        %v924 = vadd.s32 %v920, 32
        %v925 = vadd.s32 %v920, 40
        %v926 = vadd.s32 %v920, 48
        %v927 = vadd.s32 %v920, 56
        %v928 = vadd.s32 %v920, 64
        %v929 = vadd.s32 %v920, 72
        %v930 = vadd.s32 %v920, 80
        %v931 = vadd.s32 %v920, 88
        %v932 = vadd.s32 %v920, 96
        %v933 = vadd.s32 %v920, 104
        %v934 = vadd.s32 %v920, 112
        %v935 = vadd.s32 %v920, 120
        %v936 = vadd.s32 %v920, 128
        %v937 = vadd.s32 %v920, 136
        %v938 = vadd.s32 %v920, 144
        %v939 = vadd.s32 %v920, 152
        %v940 = vadd.s32 %v920, 160
        %v941 = vadd.s32 %v920, 168
        %v942 = vadd.s32 %v920, 176
        %v943 = vadd.s32 %v920, 184
        %v944 = vadd.s32 %v920, 192
        %v945 = vadd.s32 %v920, 200
        %v946 = vadd.s32 %v920, 208
        %v947 = vadd.s32 %v920, 216
        %v948 = vadd.s32 %v920, 224
        %v949 = vadd.s32 %v920, 232
        %v950 = vadd.s32 %v920, 240
        %v951 = vadd.s32 %v920, 248
        %v952 = vstv %s273
        %v953 = vadd.s32 %v952, %v920
        %v954 = vadd.s32 %v952, %v921
        %v955 = vadd.s32 %v952, %v922
        %v956 = vadd.s32 %v952, %v923
        %v957 = vadd.s32 %v952, %v924
        %v958 = vadd.s32 %v952, %v925
        %v959 = vadd.s32 %v952, %v926
        %v960 = vadd.s32 %v952, %v927
        %v961 = vadd.s32 %v952, %v928
        %v962 = vadd.s32 %v952, %v929
        %v963 = vadd.s32 %v952, %v930
        %v964 = vadd.s32 %v952, %v931
        %v965 = vadd.s32 %v952, %v932
        %v966 = vadd.s32 %v952, %v933
        %v967 = vadd.s32 %v952, %v934
        %v968 = vadd.s32 %v952, %v935
        %v969 = vadd.s32 %v952, %v936
        %v970 = vadd.s32 %v952, %v937
        %v971 = vadd.s32 %v952, %v938
        %v972 = vadd.s32 %v952, %v939
        %v973 = vadd.s32 %v952, %v940
        %v974 = vadd.s32 %v952, %v941
        %v975 = vadd.s32 %v952, %v942
        %v976 = vadd.s32 %v952, %v943
        %v977 = vadd.s32 %v952, %v944
        %v978 = vadd.s32 %v952, %v945
        %v979 = vadd.s32 %v952, %v946
        %v980 = vadd.s32 %v952, %v947
        %v981 = vadd.s32 %v952, %v948
        %v982 = vadd.s32 %v952, %v949
        %v983 = vadd.s32 %v952, %v950
        %v984 = vadd.s32 %v952, %v951
        %vm985 = vcmp.lt.s32.totalorder %v953, 512
        %vm986 = vcmp.lt.s32.totalorder %v954, 512
        %vm987 = vcmp.lt.s32.totalorder %v955, 512
        %vm988 = vcmp.lt.s32.totalorder %v956, 512
        %vm989 = vcmp.lt.s32.totalorder %v957, 512
        %vm990 = vcmp.lt.s32.totalorder %v958, 512
        %vm991 = vcmp.lt.s32.totalorder %v959, 512
        %vm992 = vcmp.lt.s32.totalorder %v960, 512
        %vm993 = vcmp.lt.s32.totalorder %v961, 512
        %vm994 = vcmp.lt.s32.totalorder %v962, 512
        %vm995 = vcmp.lt.s32.totalorder %v963, 512
        %vm996 = vcmp.lt.s32.totalorder %v964, 512
        %vm997 = vcmp.lt.s32.totalorder %v965, 512
        %vm998 = vcmp.lt.s32.totalorder %v966, 512
        %vm999 = vcmp.lt.s32.totalorder %v967, 512
        %vm1000 = vcmp.lt.s32.totalorder %v968, 512
        %vm1001 = vcmp.lt.s32.totalorder %v969, 512
        %vm1002 = vcmp.lt.s32.totalorder %v970, 512
        %vm1003 = vcmp.lt.s32.totalorder %v971, 512
        %vm1004 = vcmp.lt.s32.totalorder %v972, 512
        %vm1005 = vcmp.lt.s32.totalorder %v973, 512
        %vm1006 = vcmp.lt.s32.totalorder %v974, 512
        %vm1007 = vcmp.lt.s32.totalorder %v975, 512
        %vm1008 = vcmp.lt.s32.totalorder %v976, 512
        %vm1009 = vcmp.lt.s32.totalorder %v977, 512
        %vm1010 = vcmp.lt.s32.totalorder %v978, 512
        %vm1011 = vcmp.lt.s32.totalorder %v979, 512
        %vm1012 = vcmp.lt.s32.totalorder %v980, 512
        %vm1013 = vcmp.lt.s32.totalorder %v981, 512
        %vm1014 = vcmp.lt.s32.totalorder %v982, 512
        %vm1015 = vcmp.lt.s32.totalorder %v983, 512
        %vm1016 = vcmp.lt.s32.totalorder %v984, 512
        %v1017 = vsel %vm985, %v793, 0.0
        %v1018 = vsel %vm986, %v796, 0.0
        %v1019 = vsel %vm987, %v801, 0.0
        %v1020 = vsel %vm988, %v804, 0.0
        %v1021 = vsel %vm989, %v809, 0.0
        %v1022 = vsel %vm990, %v812, 0.0
        %v1023 = vsel %vm991, %v817, 0.0
        %v1024 = vsel %vm992, %v820, 0.0
        %v1025 = vsel %vm993, %v825, 0.0
        %v1026 = vsel %vm994, %v828, 0.0
        %v1027 = vsel %vm995, %v833, 0.0
        %v1028 = vsel %vm996, %v836, 0.0
        %v1029 = vsel %vm997, %v841, 0.0
        %v1030 = vsel %vm998, %v844, 0.0
        %v1031 = vsel %vm999, %v849, 0.0
        %v1032 = vsel %vm1000, %v852, 0.0
        %v1033 = vsel %vm1001, %v857, 0.0
        %v1034 = vsel %vm1002, %v860, 0.0
        %v1035 = vsel %vm1003, %v865, 0.0
        %v1036 = vsel %vm1004, %v868, 0.0
        %v1037 = vsel %vm1005, %v873, 0.0
        %v1038 = vsel %vm1006, %v876, 0.0
        %v1039 = vsel %vm1007, %v881, 0.0
        %v1040 = vsel %vm1008, %v884, 0.0
        %v1041 = vsel %vm1009, %v889, 0.0
        %v1042 = vsel %vm1010, %v892, 0.0
        %v1043 = vsel %vm1011, %v897, 0.0
        %v1044 = vsel %vm1012, %v900, 0.0
        %v1045 = vsel %vm1013, %v905, 0.0
        %v1046 = vsel %vm1014, %v908, 0.0
        %v1047 = vsel %vm1015, %v913, 0.0
        %v1048 = vsel %vm1016, %v916, 0.0
        %v1049 = vpack.c.bf16 %v1018, %v1017
        %v1050 = vpack.c.bf16 %v1020, %v1019
        %v1051 = vpack.c.bf16 %v1022, %v1021
        %v1052 = vpack.c.bf16 %v1024, %v1023
        %v1053 = vpack.c.bf16 %v1026, %v1025
        %v1054 = vpack.c.bf16 %v1028, %v1027
        %v1055 = vpack.c.bf16 %v1030, %v1029
        %v1056 = vpack.c.bf16 %v1032, %v1031
        %v1057 = vpack.c.bf16 %v1034, %v1033
        %v1058 = vpack.c.bf16 %v1036, %v1035
        %v1059 = vpack.c.bf16 %v1038, %v1037
        %v1060 = vpack.c.bf16 %v1040, %v1039
        %v1061 = vpack.c.bf16 %v1042, %v1041
        %v1062 = vpack.c.bf16 %v1044, %v1043
        %v1063 = vpack.c.bf16 %v1046, %v1045
        %v1064 = vpack.c.bf16 %v1048, %v1047
        %v1081 = vunpack.c.l.b16 %v1049
        %v1082 = vunpack.c.h.b16 %v1049
        %v1083 = vunpack.c.l.b16 %v1050
        %v1084 = vunpack.c.h.b16 %v1050
        %v1085 = vunpack.c.l.b16 %v1051
        %v1086 = vunpack.c.h.b16 %v1051
        %v1087 = vunpack.c.l.b16 %v1052
        %v1088 = vunpack.c.h.b16 %v1052
        %v1089 = vunpack.c.l.b16 %v1053
        %v1090 = vunpack.c.h.b16 %v1053
        %v1091 = vunpack.c.l.b16 %v1054
        %v1092 = vunpack.c.h.b16 %v1054
        %v1093 = vunpack.c.l.b16 %v1055
        %v1094 = vunpack.c.h.b16 %v1055
        %v1095 = vunpack.c.l.b16 %v1056
        %v1096 = vunpack.c.h.b16 %v1056
        %v1097 = vunpack.c.l.b16 %v1057
        %v1098 = vunpack.c.h.b16 %v1057
        %v1099 = vunpack.c.l.b16 %v1058
        %v1100 = vunpack.c.h.b16 %v1058
        %v1101 = vunpack.c.l.b16 %v1059
        %v1102 = vunpack.c.h.b16 %v1059
        %v1103 = vunpack.c.l.b16 %v1060
        %v1104 = vunpack.c.h.b16 %v1060
        %v1105 = vunpack.c.l.b16 %v1061
        %v1106 = vunpack.c.h.b16 %v1061
        %v1107 = vunpack.c.l.b16 %v1062
        %v1108 = vunpack.c.h.b16 %v1062
        %v1109 = vunpack.c.l.b16 %v1063
        %v1110 = vunpack.c.h.b16 %v1063
        %v1111 = vunpack.c.l.b16 %v1064
        %v1112 = vunpack.c.h.b16 %v1064
        %v1113 = vpack.c.b16 %v1081, %v1081
        %v1114 = vpack.c.b16 %v1082, %v1082
        %v1115 = vpack.c.b16 %v1083, %v1083
        %v1116 = vpack.c.b16 %v1084, %v1084
        %v1117 = vpack.c.b16 %v1085, %v1085
        %v1118 = vpack.c.b16 %v1086, %v1086
        %v1119 = vpack.c.b16 %v1087, %v1087
        %v1120 = vpack.c.b16 %v1088, %v1088
        %v1121 = vpack.c.b16 %v1089, %v1089
        %v1122 = vpack.c.b16 %v1090, %v1090
        %v1123 = vpack.c.b16 %v1091, %v1091
        %v1124 = vpack.c.b16 %v1092, %v1092
        %v1125 = vpack.c.b16 %v1093, %v1093
        %v1126 = vpack.c.b16 %v1094, %v1094
        %v1127 = vpack.c.b16 %v1095, %v1095
        %v1128 = vpack.c.b16 %v1096, %v1096
        %v1129 = vpack.c.b16 %v1097, %v1097
        %v1130 = vpack.c.b16 %v1098, %v1098
        %v1131 = vpack.c.b16 %v1099, %v1099
        %v1132 = vpack.c.b16 %v1100, %v1100
        %v1133 = vpack.c.b16 %v1101, %v1101
        %v1134 = vpack.c.b16 %v1102, %v1102
        %v1135 = vpack.c.b16 %v1103, %v1103
        %v1136 = vpack.c.b16 %v1104, %v1104
        %v1137 = vpack.c.b16 %v1105, %v1105
        %v1138 = vpack.c.b16 %v1106, %v1106
        %v1139 = vpack.c.b16 %v1107, %v1107
        %v1140 = vpack.c.b16 %v1108, %v1108
        %v1141 = vpack.c.b16 %v1109, %v1109
        %v1142 = vpack.c.b16 %v1110, %v1110
        %v1143 = vpack.c.b16 %v1111, %v1111
        %v1144 = vpack.c.b16 %v1112, %v1112
        %s1177 = sshra.s32 %s273, 3
        %s1178 = sand.u32 %s273, 7
        %s1179 = smul.addr %s1177, 4
        %s1180 = scalar_lea.vmem [#allocation2], %s1179
        %1181 = vst [vmem:[%s1180] sm:$0xf] %v1113
        %1182 = vst [vmem:[%s1180 + $0x4] sm:$0xf] %v1114
        %1183 = vst [vmem:[%s1180 + $0x8] sm:$0xf] %v1115
        %1184 = vst [vmem:[%s1180 + $0xc] sm:$0xf] %v1116
        %1185 = vst [vmem:[%s1180 + $0x10] sm:$0xf] %v1117
        %1186 = vst [vmem:[%s1180 + $0x14] sm:$0xf] %v1118
        %1187 = vst [vmem:[%s1180 + $0x18] sm:$0xf] %v1119
        %1188 = vst [vmem:[%s1180 + $0x1c] sm:$0xf] %v1120
        %1189 = vst [vmem:[%s1180 + $0x20] sm:$0xf] %v1121
        %1190 = vst [vmem:[%s1180 + $0x24] sm:$0xf] %v1122
        %1191 = vst [vmem:[%s1180 + $0x28] sm:$0xf] %v1123
        %1192 = vst [vmem:[%s1180 + $0x2c] sm:$0xf] %v1124
        %1193 = vst [vmem:[%s1180 + $0x30] sm:$0xf] %v1125
        %1194 = vst [vmem:[%s1180 + $0x34] sm:$0xf] %v1126
        %1195 = vst [vmem:[%s1180 + $0x38] sm:$0xf] %v1127
        %1196 = vst [vmem:[%s1180 + $0x3c] sm:$0xf] %v1128
        %1197 = vst [vmem:[%s1180 + $0x40] sm:$0xf] %v1129
        %1198 = vst [vmem:[%s1180 + $0x44] sm:$0xf] %v1130
        %1199 = vst [vmem:[%s1180 + $0x48] sm:$0xf] %v1131
        %1200 = vst [vmem:[%s1180 + $0x4c] sm:$0xf] %v1132
        %1201 = vst [vmem:[%s1180 + $0x50] sm:$0xf] %v1133
        %1202 = vst [vmem:[%s1180 + $0x54] sm:$0xf] %v1134
        %1203 = vst [vmem:[%s1180 + $0x58] sm:$0xf] %v1135
        %1204 = vst [vmem:[%s1180 + $0x5c] sm:$0xf] %v1136
        %1205 = vst [vmem:[%s1180 + $0x60] sm:$0xf] %v1137
        %1206 = vst [vmem:[%s1180 + $0x64] sm:$0xf] %v1138
        %1207 = vst [vmem:[%s1180 + $0x68] sm:$0xf] %v1139
        %1208 = vst [vmem:[%s1180 + $0x6c] sm:$0xf] %v1140
        %1209 = vst [vmem:[%s1180 + $0x70] sm:$0xf] %v1141
        %1210 = vst [vmem:[%s1180 + $0x74] sm:$0xf] %v1142
        %1211 = vst [vmem:[%s1180 + $0x78] sm:$0xf] %v1143
        %1212 = vst [vmem:[%s1180 + $0x7c] sm:$0xf] %v1144
        %s1213 = sld [smem:[#allocation4]]
        %v1214 = vstv %s1213
        %v1215 = vmul.f32 %v1214, %v1017
        %v1216 = vmul.f32 %v1214, %v1018
        %v1217 = vmul.f32 %v1214, %v1019
        %v1218 = vmul.f32 %v1214, %v1020
        %v1219 = vmul.f32 %v1214, %v1021
        %v1220 = vmul.f32 %v1214, %v1022
        %v1221 = vmul.f32 %v1214, %v1023
        %v1222 = vmul.f32 %v1214, %v1024
        %v1223 = vmul.f32 %v1214, %v1025
        %v1224 = vmul.f32 %v1214, %v1026
        %v1225 = vmul.f32 %v1214, %v1027
        %v1226 = vmul.f32 %v1214, %v1028
        %v1227 = vmul.f32 %v1214, %v1029
        %v1228 = vmul.f32 %v1214, %v1030
        %v1229 = vmul.f32 %v1214, %v1031
        %v1230 = vmul.f32 %v1214, %v1032
        %v1231 = vmul.f32 %v1214, %v1033
        %v1232 = vmul.f32 %v1214, %v1034
        %v1233 = vmul.f32 %v1214, %v1035
        %v1234 = vmul.f32 %v1214, %v1036
        %v1235 = vmul.f32 %v1214, %v1037
        %v1236 = vmul.f32 %v1214, %v1038
        %v1237 = vmul.f32 %v1214, %v1039
        %v1238 = vmul.f32 %v1214, %v1040
        %v1239 = vmul.f32 %v1214, %v1041
        %v1240 = vmul.f32 %v1214, %v1042
        %v1241 = vmul.f32 %v1214, %v1043
        %v1242 = vmul.f32 %v1214, %v1044
        %v1243 = vmul.f32 %v1214, %v1045
        %v1244 = vmul.f32 %v1214, %v1046
        %v1245 = vmul.f32 %v1214, %v1047
        %v1246 = vmul.f32 %v1214, %v1048
        %s1247 = scalar_lea.vmem %s7, %s273
        %1248 = vst [vmem:[%s1247] sm:$0xff] %v1215
        %1249 = vst [vmem:[%s1247 + $0x8] sm:$0xff] %v1216
        %1250 = vst [vmem:[%s1247 + $0x10] sm:$0xff] %v1217
        %1251 = vst [vmem:[%s1247 + $0x18] sm:$0xff] %v1218
        %1252 = vst [vmem:[%s1247 + $0x20] sm:$0xff] %v1219
        %1253 = vst [vmem:[%s1247 + $0x28] sm:$0xff] %v1220
        %1254 = vst [vmem:[%s1247 + $0x30] sm:$0xff] %v1221
        %1255 = vst [vmem:[%s1247 + $0x38] sm:$0xff] %v1222
        %1256 = vst [vmem:[%s1247 + $0x40] sm:$0xff] %v1223
        %1257 = vst [vmem:[%s1247 + $0x48] sm:$0xff] %v1224
        %1258 = vst [vmem:[%s1247 + $0x50] sm:$0xff] %v1225
        %1259 = vst [vmem:[%s1247 + $0x58] sm:$0xff] %v1226
        %1260 = vst [vmem:[%s1247 + $0x60] sm:$0xff] %v1227
        %1261 = vst [vmem:[%s1247 + $0x68] sm:$0xff] %v1228
        %1262 = vst [vmem:[%s1247 + $0x70] sm:$0xff] %v1229
        %1263 = vst [vmem:[%s1247 + $0x78] sm:$0xff] %v1230
        %1264 = vst [vmem:[%s1247 + $0x80] sm:$0xff] %v1231
        %1265 = vst [vmem:[%s1247 + $0x88] sm:$0xff] %v1232
        %1266 = vst [vmem:[%s1247 + $0x90] sm:$0xff] %v1233
        %1267 = vst [vmem:[%s1247 + $0x98] sm:$0xff] %v1234
        %1268 = vst [vmem:[%s1247 + $0xa0] sm:$0xff] %v1235
        %1269 = vst [vmem:[%s1247 + $0xa8] sm:$0xff] %v1236
        %1270 = vst [vmem:[%s1247 + $0xb0] sm:$0xff] %v1237
        %1271 = vst [vmem:[%s1247 + $0xb8] sm:$0xff] %v1238
        %1272 = vst [vmem:[%s1247 + $0xc0] sm:$0xff] %v1239
        %1273 = vst [vmem:[%s1247 + $0xc8] sm:$0xff] %v1240
        %1274 = vst [vmem:[%s1247 + $0xd0] sm:$0xff] %v1241
        %1275 = vst [vmem:[%s1247 + $0xd8] sm:$0xff] %v1242
        %1276 = vst [vmem:[%s1247 + $0xe0] sm:$0xff] %v1243
        %1277 = vst [vmem:[%s1247 + $0xe8] sm:$0xff] %v1244
        %1278 = vst [vmem:[%s1247 + $0xf0] sm:$0xff] %v1245
        %1279 = vst [vmem:[%s1247 + $0xf8] sm:$0xff] %v1246
      $region48: #{gprgnn_forward.1} parent=43 // pred_fallthru
        _
      %p1280 = scmp.gt.s32.totalorder %s28, 0
      // Predicated region
      $region49: #{gprgnn_forward.1} parent=43 // pred_check
        %p1281 = pneg %p1280
      $region50: #{gprgnn_forward.1} parent=43 // pred_check_branch
        %1283 = sbr.rel (%p1281) target = $region52
      $region51: #{gprgnn_forward.1} parent=43 // pred_region
        %s1284 = sld [smem:[#allocation4 + %s28]]
        %s1285 = sshra.s32 %s273, 3
        %s1286 = sand.u32 %s273, 7
        %s1287 = smul.u32 %s1285, 4
        %s1288 = smul.addr %s1287, 4
        %s1289 = scalar_lea.vmem %s6, %s1288
        %v1290 = vld [vmem:[%s1289] sm:$0xff]
        %v1291 = vld [vmem:[%s1289 + $0x8] sm:$0xff]
        %v1292 = vld [vmem:[%s1289 + $0x10] sm:$0xff]
        %v1293 = vld [vmem:[%s1289 + $0x18] sm:$0xff]
        %v1294 = vld [vmem:[%s1289 + $0x20] sm:$0xff]
        %v1295 = vld [vmem:[%s1289 + $0x28] sm:$0xff]
        %v1296 = vld [vmem:[%s1289 + $0x30] sm:$0xff]
        %v1297 = vld [vmem:[%s1289 + $0x38] sm:$0xff]
        %v1298 = vld [vmem:[%s1289 + $0x40] sm:$0xff]
        %v1299 = vld [vmem:[%s1289 + $0x48] sm:$0xff]
        %v1300 = vld [vmem:[%s1289 + $0x50] sm:$0xff]
        %v1301 = vld [vmem:[%s1289 + $0x58] sm:$0xff]
        %v1302 = vld [vmem:[%s1289 + $0x60] sm:$0xff]
        %v1303 = vld [vmem:[%s1289 + $0x68] sm:$0xff]
        %v1304 = vld [vmem:[%s1289 + $0x70] sm:$0xff]
        %v1305 = vld [vmem:[%s1289 + $0x78] sm:$0xff]
        %v1306 = vld [vmem:[%s1289 + $0x80] sm:$0xff]
        %v1307 = vld [vmem:[%s1289 + $0x88] sm:$0xff]
        %v1308 = vld [vmem:[%s1289 + $0x90] sm:$0xff]
        %v1309 = vld [vmem:[%s1289 + $0x98] sm:$0xff]
        %v1310 = vld [vmem:[%s1289 + $0xa0] sm:$0xff]
        %v1311 = vld [vmem:[%s1289 + $0xa8] sm:$0xff]
        %v1312 = vld [vmem:[%s1289 + $0xb0] sm:$0xff]
        %v1313 = vld [vmem:[%s1289 + $0xb8] sm:$0xff]
        %v1314 = vld [vmem:[%s1289 + $0xc0] sm:$0xff]
        %v1315 = vld [vmem:[%s1289 + $0xc8] sm:$0xff]
        %v1316 = vld [vmem:[%s1289 + $0xd0] sm:$0xff]
        %v1317 = vld [vmem:[%s1289 + $0xd8] sm:$0xff]
        %v1318 = vld [vmem:[%s1289 + $0xe0] sm:$0xff]
        %v1319 = vld [vmem:[%s1289 + $0xe8] sm:$0xff]
        %v1320 = vld [vmem:[%s1289 + $0xf0] sm:$0xff]
        %v1321 = vld [vmem:[%s1289 + $0xf8] sm:$0xff]
        %v1322 = vld [vmem:[%s1289 + $0x100] sm:$0xff]
        %v1323 = vld [vmem:[%s1289 + $0x108] sm:$0xff]
        %v1324 = vld [vmem:[%s1289 + $0x110] sm:$0xff]
        %v1325 = vld [vmem:[%s1289 + $0x118] sm:$0xff]
        %v1326 = vld [vmem:[%s1289 + $0x120] sm:$0xff]
        %v1327 = vld [vmem:[%s1289 + $0x128] sm:$0xff]
        %v1328 = vld [vmem:[%s1289 + $0x130] sm:$0xff]
        %v1329 = vld [vmem:[%s1289 + $0x138] sm:$0xff]
        %v1330 = vld [vmem:[%s1289 + $0x140] sm:$0xff]
        %v1331 = vld [vmem:[%s1289 + $0x148] sm:$0xff]
        %v1332 = vld [vmem:[%s1289 + $0x150] sm:$0xff]
        %v1333 = vld [vmem:[%s1289 + $0x158] sm:$0xff]
        %v1334 = vld [vmem:[%s1289 + $0x160] sm:$0xff]
        %v1335 = vld [vmem:[%s1289 + $0x168] sm:$0xff]
        %v1336 = vld [vmem:[%s1289 + $0x170] sm:$0xff]
        %v1337 = vld [vmem:[%s1289 + $0x178] sm:$0xff]
        %v1338 = vld [vmem:[%s1289 + $0x180] sm:$0xff]
        %v1339 = vld [vmem:[%s1289 + $0x188] sm:$0xff]
        %v1340 = vld [vmem:[%s1289 + $0x190] sm:$0xff]
        %v1341 = vld [vmem:[%s1289 + $0x198] sm:$0xff]
        %v1342 = vld [vmem:[%s1289 + $0x1a0] sm:$0xff]
        %v1343 = vld [vmem:[%s1289 + $0x1a8] sm:$0xff]
        %v1344 = vld [vmem:[%s1289 + $0x1b0] sm:$0xff]
        %v1345 = vld [vmem:[%s1289 + $0x1b8] sm:$0xff]
        %v1346 = vld [vmem:[%s1289 + $0x1c0] sm:$0xff]
        %v1347 = vld [vmem:[%s1289 + $0x1c8] sm:$0xff]
        %v1348 = vld [vmem:[%s1289 + $0x1d0] sm:$0xff]
        %v1349 = vld [vmem:[%s1289 + $0x1d8] sm:$0xff]
        %v1350 = vld [vmem:[%s1289 + $0x1e0] sm:$0xff]
        %v1351 = vld [vmem:[%s1289 + $0x1e8] sm:$0xff]
        %v1352 = vld [vmem:[%s1289 + $0x1f0] sm:$0xff]
        %v1353 = vld [vmem:[%s1289 + $0x1f8] sm:$0xff]
        %p1354 = scmp.lt.s32.totalorder %s28, 0
        %s1355 = ssub.s32 0, %s28
        %s1356 = scalar_select %p1354, %s1355, %s28
        %s1357 = sand.u32 %s1356, 1
        %s1358 = ssub.s32 0, %s1357
        %s1359 = scalar_select %p1354, %s1358, %s1357
        %p1360 = scmp.ne.s32.totalorder %s1359, 0
        %p1361 = scmp.lt.s32.totalorder %s1359, 0
        %p1362 = pnand %p1361, %p1360
        %p1363 = pneg %p1362
        %s1364 = sadd.s32 %s1359, 2
        %s1365 = scalar_select %p1363, %s1364, %s1359
        %p1366 = scmp.eq.s32.totalorder %s1365, 1
        // Predicated region
        $region53: #{gprgnn_forward.1} parent=51 // pred_check
          %p1367 = pneg %p1366
        $region54: #{gprgnn_forward.1} parent=51 // pred_check_branch
          %1369 = sbr.rel (%p1367) target = $region56
        $region55: #{gprgnn_forward.1} parent=51 // pred_region
          %v1370 = vld [vmem:[#allocation2] sm:$0xf]
          %v1371 = vld [vmem:[#allocation2 + $0x4] sm:$0xf]
          %v1372 = vld [vmem:[#allocation2 + $0x8] sm:$0xf]
          %v1373 = vld [vmem:[#allocation2 + $0xc] sm:$0xf]
          %v1374 = vld [vmem:[#allocation2 + $0x10] sm:$0xf]
          %v1375 = vld [vmem:[#allocation2 + $0x14] sm:$0xf]
          %v1376 = vld [vmem:[#allocation2 + $0x18] sm:$0xf]
          %v1377 = vld [vmem:[#allocation2 + $0x1c] sm:$0xf]
          %v1378 = vld [vmem:[#allocation2 + $0x20] sm:$0xf]
          %v1379 = vld [vmem:[#allocation2 + $0x24] sm:$0xf]
          %v1380 = vld [vmem:[#allocation2 + $0x28] sm:$0xf]
          %v1381 = vld [vmem:[#allocation2 + $0x2c] sm:$0xf]
          %v1382 = vld [vmem:[#allocation2 + $0x30] sm:$0xf]
          %v1383 = vld [vmem:[#allocation2 + $0x34] sm:$0xf]
          %v1384 = vld [vmem:[#allocation2 + $0x38] sm:$0xf]
          %v1385 = vld [vmem:[#allocation2 + $0x3c] sm:$0xf]
          %v1386 = vld [vmem:[#allocation2 + $0x40] sm:$0xf]
          %v1387 = vld [vmem:[#allocation2 + $0x44] sm:$0xf]
          %v1388 = vld [vmem:[#allocation2 + $0x48] sm:$0xf]
          %v1389 = vld [vmem:[#allocation2 + $0x4c] sm:$0xf]
          %v1390 = vld [vmem:[#allocation2 + $0x50] sm:$0xf]
          %v1391 = vld [vmem:[#allocation2 + $0x54] sm:$0xf]
          %v1392 = vld [vmem:[#allocation2 + $0x58] sm:$0xf]
          %v1393 = vld [vmem:[#allocation2 + $0x5c] sm:$0xf]
          %v1394 = vld [vmem:[#allocation2 + $0x60] sm:$0xf]
          %v1395 = vld [vmem:[#allocation2 + $0x64] sm:$0xf]
          %v1396 = vld [vmem:[#allocation2 + $0x68] sm:$0xf]
          %v1397 = vld [vmem:[#allocation2 + $0x6c] sm:$0xf]
          %v1398 = vld [vmem:[#allocation2 + $0x70] sm:$0xf]
          %v1399 = vld [vmem:[#allocation2 + $0x74] sm:$0xf]
          %v1400 = vld [vmem:[#allocation2 + $0x78] sm:$0xf]
          %v1401 = vld [vmem:[#allocation2 + $0x7c] sm:$0xf]
          %v1402 = vld [vmem:[#allocation2 + $0x80] sm:$0xf]
          %v1403 = vld [vmem:[#allocation2 + $0x84] sm:$0xf]
          %v1404 = vld [vmem:[#allocation2 + $0x88] sm:$0xf]
          %v1405 = vld [vmem:[#allocation2 + $0x8c] sm:$0xf]
          %v1406 = vld [vmem:[#allocation2 + $0x90] sm:$0xf]
          %v1407 = vld [vmem:[#allocation2 + $0x94] sm:$0xf]
          %v1408 = vld [vmem:[#allocation2 + $0x98] sm:$0xf]
          %v1409 = vld [vmem:[#allocation2 + $0x9c] sm:$0xf]
          %v1410 = vld [vmem:[#allocation2 + $0xa0] sm:$0xf]
          %v1411 = vld [vmem:[#allocation2 + $0xa4] sm:$0xf]
          %v1412 = vld [vmem:[#allocation2 + $0xa8] sm:$0xf]
          %v1413 = vld [vmem:[#allocation2 + $0xac] sm:$0xf]
          %v1414 = vld [vmem:[#allocation2 + $0xb0] sm:$0xf]
          %v1415 = vld [vmem:[#allocation2 + $0xb4] sm:$0xf]
          %v1416 = vld [vmem:[#allocation2 + $0xb8] sm:$0xf]
          %v1417 = vld [vmem:[#allocation2 + $0xbc] sm:$0xf]
          %v1418 = vld [vmem:[#allocation2 + $0xc0] sm:$0xf]
          %v1419 = vld [vmem:[#allocation2 + $0xc4] sm:$0xf]
          %v1420 = vld [vmem:[#allocation2 + $0xc8] sm:$0xf]
          %v1421 = vld [vmem:[#allocation2 + $0xcc] sm:$0xf]
          %v1422 = vld [vmem:[#allocation2 + $0xd0] sm:$0xf]
          %v1423 = vld [vmem:[#allocation2 + $0xd4] sm:$0xf]
          %v1424 = vld [vmem:[#allocation2 + $0xd8] sm:$0xf]
          %v1425 = vld [vmem:[#allocation2 + $0xdc] sm:$0xf]
          %v1426 = vld [vmem:[#allocation2 + $0xe0] sm:$0xf]
          %v1427 = vld [vmem:[#allocation2 + $0xe4] sm:$0xf]
          %v1428 = vld [vmem:[#allocation2 + $0xe8] sm:$0xf]
          %v1429 = vld [vmem:[#allocation2 + $0xec] sm:$0xf]
          %v1430 = vld [vmem:[#allocation2 + $0xf0] sm:$0xf]
          %v1431 = vld [vmem:[#allocation2 + $0xf4] sm:$0xf]
          %v1432 = vld [vmem:[#allocation2 + $0xf8] sm:$0xf]
          %v1433 = vld [vmem:[#allocation2 + $0xfc] sm:$0xf]
          %v1498 = vunpack.c.l.b16 %v1290
          %v1499 = vunpack.c.h.b16 %v1290
          %v1500 = vunpack.c.l.b16 %v1291
          %v1501 = vunpack.c.h.b16 %v1291
          %v1502 = vunpack.c.l.b16 %v1292
          %v1503 = vunpack.c.h.b16 %v1292
          %v1504 = vunpack.c.l.b16 %v1293
          %v1505 = vunpack.c.h.b16 %v1293
          %v1506 = vunpack.c.l.b16 %v1294
          %v1507 = vunpack.c.h.b16 %v1294
          %v1508 = vunpack.c.l.b16 %v1295
          %v1509 = vunpack.c.h.b16 %v1295
          %v1510 = vunpack.c.l.b16 %v1296
          %v1511 = vunpack.c.h.b16 %v1296
          %v1512 = vunpack.c.l.b16 %v1297
          %v1513 = vunpack.c.h.b16 %v1297
          %v1514 = vunpack.c.l.b16 %v1298
          %v1515 = vunpack.c.h.b16 %v1298
          %v1516 = vunpack.c.l.b16 %v1299
          %v1517 = vunpack.c.h.b16 %v1299
          %v1518 = vunpack.c.l.b16 %v1300
          %v1519 = vunpack.c.h.b16 %v1300
          %v1520 = vunpack.c.l.b16 %v1301
          %v1521 = vunpack.c.h.b16 %v1301
          %v1522 = vunpack.c.l.b16 %v1302
          %v1523 = vunpack.c.h.b16 %v1302
          %v1524 = vunpack.c.l.b16 %v1303
          %v1525 = vunpack.c.h.b16 %v1303
          %v1526 = vunpack.c.l.b16 %v1304
          %v1527 = vunpack.c.h.b16 %v1304
          %v1528 = vunpack.c.l.b16 %v1305
          %v1529 = vunpack.c.h.b16 %v1305
          %v1530 = vunpack.c.l.b16 %v1306
          %v1531 = vunpack.c.h.b16 %v1306
          %v1532 = vunpack.c.l.b16 %v1307
          %v1533 = vunpack.c.h.b16 %v1307
          %v1534 = vunpack.c.l.b16 %v1308
          %v1535 = vunpack.c.h.b16 %v1308
          %v1536 = vunpack.c.l.b16 %v1309
          %v1537 = vunpack.c.h.b16 %v1309
          %v1538 = vunpack.c.l.b16 %v1310
          %v1539 = vunpack.c.h.b16 %v1310
          %v1540 = vunpack.c.l.b16 %v1311
          %v1541 = vunpack.c.h.b16 %v1311
          %v1542 = vunpack.c.l.b16 %v1312
          %v1543 = vunpack.c.h.b16 %v1312
          %v1544 = vunpack.c.l.b16 %v1313
          %v1545 = vunpack.c.h.b16 %v1313
          %v1546 = vunpack.c.l.b16 %v1314
          %v1547 = vunpack.c.h.b16 %v1314
          %v1548 = vunpack.c.l.b16 %v1315
          %v1549 = vunpack.c.h.b16 %v1315
          %v1550 = vunpack.c.l.b16 %v1316
          %v1551 = vunpack.c.h.b16 %v1316
          %v1552 = vunpack.c.l.b16 %v1317
          %v1553 = vunpack.c.h.b16 %v1317
          %v1554 = vunpack.c.l.b16 %v1318
          %v1555 = vunpack.c.h.b16 %v1318
          %v1556 = vunpack.c.l.b16 %v1319
          %v1557 = vunpack.c.h.b16 %v1319
          %v1558 = vunpack.c.l.b16 %v1320
          %v1559 = vunpack.c.h.b16 %v1320
          %v1560 = vunpack.c.l.b16 %v1321
          %v1561 = vunpack.c.h.b16 %v1321
          %v1562 = vunpack.c.l.b16 %v1322
          %v1563 = vunpack.c.h.b16 %v1322
          %v1564 = vunpack.c.l.b16 %v1323
          %v1565 = vunpack.c.h.b16 %v1323
          %v1566 = vunpack.c.l.b16 %v1324
          %v1567 = vunpack.c.h.b16 %v1324
          %v1568 = vunpack.c.l.b16 %v1325
          %v1569 = vunpack.c.h.b16 %v1325
          %v1570 = vunpack.c.l.b16 %v1326
          %v1571 = vunpack.c.h.b16 %v1326
          %v1572 = vunpack.c.l.b16 %v1327
          %v1573 = vunpack.c.h.b16 %v1327
          %v1574 = vunpack.c.l.b16 %v1328
          %v1575 = vunpack.c.h.b16 %v1328
          %v1576 = vunpack.c.l.b16 %v1329
          %v1577 = vunpack.c.h.b16 %v1329
          %v1578 = vunpack.c.l.b16 %v1330
          %v1579 = vunpack.c.h.b16 %v1330
          %v1580 = vunpack.c.l.b16 %v1331
          %v1581 = vunpack.c.h.b16 %v1331
          %v1582 = vunpack.c.l.b16 %v1332
          %v1583 = vunpack.c.h.b16 %v1332
          %v1584 = vunpack.c.l.b16 %v1333
          %v1585 = vunpack.c.h.b16 %v1333
          %v1586 = vunpack.c.l.b16 %v1334
          %v1587 = vunpack.c.h.b16 %v1334
          %v1588 = vunpack.c.l.b16 %v1335
          %v1589 = vunpack.c.h.b16 %v1335
          %v1590 = vunpack.c.l.b16 %v1336
          %v1591 = vunpack.c.h.b16 %v1336
          %v1592 = vunpack.c.l.b16 %v1337
          %v1593 = vunpack.c.h.b16 %v1337
          %v1594 = vunpack.c.l.b16 %v1338
          %v1595 = vunpack.c.h.b16 %v1338
          %v1596 = vunpack.c.l.b16 %v1339
          %v1597 = vunpack.c.h.b16 %v1339
          %v1598 = vunpack.c.l.b16 %v1340
          %v1599 = vunpack.c.h.b16 %v1340
          %v1600 = vunpack.c.l.b16 %v1341
          %v1601 = vunpack.c.h.b16 %v1341
          %v1602 = vunpack.c.l.b16 %v1342
          %v1603 = vunpack.c.h.b16 %v1342
          %v1604 = vunpack.c.l.b16 %v1343
          %v1605 = vunpack.c.h.b16 %v1343
          %v1606 = vunpack.c.l.b16 %v1344
          %v1607 = vunpack.c.h.b16 %v1344
          %v1608 = vunpack.c.l.b16 %v1345
          %v1609 = vunpack.c.h.b16 %v1345
          %v1610 = vunpack.c.l.b16 %v1346
          %v1611 = vunpack.c.h.b16 %v1346
          %v1612 = vunpack.c.l.b16 %v1347
          %v1613 = vunpack.c.h.b16 %v1347
          %v1614 = vunpack.c.l.b16 %v1348
          %v1615 = vunpack.c.h.b16 %v1348
          %v1616 = vunpack.c.l.b16 %v1349
          %v1617 = vunpack.c.h.b16 %v1349
          %v1618 = vunpack.c.l.b16 %v1350
          %v1619 = vunpack.c.h.b16 %v1350
          %v1620 = vunpack.c.l.b16 %v1351
          %v1621 = vunpack.c.h.b16 %v1351
          %v1622 = vunpack.c.l.b16 %v1352
          %v1623 = vunpack.c.h.b16 %v1352
          %v1624 = vunpack.c.l.b16 %v1353
          %v1625 = vunpack.c.h.b16 %v1353
          %v1626 = vpack.c.b16 %v1502, %v1498
          %v1627 = vpack.c.b16 %v1503, %v1499
          %v1628 = vpack.c.b16 %v1504, %v1500
          %v1629 = vpack.c.b16 %v1505, %v1501
          %v1630 = vpack.c.b16 %v1510, %v1506
          %v1631 = vpack.c.b16 %v1511, %v1507
          %v1632 = vpack.c.b16 %v1512, %v1508
          %v1633 = vpack.c.b16 %v1513, %v1509
          %v1634 = vpack.c.b16 %v1518, %v1514
          %v1635 = vpack.c.b16 %v1519, %v1515
          %v1636 = vpack.c.b16 %v1520, %v1516
          %v1637 = vpack.c.b16 %v1521, %v1517
          %v1638 = vpack.c.b16 %v1526, %v1522
          %v1639 = vpack.c.b16 %v1527, %v1523
          %v1640 = vpack.c.b16 %v1528, %v1524
          %v1641 = vpack.c.b16 %v1529, %v1525
          %v1642 = vpack.c.b16 %v1534, %v1530
          %v1643 = vpack.c.b16 %v1535, %v1531
          %v1644 = vpack.c.b16 %v1536, %v1532
          %v1645 = vpack.c.b16 %v1537, %v1533
          %v1646 = vpack.c.b16 %v1542, %v1538
          %v1647 = vpack.c.b16 %v1543, %v1539
          %v1648 = vpack.c.b16 %v1544, %v1540
          %v1649 = vpack.c.b16 %v1545, %v1541
          %v1650 = vpack.c.b16 %v1550, %v1546
          %v1651 = vpack.c.b16 %v1551, %v1547
          %v1652 = vpack.c.b16 %v1552, %v1548
          %v1653 = vpack.c.b16 %v1553, %v1549
          %v1654 = vpack.c.b16 %v1558, %v1554
          %v1655 = vpack.c.b16 %v1559, %v1555
          %v1656 = vpack.c.b16 %v1560, %v1556
          %v1657 = vpack.c.b16 %v1561, %v1557
          %v1658 = vpack.c.b16 %v1566, %v1562
          %v1659 = vpack.c.b16 %v1567, %v1563
          %v1660 = vpack.c.b16 %v1568, %v1564
          %v1661 = vpack.c.b16 %v1569, %v1565
          %v1662 = vpack.c.b16 %v1574, %v1570
          %v1663 = vpack.c.b16 %v1575, %v1571
          %v1664 = vpack.c.b16 %v1576, %v1572
          %v1665 = vpack.c.b16 %v1577, %v1573
          %v1666 = vpack.c.b16 %v1582, %v1578
          %v1667 = vpack.c.b16 %v1583, %v1579
          %v1668 = vpack.c.b16 %v1584, %v1580
          %v1669 = vpack.c.b16 %v1585, %v1581
          %v1670 = vpack.c.b16 %v1590, %v1586
          %v1671 = vpack.c.b16 %v1591, %v1587
          %v1672 = vpack.c.b16 %v1592, %v1588
          %v1673 = vpack.c.b16 %v1593, %v1589
          %v1674 = vpack.c.b16 %v1598, %v1594
          %v1675 = vpack.c.b16 %v1599, %v1595
          %v1676 = vpack.c.b16 %v1600, %v1596
          %v1677 = vpack.c.b16 %v1601, %v1597
          %v1678 = vpack.c.b16 %v1606, %v1602
          %v1679 = vpack.c.b16 %v1607, %v1603
          %v1680 = vpack.c.b16 %v1608, %v1604
          %v1681 = vpack.c.b16 %v1609, %v1605
          %v1682 = vpack.c.b16 %v1614, %v1610
          %v1683 = vpack.c.b16 %v1615, %v1611
          %v1684 = vpack.c.b16 %v1616, %v1612
          %v1685 = vpack.c.b16 %v1617, %v1613
          %v1686 = vpack.c.b16 %v1622, %v1618
          %v1687 = vpack.c.b16 %v1623, %v1619
          %v1688 = vpack.c.b16 %v1624, %v1620
          %v1689 = vpack.c.b16 %v1625, %v1621
          %v1818 = vunpack.c.l.b16 %v1370
          %v1819 = vunpack.c.l.b16 %v1371
          %v1820 = vunpack.c.l.b16 %v1372
          %v1821 = vunpack.c.l.b16 %v1373
          %v1822 = vunpack.c.l.b16 %v1374
          %v1823 = vunpack.c.l.b16 %v1375
          %v1824 = vunpack.c.l.b16 %v1376
          %v1825 = vunpack.c.l.b16 %v1377
          %v1826 = vunpack.c.l.b16 %v1378
          %v1827 = vunpack.c.l.b16 %v1379
          %v1828 = vunpack.c.l.b16 %v1380
          %v1829 = vunpack.c.l.b16 %v1381
          %v1830 = vunpack.c.l.b16 %v1382
          %v1831 = vunpack.c.l.b16 %v1383
          %v1832 = vunpack.c.l.b16 %v1384
          %v1833 = vunpack.c.l.b16 %v1385
          %v1834 = vunpack.c.l.b16 %v1386
          %v1835 = vunpack.c.l.b16 %v1387
          %v1836 = vunpack.c.l.b16 %v1388
          %v1837 = vunpack.c.l.b16 %v1389
          %v1838 = vunpack.c.l.b16 %v1390
          %v1839 = vunpack.c.l.b16 %v1391
          %v1840 = vunpack.c.l.b16 %v1392
          %v1841 = vunpack.c.l.b16 %v1393
          %v1842 = vunpack.c.l.b16 %v1394
          %v1843 = vunpack.c.l.b16 %v1395
          %v1844 = vunpack.c.l.b16 %v1396
          %v1845 = vunpack.c.l.b16 %v1397
          %v1846 = vunpack.c.l.b16 %v1398
          %v1847 = vunpack.c.l.b16 %v1399
          %v1848 = vunpack.c.l.b16 %v1400
          %v1849 = vunpack.c.l.b16 %v1401
          %v1850 = vunpack.c.l.b16 %v1402
          %v1851 = vunpack.c.l.b16 %v1403
          %v1852 = vunpack.c.l.b16 %v1404
          %v1853 = vunpack.c.l.b16 %v1405
          %v1854 = vunpack.c.l.b16 %v1406
          %v1855 = vunpack.c.l.b16 %v1407
          %v1856 = vunpack.c.l.b16 %v1408
          %v1857 = vunpack.c.l.b16 %v1409
          %v1858 = vunpack.c.l.b16 %v1410
          %v1859 = vunpack.c.l.b16 %v1411
          %v1860 = vunpack.c.l.b16 %v1412
          %v1861 = vunpack.c.l.b16 %v1413
          %v1862 = vunpack.c.l.b16 %v1414
          %v1863 = vunpack.c.l.b16 %v1415
          %v1864 = vunpack.c.l.b16 %v1416
          %v1865 = vunpack.c.l.b16 %v1417
          %v1866 = vunpack.c.l.b16 %v1418
          %v1867 = vunpack.c.l.b16 %v1419
          %v1868 = vunpack.c.l.b16 %v1420
          %v1869 = vunpack.c.l.b16 %v1421
          %v1870 = vunpack.c.l.b16 %v1422
          %v1871 = vunpack.c.l.b16 %v1423
          %v1872 = vunpack.c.l.b16 %v1424
          %v1873 = vunpack.c.l.b16 %v1425
          %v1874 = vunpack.c.l.b16 %v1426
          %v1875 = vunpack.c.l.b16 %v1427
          %v1876 = vunpack.c.l.b16 %v1428
          %v1877 = vunpack.c.l.b16 %v1429
          %v1878 = vunpack.c.l.b16 %v1430
          %v1879 = vunpack.c.l.b16 %v1431
          %v1880 = vunpack.c.l.b16 %v1432
          %v1881 = vunpack.c.l.b16 %v1433
          %v1882 = vpack.c.b16 %v1819, %v1818
          %v1883 = vpack.c.b16 %v1821, %v1820
          %v1884 = vpack.c.b16 %v1823, %v1822
          %v1885 = vpack.c.b16 %v1825, %v1824
          %v1886 = vpack.c.b16 %v1827, %v1826
          %v1887 = vpack.c.b16 %v1829, %v1828
          %v1888 = vpack.c.b16 %v1831, %v1830
          %v1889 = vpack.c.b16 %v1833, %v1832
          %v1890 = vpack.c.b16 %v1835, %v1834
          %v1891 = vpack.c.b16 %v1837, %v1836
          %v1892 = vpack.c.b16 %v1839, %v1838
          %v1893 = vpack.c.b16 %v1841, %v1840
          %v1894 = vpack.c.b16 %v1843, %v1842
          %v1895 = vpack.c.b16 %v1845, %v1844
          %v1896 = vpack.c.b16 %v1847, %v1846
          %v1897 = vpack.c.b16 %v1849, %v1848
          %v1898 = vpack.c.b16 %v1851, %v1850
          %v1899 = vpack.c.b16 %v1853, %v1852
          %v1900 = vpack.c.b16 %v1855, %v1854
          %v1901 = vpack.c.b16 %v1857, %v1856
          %v1902 = vpack.c.b16 %v1859, %v1858
          %v1903 = vpack.c.b16 %v1861, %v1860
          %v1904 = vpack.c.b16 %v1863, %v1862
          %v1905 = vpack.c.b16 %v1865, %v1864
          %v1906 = vpack.c.b16 %v1867, %v1866
          %v1907 = vpack.c.b16 %v1869, %v1868
          %v1908 = vpack.c.b16 %v1871, %v1870
          %v1909 = vpack.c.b16 %v1873, %v1872
          %v1910 = vpack.c.b16 %v1875, %v1874
          %v1911 = vpack.c.b16 %v1877, %v1876
          %v1912 = vpack.c.b16 %v1879, %v1878
          %v1913 = vpack.c.b16 %v1881, %v1880
          %1946 = vmatprep.subr.bf16.mxu0 0
          %1947 = vmatpush1.bf16.msra.mxu0 %v1889
          %1948 = vmatprep.subr.bf16.mxu0 0
          %1949 = vmatpush1.bf16.msra.mxu0 %v1888
          %1950 = vmatprep.subr.bf16.mxu0 0
          %1951 = vmatpush1.bf16.msra.mxu0 %v1887
          %1952 = vmatprep.subr.bf16.mxu0 0
          %1953 = vmatpush1.bf16.msra.mxu0 %v1886
          %1954 = vmatprep.subr.bf16.mxu0 0
          %1955 = vmatpush1.bf16.msra.mxu0 %v1885
          %1956 = vmatprep.subr.bf16.mxu0 0
          %1957 = vmatpush1.bf16.msra.mxu0 %v1884
          %1958 = vmatprep.subr.bf16.mxu0 0
          %1959 = vmatpush1.bf16.msra.mxu0 %v1883
          %1960 = vmatprep.subr.bf16.mxu0 0
          %1961 = vmatpush1.bf16.msra.mxu0 %v1882
          %1962 = vmatprep.subr.bf16.mxu0 0
          %1963 = vmatpush2.bf16.msra.mxu0 %v1897
          %1964 = vmatprep.subr.bf16.mxu0 0
          %1965 = vmatpush2.bf16.msra.mxu0 %v1896
          %1966 = vmatprep.subr.bf16.mxu0 0
          %1967 = vmatpush2.bf16.msra.mxu0 %v1895
          %1968 = vmatprep.subr.bf16.mxu0 0
          %1969 = vmatpush2.bf16.msra.mxu0 %v1894
          %1970 = vmatprep.subr.bf16.mxu0 0
          %1971 = vmatpush2.bf16.msra.mxu0 %v1893
          %1972 = vmatprep.subr.bf16.mxu0 0
          %1973 = vmatpush2.bf16.msra.mxu0 %v1892
          %1974 = vmatprep.subr.bf16.mxu0 0
          %1975 = vmatpush2.bf16.msra.mxu0 %v1891
          %1976 = vmatprep.subr.bf16.mxu0 0
          %1977 = vmatpush2.bf16.msra.mxu0 %v1890
          %1978 = vmatprep.mubr.bf16.mxu0 %v1627
          %1979 = vmatmul.mubr.bf16.gmra.mxu0 %v1626
          %v1980 = vpop.f32.mrf.mxu0
          %v1981 = vadd.f32 0.0, %v1980
          %v1982 = vpop.f32.mrf.mxu0
          %v1983 = vpop.f32.mrf.mxu0
          %v1984 = vadd.f32 0.0, %v1983
          %v1985 = vpop.f32.mrf.mxu0
          %1986 = vmatprep.mubr.bf16.mxu0 %v1631
          %1987 = vmatmul.mubr.bf16.gmra.mxu0 %v1630
          %v1988 = vpop.f32.mrf.mxu0
          %v1989 = vadd.f32 0.0, %v1988
          %v1990 = vpop.f32.mrf.mxu0
          %v1991 = vpop.f32.mrf.mxu0
          %v1992 = vadd.f32 0.0, %v1991
          %v1993 = vpop.f32.mrf.mxu0
          %1994 = vmatprep.mubr.bf16.mxu0 %v1635
          %1995 = vmatmul.mubr.bf16.gmra.mxu0 %v1634
          %v1996 = vpop.f32.mrf.mxu0
          %v1997 = vadd.f32 0.0, %v1996
          %v1998 = vpop.f32.mrf.mxu0
          %v1999 = vpop.f32.mrf.mxu0
          %v2000 = vadd.f32 0.0, %v1999
          %v2001 = vpop.f32.mrf.mxu0
          %2002 = vmatprep.mubr.bf16.mxu0 %v1639
          %2003 = vmatmul.mubr.bf16.gmra.mxu0 %v1638
          %v2004 = vpop.f32.mrf.mxu0
          %v2005 = vadd.f32 0.0, %v2004
          %v2006 = vpop.f32.mrf.mxu0
          %v2007 = vpop.f32.mrf.mxu0
          %v2008 = vadd.f32 0.0, %v2007
          %v2009 = vpop.f32.mrf.mxu0
          %2010 = vmatprep.mubr.bf16.mxu0 %v1643
          %2011 = vmatmul.mubr.bf16.gmra.mxu0 %v1642
          %v2012 = vpop.f32.mrf.mxu0
          %v2013 = vadd.f32 0.0, %v2012
          %v2014 = vpop.f32.mrf.mxu0
          %v2015 = vpop.f32.mrf.mxu0
          %v2016 = vadd.f32 0.0, %v2015
          %v2017 = vpop.f32.mrf.mxu0
          %2018 = vmatprep.mubr.bf16.mxu0 %v1647
          %2019 = vmatmul.mubr.bf16.gmra.mxu0 %v1646
          %v2020 = vpop.f32.mrf.mxu0
          %v2021 = vadd.f32 0.0, %v2020
          %v2022 = vpop.f32.mrf.mxu0
          %v2023 = vpop.f32.mrf.mxu0
          %v2024 = vadd.f32 0.0, %v2023
          %v2025 = vpop.f32.mrf.mxu0
          %2026 = vmatprep.mubr.bf16.mxu0 %v1651
          %2027 = vmatmul.mubr.bf16.gmra.mxu0 %v1650
          %v2028 = vpop.f32.mrf.mxu0
          %v2029 = vadd.f32 0.0, %v2028
          %v2030 = vpop.f32.mrf.mxu0
          %v2031 = vpop.f32.mrf.mxu0
          %v2032 = vadd.f32 0.0, %v2031
          %v2033 = vpop.f32.mrf.mxu0
          %2034 = vmatprep.mubr.bf16.mxu0 %v1655
          %2035 = vmatmul.mubr.bf16.gmra.mxu0 %v1654
          %v2036 = vpop.f32.mrf.mxu0
          %v2037 = vadd.f32 0.0, %v2036
          %v2038 = vpop.f32.mrf.mxu0
          %v2039 = vpop.f32.mrf.mxu0
          %v2040 = vadd.f32 0.0, %v2039
          %v2041 = vpop.f32.mrf.mxu0
          %2042 = vmatprep.mubr.bf16.mxu0 %v1659
          %2043 = vmatmul.mubr.bf16.gmra.mxu0 %v1658
          %v2044 = vpop.f32.mrf.mxu0
          %v2045 = vadd.f32 0.0, %v2044
          %v2046 = vpop.f32.mrf.mxu0
          %v2047 = vpop.f32.mrf.mxu0
          %v2048 = vadd.f32 0.0, %v2047
          %v2049 = vpop.f32.mrf.mxu0
          %2050 = vmatprep.mubr.bf16.mxu0 %v1663
          %2051 = vmatmul.mubr.bf16.gmra.mxu0 %v1662
          %v2052 = vpop.f32.mrf.mxu0
          %v2053 = vadd.f32 0.0, %v2052
          %v2054 = vpop.f32.mrf.mxu0
          %v2055 = vpop.f32.mrf.mxu0
          %v2056 = vadd.f32 0.0, %v2055
          %v2057 = vpop.f32.mrf.mxu0
          %2058 = vmatprep.mubr.bf16.mxu0 %v1667
          %2059 = vmatmul.mubr.bf16.gmra.mxu0 %v1666
          %v2060 = vpop.f32.mrf.mxu0
          %v2061 = vadd.f32 0.0, %v2060
          %v2062 = vpop.f32.mrf.mxu0
          %v2063 = vpop.f32.mrf.mxu0
          %v2064 = vadd.f32 0.0, %v2063
          %v2065 = vpop.f32.mrf.mxu0
          %2066 = vmatprep.mubr.bf16.mxu0 %v1671
          %2067 = vmatmul.mubr.bf16.gmra.mxu0 %v1670
          %v2068 = vpop.f32.mrf.mxu0
          %v2069 = vadd.f32 0.0, %v2068
          %v2070 = vpop.f32.mrf.mxu0
          %v2071 = vpop.f32.mrf.mxu0
          %v2072 = vadd.f32 0.0, %v2071
          %v2073 = vpop.f32.mrf.mxu0
          %2074 = vmatprep.mubr.bf16.mxu0 %v1675
          %2075 = vmatmul.mubr.bf16.gmra.mxu0 %v1674
          %v2076 = vpop.f32.mrf.mxu0
          %v2077 = vadd.f32 0.0, %v2076
          %v2078 = vpop.f32.mrf.mxu0
          %v2079 = vpop.f32.mrf.mxu0
          %v2080 = vadd.f32 0.0, %v2079
          %v2081 = vpop.f32.mrf.mxu0
          %2082 = vmatprep.mubr.bf16.mxu0 %v1679
          %2083 = vmatmul.mubr.bf16.gmra.mxu0 %v1678
          %v2084 = vpop.f32.mrf.mxu0
          %v2085 = vadd.f32 0.0, %v2084
          %v2086 = vpop.f32.mrf.mxu0
          %v2087 = vpop.f32.mrf.mxu0
          %v2088 = vadd.f32 0.0, %v2087
          %v2089 = vpop.f32.mrf.mxu0
          %2090 = vmatprep.mubr.bf16.mxu0 %v1683
          %2091 = vmatmul.mubr.bf16.gmra.mxu0 %v1682
          %v2092 = vpop.f32.mrf.mxu0
          %v2093 = vadd.f32 0.0, %v2092
          %v2094 = vpop.f32.mrf.mxu0
          %v2095 = vpop.f32.mrf.mxu0
          %v2096 = vadd.f32 0.0, %v2095
          %v2097 = vpop.f32.mrf.mxu0
          %2098 = vmatprep.mubr.bf16.mxu0 %v1687
          %2099 = vmatmul.mubr.bf16.gmra.mxu0 %v1686
          %v2100 = vpop.f32.mrf.mxu0
          %v2101 = vadd.f32 0.0, %v2100
          %v2102 = vpop.f32.mrf.mxu0
          %v2103 = vpop.f32.mrf.mxu0
          %v2104 = vadd.f32 0.0, %v2103
          %v2105 = vpop.f32.mrf.mxu0
          %2106 = vdwg.mxu0
          %2107 = vmatprep.subr.bf16.mxu0 0
          %2108 = vmatpush1.bf16.msra.mxu0 %v1905
          %2109 = vmatprep.subr.bf16.mxu0 0
          %2110 = vmatpush1.bf16.msra.mxu0 %v1904
          %2111 = vmatprep.subr.bf16.mxu0 0
          %2112 = vmatpush1.bf16.msra.mxu0 %v1903
          %2113 = vmatprep.subr.bf16.mxu0 0
          %2114 = vmatpush1.bf16.msra.mxu0 %v1902
          %2115 = vmatprep.subr.bf16.mxu0 0
          %2116 = vmatpush1.bf16.msra.mxu0 %v1901
          %2117 = vmatprep.subr.bf16.mxu0 0
          %2118 = vmatpush1.bf16.msra.mxu0 %v1900
          %2119 = vmatprep.subr.bf16.mxu0 0
          %2120 = vmatpush1.bf16.msra.mxu0 %v1899
          %2121 = vmatprep.subr.bf16.mxu0 0
          %2122 = vmatpush1.bf16.msra.mxu0 %v1898
          %2123 = vmatprep.subr.bf16.mxu0 0
          %2124 = vmatpush2.bf16.msra.mxu0 %v1913
          %2125 = vmatprep.subr.bf16.mxu0 0
          %2126 = vmatpush2.bf16.msra.mxu0 %v1912
          %2127 = vmatprep.subr.bf16.mxu0 0
          %2128 = vmatpush2.bf16.msra.mxu0 %v1911
          %2129 = vmatprep.subr.bf16.mxu0 0
          %2130 = vmatpush2.bf16.msra.mxu0 %v1910
          %2131 = vmatprep.subr.bf16.mxu0 0
          %2132 = vmatpush2.bf16.msra.mxu0 %v1909
          %2133 = vmatprep.subr.bf16.mxu0 0
          %2134 = vmatpush2.bf16.msra.mxu0 %v1908
          %2135 = vmatprep.subr.bf16.mxu0 0
          %2136 = vmatpush2.bf16.msra.mxu0 %v1907
          %2137 = vmatprep.subr.bf16.mxu0 0
          %2138 = vmatpush2.bf16.msra.mxu0 %v1906
          %2139 = vmatprep.mubr.bf16.mxu0 %v1629
          %2140 = vmatmul.mubr.bf16.gmra.mxu0 %v1628
          %v2141 = vpop.f32.mrf.mxu0
          %v2142 = vadd.f32 %v1981, %v2141
          %v2143 = vpop.f32.mrf.mxu0
          %v2144 = vpop.f32.mrf.mxu0
          %v2145 = vadd.f32 %v1984, %v2144
          %v2146 = vpop.f32.mrf.mxu0
          %2147 = vmatprep.mubr.bf16.mxu0 %v1633
          %2148 = vmatmul.mubr.bf16.gmra.mxu0 %v1632
          %v2149 = vpop.f32.mrf.mxu0
          %v2150 = vadd.f32 %v1989, %v2149
          %v2151 = vpop.f32.mrf.mxu0
          %v2152 = vpop.f32.mrf.mxu0
          %v2153 = vadd.f32 %v1992, %v2152
          %v2154 = vpop.f32.mrf.mxu0
          %2155 = vmatprep.mubr.bf16.mxu0 %v1637
          %2156 = vmatmul.mubr.bf16.gmra.mxu0 %v1636
          %v2157 = vpop.f32.mrf.mxu0
          %v2158 = vadd.f32 %v1997, %v2157
          %v2159 = vpop.f32.mrf.mxu0
          %v2160 = vpop.f32.mrf.mxu0
          %v2161 = vadd.f32 %v2000, %v2160
          %v2162 = vpop.f32.mrf.mxu0
          %2163 = vmatprep.mubr.bf16.mxu0 %v1641
          %2164 = vmatmul.mubr.bf16.gmra.mxu0 %v1640
          %v2165 = vpop.f32.mrf.mxu0
          %v2166 = vadd.f32 %v2005, %v2165
          %v2167 = vpop.f32.mrf.mxu0
          %v2168 = vpop.f32.mrf.mxu0
          %v2169 = vadd.f32 %v2008, %v2168
          %v2170 = vpop.f32.mrf.mxu0
          %2171 = vmatprep.mubr.bf16.mxu0 %v1645
          %2172 = vmatmul.mubr.bf16.gmra.mxu0 %v1644
          %v2173 = vpop.f32.mrf.mxu0
          %v2174 = vadd.f32 %v2013, %v2173
          %v2175 = vpop.f32.mrf.mxu0
          %v2176 = vpop.f32.mrf.mxu0
          %v2177 = vadd.f32 %v2016, %v2176
          %v2178 = vpop.f32.mrf.mxu0
          %2179 = vmatprep.mubr.bf16.mxu0 %v1649
          %2180 = vmatmul.mubr.bf16.gmra.mxu0 %v1648
          %v2181 = vpop.f32.mrf.mxu0
          %v2182 = vadd.f32 %v2021, %v2181
          %v2183 = vpop.f32.mrf.mxu0
          %v2184 = vpop.f32.mrf.mxu0
          %v2185 = vadd.f32 %v2024, %v2184
          %v2186 = vpop.f32.mrf.mxu0
          %2187 = vmatprep.mubr.bf16.mxu0 %v1653
          %2188 = vmatmul.mubr.bf16.gmra.mxu0 %v1652
          %v2189 = vpop.f32.mrf.mxu0
          %v2190 = vadd.f32 %v2029, %v2189
          %v2191 = vpop.f32.mrf.mxu0
          %v2192 = vpop.f32.mrf.mxu0
          %v2193 = vadd.f32 %v2032, %v2192
          %v2194 = vpop.f32.mrf.mxu0
          %2195 = vmatprep.mubr.bf16.mxu0 %v1657
          %2196 = vmatmul.mubr.bf16.gmra.mxu0 %v1656
          %v2197 = vpop.f32.mrf.mxu0
          %v2198 = vadd.f32 %v2037, %v2197
          %v2199 = vpop.f32.mrf.mxu0
          %v2200 = vpop.f32.mrf.mxu0
          %v2201 = vadd.f32 %v2040, %v2200
          %v2202 = vpop.f32.mrf.mxu0
          %2203 = vmatprep.mubr.bf16.mxu0 %v1661
          %2204 = vmatmul.mubr.bf16.gmra.mxu0 %v1660
          %v2205 = vpop.f32.mrf.mxu0
          %v2206 = vadd.f32 %v2045, %v2205
          %v2207 = vpop.f32.mrf.mxu0
          %v2208 = vpop.f32.mrf.mxu0
          %v2209 = vadd.f32 %v2048, %v2208
          %v2210 = vpop.f32.mrf.mxu0
          %2211 = vmatprep.mubr.bf16.mxu0 %v1665
          %2212 = vmatmul.mubr.bf16.gmra.mxu0 %v1664
          %v2213 = vpop.f32.mrf.mxu0
          %v2214 = vadd.f32 %v2053, %v2213
          %v2215 = vpop.f32.mrf.mxu0
          %v2216 = vpop.f32.mrf.mxu0
          %v2217 = vadd.f32 %v2056, %v2216
          %v2218 = vpop.f32.mrf.mxu0
          %2219 = vmatprep.mubr.bf16.mxu0 %v1669
          %2220 = vmatmul.mubr.bf16.gmra.mxu0 %v1668
          %v2221 = vpop.f32.mrf.mxu0
          %v2222 = vadd.f32 %v2061, %v2221
          %v2223 = vpop.f32.mrf.mxu0
          %v2224 = vpop.f32.mrf.mxu0
          %v2225 = vadd.f32 %v2064, %v2224
          %v2226 = vpop.f32.mrf.mxu0
          %2227 = vmatprep.mubr.bf16.mxu0 %v1673
          %2228 = vmatmul.mubr.bf16.gmra.mxu0 %v1672
          %v2229 = vpop.f32.mrf.mxu0
          %v2230 = vadd.f32 %v2069, %v2229
          %v2231 = vpop.f32.mrf.mxu0
          %v2232 = vpop.f32.mrf.mxu0
          %v2233 = vadd.f32 %v2072, %v2232
          %v2234 = vpop.f32.mrf.mxu0
          %2235 = vmatprep.mubr.bf16.mxu0 %v1677
          %2236 = vmatmul.mubr.bf16.gmra.mxu0 %v1676
          %v2237 = vpop.f32.mrf.mxu0
          %v2238 = vadd.f32 %v2077, %v2237
          %v2239 = vpop.f32.mrf.mxu0
          %v2240 = vpop.f32.mrf.mxu0
          %v2241 = vadd.f32 %v2080, %v2240
          %v2242 = vpop.f32.mrf.mxu0
          %2243 = vmatprep.mubr.bf16.mxu0 %v1681
          %2244 = vmatmul.mubr.bf16.gmra.mxu0 %v1680
          %v2245 = vpop.f32.mrf.mxu0
          %v2246 = vadd.f32 %v2085, %v2245
          %v2247 = vpop.f32.mrf.mxu0
          %v2248 = vpop.f32.mrf.mxu0
          %v2249 = vadd.f32 %v2088, %v2248
          %v2250 = vpop.f32.mrf.mxu0
          %2251 = vmatprep.mubr.bf16.mxu0 %v1685
          %2252 = vmatmul.mubr.bf16.gmra.mxu0 %v1684
          %v2253 = vpop.f32.mrf.mxu0
          %v2254 = vadd.f32 %v2093, %v2253
          %v2255 = vpop.f32.mrf.mxu0
          %v2256 = vpop.f32.mrf.mxu0
          %v2257 = vadd.f32 %v2096, %v2256
          %v2258 = vpop.f32.mrf.mxu0
          %2259 = vmatprep.mubr.bf16.mxu0 %v1689
          %2260 = vmatmul.mubr.bf16.gmra.mxu0 %v1688
          %v2261 = vpop.f32.mrf.mxu0
          %v2262 = vadd.f32 %v2101, %v2261
          %v2263 = vpop.f32.mrf.mxu0
          %v2264 = vpop.f32.mrf.mxu0
          %v2265 = vadd.f32 %v2104, %v2264
          %v2266 = vpop.f32.mrf.mxu0
          %2267 = vdwg.mxu0
          %v2268 = vpack.c.bf16 %v2145, %v2142
          %v2269 = vpack.c.bf16 %v2153, %v2150
          %v2270 = vpack.c.bf16 %v2161, %v2158
          %v2271 = vpack.c.bf16 %v2169, %v2166
          %v2272 = vpack.c.bf16 %v2177, %v2174
          %v2273 = vpack.c.bf16 %v2185, %v2182
          %v2274 = vpack.c.bf16 %v2193, %v2190
          %v2275 = vpack.c.bf16 %v2201, %v2198
          %v2276 = vpack.c.bf16 %v2209, %v2206
          %v2277 = vpack.c.bf16 %v2217, %v2214
          %v2278 = vpack.c.bf16 %v2225, %v2222
          %v2279 = vpack.c.bf16 %v2233, %v2230
          %v2280 = vpack.c.bf16 %v2241, %v2238
          %v2281 = vpack.c.bf16 %v2249, %v2246
          %v2282 = vpack.c.bf16 %v2257, %v2254
          %v2283 = vpack.c.bf16 %v2265, %v2262
          %s2284 = scalar_lea.vmem [#allocation2], 256
          %v2301 = vunpack.c.l.b16 %v2268
          %v2302 = vunpack.c.h.b16 %v2268
          %v2303 = vunpack.c.l.b16 %v2269
          %v2304 = vunpack.c.h.b16 %v2269
          %v2305 = vunpack.c.l.b16 %v2270
          %v2306 = vunpack.c.h.b16 %v2270
          %v2307 = vunpack.c.l.b16 %v2271
          %v2308 = vunpack.c.h.b16 %v2271
          %v2309 = vunpack.c.l.b16 %v2272
          %v2310 = vunpack.c.h.b16 %v2272
          %v2311 = vunpack.c.l.b16 %v2273
          %v2312 = vunpack.c.h.b16 %v2273
          %v2313 = vunpack.c.l.b16 %v2274
          %v2314 = vunpack.c.h.b16 %v2274
          %v2315 = vunpack.c.l.b16 %v2275
          %v2316 = vunpack.c.h.b16 %v2275
          %v2317 = vunpack.c.l.b16 %v2276
          %v2318 = vunpack.c.h.b16 %v2276
          %v2319 = vunpack.c.l.b16 %v2277
          %v2320 = vunpack.c.h.b16 %v2277
          %v2321 = vunpack.c.l.b16 %v2278
          %v2322 = vunpack.c.h.b16 %v2278
          %v2323 = vunpack.c.l.b16 %v2279
          %v2324 = vunpack.c.h.b16 %v2279
          %v2325 = vunpack.c.l.b16 %v2280
          %v2326 = vunpack.c.h.b16 %v2280
          %v2327 = vunpack.c.l.b16 %v2281
          %v2328 = vunpack.c.h.b16 %v2281
          %v2329 = vunpack.c.l.b16 %v2282
          %v2330 = vunpack.c.h.b16 %v2282
          %v2331 = vunpack.c.l.b16 %v2283
          %v2332 = vunpack.c.h.b16 %v2283
          %v2333 = vpack.c.b16 %v2301, %v2301
          %v2334 = vpack.c.b16 %v2302, %v2302
          %v2335 = vpack.c.b16 %v2303, %v2303
          %v2336 = vpack.c.b16 %v2304, %v2304
          %v2337 = vpack.c.b16 %v2305, %v2305
          %v2338 = vpack.c.b16 %v2306, %v2306
          %v2339 = vpack.c.b16 %v2307, %v2307
          %v2340 = vpack.c.b16 %v2308, %v2308
          %v2341 = vpack.c.b16 %v2309, %v2309
          %v2342 = vpack.c.b16 %v2310, %v2310
          %v2343 = vpack.c.b16 %v2311, %v2311
          %v2344 = vpack.c.b16 %v2312, %v2312
          %v2345 = vpack.c.b16 %v2313, %v2313
          %v2346 = vpack.c.b16 %v2314, %v2314
          %v2347 = vpack.c.b16 %v2315, %v2315
          %v2348 = vpack.c.b16 %v2316, %v2316
          %v2349 = vpack.c.b16 %v2317, %v2317
          %v2350 = vpack.c.b16 %v2318, %v2318
          %v2351 = vpack.c.b16 %v2319, %v2319
          %v2352 = vpack.c.b16 %v2320, %v2320
          %v2353 = vpack.c.b16 %v2321, %v2321
          %v2354 = vpack.c.b16 %v2322, %v2322
          %v2355 = vpack.c.b16 %v2323, %v2323
          %v2356 = vpack.c.b16 %v2324, %v2324
          %v2357 = vpack.c.b16 %v2325, %v2325
          %v2358 = vpack.c.b16 %v2326, %v2326
          %v2359 = vpack.c.b16 %v2327, %v2327
          %v2360 = vpack.c.b16 %v2328, %v2328
          %v2361 = vpack.c.b16 %v2329, %v2329
          %v2362 = vpack.c.b16 %v2330, %v2330
          %v2363 = vpack.c.b16 %v2331, %v2331
          %v2364 = vpack.c.b16 %v2332, %v2332
          %s2397 = smul.addr %s1285, 4
          %s2398 = scalar_lea.vmem %s2284, %s2397 [#allocation2]
          %2399 = vst [vmem:[%s2398] sm:$0xf] %v2333
          %2400 = vst [vmem:[%s2398 + $0x4] sm:$0xf] %v2334
          %2401 = vst [vmem:[%s2398 + $0x8] sm:$0xf] %v2335
          %2402 = vst [vmem:[%s2398 + $0xc] sm:$0xf] %v2336
          %2403 = vst [vmem:[%s2398 + $0x10] sm:$0xf] %v2337
          %2404 = vst [vmem:[%s2398 + $0x14] sm:$0xf] %v2338
          %2405 = vst [vmem:[%s2398 + $0x18] sm:$0xf] %v2339
          %2406 = vst [vmem:[%s2398 + $0x1c] sm:$0xf] %v2340
          %2407 = vst [vmem:[%s2398 + $0x20] sm:$0xf] %v2341
          %2408 = vst [vmem:[%s2398 + $0x24] sm:$0xf] %v2342
          %2409 = vst [vmem:[%s2398 + $0x28] sm:$0xf] %v2343
          %2410 = vst [vmem:[%s2398 + $0x2c] sm:$0xf] %v2344
          %2411 = vst [vmem:[%s2398 + $0x30] sm:$0xf] %v2345
          %2412 = vst [vmem:[%s2398 + $0x34] sm:$0xf] %v2346
          %2413 = vst [vmem:[%s2398 + $0x38] sm:$0xf] %v2347
          %2414 = vst [vmem:[%s2398 + $0x3c] sm:$0xf] %v2348
          %2415 = vst [vmem:[%s2398 + $0x40] sm:$0xf] %v2349
          %2416 = vst [vmem:[%s2398 + $0x44] sm:$0xf] %v2350
          %2417 = vst [vmem:[%s2398 + $0x48] sm:$0xf] %v2351
          %2418 = vst [vmem:[%s2398 + $0x4c] sm:$0xf] %v2352
          %2419 = vst [vmem:[%s2398 + $0x50] sm:$0xf] %v2353
          %2420 = vst [vmem:[%s2398 + $0x54] sm:$0xf] %v2354
          %2421 = vst [vmem:[%s2398 + $0x58] sm:$0xf] %v2355
          %2422 = vst [vmem:[%s2398 + $0x5c] sm:$0xf] %v2356
          %2423 = vst [vmem:[%s2398 + $0x60] sm:$0xf] %v2357
          %2424 = vst [vmem:[%s2398 + $0x64] sm:$0xf] %v2358
          %2425 = vst [vmem:[%s2398 + $0x68] sm:$0xf] %v2359
          %2426 = vst [vmem:[%s2398 + $0x6c] sm:$0xf] %v2360
          %2427 = vst [vmem:[%s2398 + $0x70] sm:$0xf] %v2361
          %2428 = vst [vmem:[%s2398 + $0x74] sm:$0xf] %v2362
          %2429 = vst [vmem:[%s2398 + $0x78] sm:$0xf] %v2363
          %2430 = vst [vmem:[%s2398 + $0x7c] sm:$0xf] %v2364
          %s2431 = scalar_lea.vmem %s7, %s273
          %v2432 = vld [vmem:[%s2431] sm:$0xff]
          %v2433 = vld [vmem:[%s2431 + $0x8] sm:$0xff]
          %v2434 = vld [vmem:[%s2431 + $0x10] sm:$0xff]
          %v2435 = vld [vmem:[%s2431 + $0x18] sm:$0xff]
          %v2436 = vld [vmem:[%s2431 + $0x20] sm:$0xff]
          %v2437 = vld [vmem:[%s2431 + $0x28] sm:$0xff]
          %v2438 = vld [vmem:[%s2431 + $0x30] sm:$0xff]
          %v2439 = vld [vmem:[%s2431 + $0x38] sm:$0xff]
          %v2440 = vld [vmem:[%s2431 + $0x40] sm:$0xff]
          %v2441 = vld [vmem:[%s2431 + $0x48] sm:$0xff]
          %v2442 = vld [vmem:[%s2431 + $0x50] sm:$0xff]
          %v2443 = vld [vmem:[%s2431 + $0x58] sm:$0xff]
          %v2444 = vld [vmem:[%s2431 + $0x60] sm:$0xff]
          %v2445 = vld [vmem:[%s2431 + $0x68] sm:$0xff]
          %v2446 = vld [vmem:[%s2431 + $0x70] sm:$0xff]
          %v2447 = vld [vmem:[%s2431 + $0x78] sm:$0xff]
          %v2448 = vld [vmem:[%s2431 + $0x80] sm:$0xff]
          %v2449 = vld [vmem:[%s2431 + $0x88] sm:$0xff]
          %v2450 = vld [vmem:[%s2431 + $0x90] sm:$0xff]
          %v2451 = vld [vmem:[%s2431 + $0x98] sm:$0xff]
          %v2452 = vld [vmem:[%s2431 + $0xa0] sm:$0xff]
          %v2453 = vld [vmem:[%s2431 + $0xa8] sm:$0xff]
          %v2454 = vld [vmem:[%s2431 + $0xb0] sm:$0xff]
          %v2455 = vld [vmem:[%s2431 + $0xb8] sm:$0xff]
          %v2456 = vld [vmem:[%s2431 + $0xc0] sm:$0xff]
          %v2457 = vld [vmem:[%s2431 + $0xc8] sm:$0xff]
          %v2458 = vld [vmem:[%s2431 + $0xd0] sm:$0xff]
          %v2459 = vld [vmem:[%s2431 + $0xd8] sm:$0xff]
          %v2460 = vld [vmem:[%s2431 + $0xe0] sm:$0xff]
          %v2461 = vld [vmem:[%s2431 + $0xe8] sm:$0xff]
          %v2462 = vld [vmem:[%s2431 + $0xf0] sm:$0xff]
          %v2463 = vld [vmem:[%s2431 + $0xf8] sm:$0xff]
          %v2464 = vstv %s1284
          %v2465 = vmul.f32 %v2464, %v2142
          %v2466 = vmul.f32 %v2464, %v2145
          %v2467 = vmul.f32 %v2464, %v2150
          %v2468 = vmul.f32 %v2464, %v2153
          %v2469 = vmul.f32 %v2464, %v2158
          %v2470 = vmul.f32 %v2464, %v2161
          %v2471 = vmul.f32 %v2464, %v2166
          %v2472 = vmul.f32 %v2464, %v2169
          %v2473 = vmul.f32 %v2464, %v2174
          %v2474 = vmul.f32 %v2464, %v2177
          %v2475 = vmul.f32 %v2464, %v2182
          %v2476 = vmul.f32 %v2464, %v2185
          %v2477 = vmul.f32 %v2464, %v2190
          %v2478 = vmul.f32 %v2464, %v2193
          %v2479 = vmul.f32 %v2464, %v2198
          %v2480 = vmul.f32 %v2464, %v2201
          %v2481 = vmul.f32 %v2464, %v2206
          %v2482 = vmul.f32 %v2464, %v2209
          %v2483 = vmul.f32 %v2464, %v2214
          %v2484 = vmul.f32 %v2464, %v2217
          %v2485 = vmul.f32 %v2464, %v2222
          %v2486 = vmul.f32 %v2464, %v2225
          %v2487 = vmul.f32 %v2464, %v2230
          %v2488 = vmul.f32 %v2464, %v2233
          %v2489 = vmul.f32 %v2464, %v2238
          %v2490 = vmul.f32 %v2464, %v2241
          %v2491 = vmul.f32 %v2464, %v2246
          %v2492 = vmul.f32 %v2464, %v2249
          %v2493 = vmul.f32 %v2464, %v2254
          %v2494 = vmul.f32 %v2464, %v2257
          %v2495 = vmul.f32 %v2464, %v2262
          %v2496 = vmul.f32 %v2464, %v2265
          %v2497 = vadd.f32 %v2432, %v2465
          %v2498 = vadd.f32 %v2433, %v2466
          %v2499 = vadd.f32 %v2434, %v2467
          %v2500 = vadd.f32 %v2435, %v2468
          %v2501 = vadd.f32 %v2436, %v2469
          %v2502 = vadd.f32 %v2437, %v2470
          %v2503 = vadd.f32 %v2438, %v2471
          %v2504 = vadd.f32 %v2439, %v2472
          %v2505 = vadd.f32 %v2440, %v2473
          %v2506 = vadd.f32 %v2441, %v2474
          %v2507 = vadd.f32 %v2442, %v2475
          %v2508 = vadd.f32 %v2443, %v2476
          %v2509 = vadd.f32 %v2444, %v2477
          %v2510 = vadd.f32 %v2445, %v2478
          %v2511 = vadd.f32 %v2446, %v2479
          %v2512 = vadd.f32 %v2447, %v2480
          %v2513 = vadd.f32 %v2448, %v2481
          %v2514 = vadd.f32 %v2449, %v2482
          %v2515 = vadd.f32 %v2450, %v2483
          %v2516 = vadd.f32 %v2451, %v2484
          %v2517 = vadd.f32 %v2452, %v2485
          %v2518 = vadd.f32 %v2453, %v2486
          %v2519 = vadd.f32 %v2454, %v2487
          %v2520 = vadd.f32 %v2455, %v2488
          %v2521 = vadd.f32 %v2456, %v2489
          %v2522 = vadd.f32 %v2457, %v2490
          %v2523 = vadd.f32 %v2458, %v2491
          %v2524 = vadd.f32 %v2459, %v2492
          %v2525 = vadd.f32 %v2460, %v2493
          %v2526 = vadd.f32 %v2461, %v2494
          %v2527 = vadd.f32 %v2462, %v2495
          %v2528 = vadd.f32 %v2463, %v2496
          %2529 = vst [vmem:[%s2431] sm:$0xff] %v2497
          %2530 = vst [vmem:[%s2431 + $0x8] sm:$0xff] %v2498
          %2531 = vst [vmem:[%s2431 + $0x10] sm:$0xff] %v2499
          %2532 = vst [vmem:[%s2431 + $0x18] sm:$0xff] %v2500
          %2533 = vst [vmem:[%s2431 + $0x20] sm:$0xff] %v2501
          %2534 = vst [vmem:[%s2431 + $0x28] sm:$0xff] %v2502
          %2535 = vst [vmem:[%s2431 + $0x30] sm:$0xff] %v2503
          %2536 = vst [vmem:[%s2431 + $0x38] sm:$0xff] %v2504
          %2537 = vst [vmem:[%s2431 + $0x40] sm:$0xff] %v2505
          %2538 = vst [vmem:[%s2431 + $0x48] sm:$0xff] %v2506
          %2539 = vst [vmem:[%s2431 + $0x50] sm:$0xff] %v2507
          %2540 = vst [vmem:[%s2431 + $0x58] sm:$0xff] %v2508
          %2541 = vst [vmem:[%s2431 + $0x60] sm:$0xff] %v2509
          %2542 = vst [vmem:[%s2431 + $0x68] sm:$0xff] %v2510
          %2543 = vst [vmem:[%s2431 + $0x70] sm:$0xff] %v2511
          %2544 = vst [vmem:[%s2431 + $0x78] sm:$0xff] %v2512
          %2545 = vst [vmem:[%s2431 + $0x80] sm:$0xff] %v2513
          %2546 = vst [vmem:[%s2431 + $0x88] sm:$0xff] %v2514
          %2547 = vst [vmem:[%s2431 + $0x90] sm:$0xff] %v2515
          %2548 = vst [vmem:[%s2431 + $0x98] sm:$0xff] %v2516
          %2549 = vst [vmem:[%s2431 + $0xa0] sm:$0xff] %v2517
          %2550 = vst [vmem:[%s2431 + $0xa8] sm:$0xff] %v2518
          %2551 = vst [vmem:[%s2431 + $0xb0] sm:$0xff] %v2519
          %2552 = vst [vmem:[%s2431 + $0xb8] sm:$0xff] %v2520
          %2553 = vst [vmem:[%s2431 + $0xc0] sm:$0xff] %v2521
          %2554 = vst [vmem:[%s2431 + $0xc8] sm:$0xff] %v2522
          %2555 = vst [vmem:[%s2431 + $0xd0] sm:$0xff] %v2523
          %2556 = vst [vmem:[%s2431 + $0xd8] sm:$0xff] %v2524
          %2557 = vst [vmem:[%s2431 + $0xe0] sm:$0xff] %v2525
          %2558 = vst [vmem:[%s2431 + $0xe8] sm:$0xff] %v2526
          %2559 = vst [vmem:[%s2431 + $0xf0] sm:$0xff] %v2527
          %2560 = vst [vmem:[%s2431 + $0xf8] sm:$0xff] %v2528
        $region56: #{gprgnn_forward.1} parent=51 // pred_fallthru
          _
        %p2561 = scmp.ne.s32.totalorder %s1365, 1
        // Predicated region
        $region57: #{gprgnn_forward.1} parent=51 // pred_check
          %p2562 = pneg %p2561
        $region58: #{gprgnn_forward.1} parent=51 // pred_check_branch
          %2564 = sbr.rel (%p2562) target = $region60
        $region59: #{gprgnn_forward.1} parent=51 // pred_region
          %s2565 = scalar_lea.vmem [#allocation2], 256
          %v2566 = vld [vmem:[%s2565] sm:$0xf]
          %v2567 = vld [vmem:[%s2565 + $0x4] sm:$0xf]
          %v2568 = vld [vmem:[%s2565 + $0x8] sm:$0xf]
          %v2569 = vld [vmem:[%s2565 + $0xc] sm:$0xf]
          %v2570 = vld [vmem:[%s2565 + $0x10] sm:$0xf]
          %v2571 = vld [vmem:[%s2565 + $0x14] sm:$0xf]
          %v2572 = vld [vmem:[%s2565 + $0x18] sm:$0xf]
          %v2573 = vld [vmem:[%s2565 + $0x1c] sm:$0xf]
          %v2574 = vld [vmem:[%s2565 + $0x20] sm:$0xf]
          %v2575 = vld [vmem:[%s2565 + $0x24] sm:$0xf]
          %v2576 = vld [vmem:[%s2565 + $0x28] sm:$0xf]
          %v2577 = vld [vmem:[%s2565 + $0x2c] sm:$0xf]
          %v2578 = vld [vmem:[%s2565 + $0x30] sm:$0xf]
          %v2579 = vld [vmem:[%s2565 + $0x34] sm:$0xf]
          %v2580 = vld [vmem:[%s2565 + $0x38] sm:$0xf]
          %v2581 = vld [vmem:[%s2565 + $0x3c] sm:$0xf]
          %v2582 = vld [vmem:[%s2565 + $0x40] sm:$0xf]
          %v2583 = vld [vmem:[%s2565 + $0x44] sm:$0xf]
          %v2584 = vld [vmem:[%s2565 + $0x48] sm:$0xf]
          %v2585 = vld [vmem:[%s2565 + $0x4c] sm:$0xf]
          %v2586 = vld [vmem:[%s2565 + $0x50] sm:$0xf]
          %v2587 = vld [vmem:[%s2565 + $0x54] sm:$0xf]
          %v2588 = vld [vmem:[%s2565 + $0x58] sm:$0xf]
          %v2589 = vld [vmem:[%s2565 + $0x5c] sm:$0xf]
          %v2590 = vld [vmem:[%s2565 + $0x60] sm:$0xf]
          %v2591 = vld [vmem:[%s2565 + $0x64] sm:$0xf]
          %v2592 = vld [vmem:[%s2565 + $0x68] sm:$0xf]
          %v2593 = vld [vmem:[%s2565 + $0x6c] sm:$0xf]
          %v2594 = vld [vmem:[%s2565 + $0x70] sm:$0xf]
          %v2595 = vld [vmem:[%s2565 + $0x74] sm:$0xf]
          %v2596 = vld [vmem:[%s2565 + $0x78] sm:$0xf]
          %v2597 = vld [vmem:[%s2565 + $0x7c] sm:$0xf]
          %v2598 = vld [vmem:[%s2565 + $0x80] sm:$0xf]
          %v2599 = vld [vmem:[%s2565 + $0x84] sm:$0xf]
          %v2600 = vld [vmem:[%s2565 + $0x88] sm:$0xf]
          %v2601 = vld [vmem:[%s2565 + $0x8c] sm:$0xf]
          %v2602 = vld [vmem:[%s2565 + $0x90] sm:$0xf]
          %v2603 = vld [vmem:[%s2565 + $0x94] sm:$0xf]
          %v2604 = vld [vmem:[%s2565 + $0x98] sm:$0xf]
          %v2605 = vld [vmem:[%s2565 + $0x9c] sm:$0xf]
          %v2606 = vld [vmem:[%s2565 + $0xa0] sm:$0xf]
          %v2607 = vld [vmem:[%s2565 + $0xa4] sm:$0xf]
          %v2608 = vld [vmem:[%s2565 + $0xa8] sm:$0xf]
          %v2609 = vld [vmem:[%s2565 + $0xac] sm:$0xf]
          %v2610 = vld [vmem:[%s2565 + $0xb0] sm:$0xf]
          %v2611 = vld [vmem:[%s2565 + $0xb4] sm:$0xf]
          %v2612 = vld [vmem:[%s2565 + $0xb8] sm:$0xf]
          %v2613 = vld [vmem:[%s2565 + $0xbc] sm:$0xf]
          %v2614 = vld [vmem:[%s2565 + $0xc0] sm:$0xf]
          %v2615 = vld [vmem:[%s2565 + $0xc4] sm:$0xf]
          %v2616 = vld [vmem:[%s2565 + $0xc8] sm:$0xf]
          %v2617 = vld [vmem:[%s2565 + $0xcc] sm:$0xf]
          %v2618 = vld [vmem:[%s2565 + $0xd0] sm:$0xf]
          %v2619 = vld [vmem:[%s2565 + $0xd4] sm:$0xf]
          %v2620 = vld [vmem:[%s2565 + $0xd8] sm:$0xf]
          %v2621 = vld [vmem:[%s2565 + $0xdc] sm:$0xf]
          %v2622 = vld [vmem:[%s2565 + $0xe0] sm:$0xf]
          %v2623 = vld [vmem:[%s2565 + $0xe4] sm:$0xf]
          %v2624 = vld [vmem:[%s2565 + $0xe8] sm:$0xf]
          %v2625 = vld [vmem:[%s2565 + $0xec] sm:$0xf]
          %v2626 = vld [vmem:[%s2565 + $0xf0] sm:$0xf]
          %v2627 = vld [vmem:[%s2565 + $0xf4] sm:$0xf]
          %v2628 = vld [vmem:[%s2565 + $0xf8] sm:$0xf]
          %v2629 = vld [vmem:[%s2565 + $0xfc] sm:$0xf]
          %v2694 = vunpack.c.l.b16 %v1290
          %v2695 = vunpack.c.h.b16 %v1290
          %v2696 = vunpack.c.l.b16 %v1291
          %v2697 = vunpack.c.h.b16 %v1291
          %v2698 = vunpack.c.l.b16 %v1292
          %v2699 = vunpack.c.h.b16 %v1292
          %v2700 = vunpack.c.l.b16 %v1293
          %v2701 = vunpack.c.h.b16 %v1293
          %v2702 = vunpack.c.l.b16 %v1294
          %v2703 = vunpack.c.h.b16 %v1294
          %v2704 = vunpack.c.l.b16 %v1295
          %v2705 = vunpack.c.h.b16 %v1295
          %v2706 = vunpack.c.l.b16 %v1296
          %v2707 = vunpack.c.h.b16 %v1296
          %v2708 = vunpack.c.l.b16 %v1297
          %v2709 = vunpack.c.h.b16 %v1297
          %v2710 = vunpack.c.l.b16 %v1298
          %v2711 = vunpack.c.h.b16 %v1298
          %v2712 = vunpack.c.l.b16 %v1299
          %v2713 = vunpack.c.h.b16 %v1299
          %v2714 = vunpack.c.l.b16 %v1300
          %v2715 = vunpack.c.h.b16 %v1300
          %v2716 = vunpack.c.l.b16 %v1301
          %v2717 = vunpack.c.h.b16 %v1301
          %v2718 = vunpack.c.l.b16 %v1302
          %v2719 = vunpack.c.h.b16 %v1302
          %v2720 = vunpack.c.l.b16 %v1303
          %v2721 = vunpack.c.h.b16 %v1303
          %v2722 = vunpack.c.l.b16 %v1304
          %v2723 = vunpack.c.h.b16 %v1304
          %v2724 = vunpack.c.l.b16 %v1305
          %v2725 = vunpack.c.h.b16 %v1305
          %v2726 = vunpack.c.l.b16 %v1306
          %v2727 = vunpack.c.h.b16 %v1306
          %v2728 = vunpack.c.l.b16 %v1307
          %v2729 = vunpack.c.h.b16 %v1307
          %v2730 = vunpack.c.l.b16 %v1308
          %v2731 = vunpack.c.h.b16 %v1308
          %v2732 = vunpack.c.l.b16 %v1309
          %v2733 = vunpack.c.h.b16 %v1309
          %v2734 = vunpack.c.l.b16 %v1310
          %v2735 = vunpack.c.h.b16 %v1310
          %v2736 = vunpack.c.l.b16 %v1311
          %v2737 = vunpack.c.h.b16 %v1311
          %v2738 = vunpack.c.l.b16 %v1312
          %v2739 = vunpack.c.h.b16 %v1312
          %v2740 = vunpack.c.l.b16 %v1313
          %v2741 = vunpack.c.h.b16 %v1313
          %v2742 = vunpack.c.l.b16 %v1314
          %v2743 = vunpack.c.h.b16 %v1314
          %v2744 = vunpack.c.l.b16 %v1315
          %v2745 = vunpack.c.h.b16 %v1315
          %v2746 = vunpack.c.l.b16 %v1316
          %v2747 = vunpack.c.h.b16 %v1316
          %v2748 = vunpack.c.l.b16 %v1317
          %v2749 = vunpack.c.h.b16 %v1317
          %v2750 = vunpack.c.l.b16 %v1318
          %v2751 = vunpack.c.h.b16 %v1318
          %v2752 = vunpack.c.l.b16 %v1319
          %v2753 = vunpack.c.h.b16 %v1319
          %v2754 = vunpack.c.l.b16 %v1320
          %v2755 = vunpack.c.h.b16 %v1320
          %v2756 = vunpack.c.l.b16 %v1321
          %v2757 = vunpack.c.h.b16 %v1321
          %v2758 = vunpack.c.l.b16 %v1322
          %v2759 = vunpack.c.h.b16 %v1322
          %v2760 = vunpack.c.l.b16 %v1323
          %v2761 = vunpack.c.h.b16 %v1323
          %v2762 = vunpack.c.l.b16 %v1324
          %v2763 = vunpack.c.h.b16 %v1324
          %v2764 = vunpack.c.l.b16 %v1325
          %v2765 = vunpack.c.h.b16 %v1325
          %v2766 = vunpack.c.l.b16 %v1326
          %v2767 = vunpack.c.h.b16 %v1326
          %v2768 = vunpack.c.l.b16 %v1327
          %v2769 = vunpack.c.h.b16 %v1327
          %v2770 = vunpack.c.l.b16 %v1328
          %v2771 = vunpack.c.h.b16 %v1328
          %v2772 = vunpack.c.l.b16 %v1329
          %v2773 = vunpack.c.h.b16 %v1329
          %v2774 = vunpack.c.l.b16 %v1330
          %v2775 = vunpack.c.h.b16 %v1330
          %v2776 = vunpack.c.l.b16 %v1331
          %v2777 = vunpack.c.h.b16 %v1331
          %v2778 = vunpack.c.l.b16 %v1332
          %v2779 = vunpack.c.h.b16 %v1332
          %v2780 = vunpack.c.l.b16 %v1333
          %v2781 = vunpack.c.h.b16 %v1333
          %v2782 = vunpack.c.l.b16 %v1334
          %v2783 = vunpack.c.h.b16 %v1334
          %v2784 = vunpack.c.l.b16 %v1335
          %v2785 = vunpack.c.h.b16 %v1335
          %v2786 = vunpack.c.l.b16 %v1336
          %v2787 = vunpack.c.h.b16 %v1336
          %v2788 = vunpack.c.l.b16 %v1337
          %v2789 = vunpack.c.h.b16 %v1337
          %v2790 = vunpack.c.l.b16 %v1338
          %v2791 = vunpack.c.h.b16 %v1338
          %v2792 = vunpack.c.l.b16 %v1339
          %v2793 = vunpack.c.h.b16 %v1339
          %v2794 = vunpack.c.l.b16 %v1340
          %v2795 = vunpack.c.h.b16 %v1340
          %v2796 = vunpack.c.l.b16 %v1341
          %v2797 = vunpack.c.h.b16 %v1341
          %v2798 = vunpack.c.l.b16 %v1342
          %v2799 = vunpack.c.h.b16 %v1342
          %v2800 = vunpack.c.l.b16 %v1343
          %v2801 = vunpack.c.h.b16 %v1343
          %v2802 = vunpack.c.l.b16 %v1344
          %v2803 = vunpack.c.h.b16 %v1344
          %v2804 = vunpack.c.l.b16 %v1345
          %v2805 = vunpack.c.h.b16 %v1345
          %v2806 = vunpack.c.l.b16 %v1346
          %v2807 = vunpack.c.h.b16 %v1346
          %v2808 = vunpack.c.l.b16 %v1347
          %v2809 = vunpack.c.h.b16 %v1347
          %v2810 = vunpack.c.l.b16 %v1348
          %v2811 = vunpack.c.h.b16 %v1348
          %v2812 = vunpack.c.l.b16 %v1349
          %v2813 = vunpack.c.h.b16 %v1349
          %v2814 = vunpack.c.l.b16 %v1350
          %v2815 = vunpack.c.h.b16 %v1350
          %v2816 = vunpack.c.l.b16 %v1351
          %v2817 = vunpack.c.h.b16 %v1351
          %v2818 = vunpack.c.l.b16 %v1352
          %v2819 = vunpack.c.h.b16 %v1352
          %v2820 = vunpack.c.l.b16 %v1353
          %v2821 = vunpack.c.h.b16 %v1353
          %v2822 = vpack.c.b16 %v2698, %v2694
          %v2823 = vpack.c.b16 %v2699, %v2695
          %v2824 = vpack.c.b16 %v2700, %v2696
          %v2825 = vpack.c.b16 %v2701, %v2697
          %v2826 = vpack.c.b16 %v2706, %v2702
          %v2827 = vpack.c.b16 %v2707, %v2703
          %v2828 = vpack.c.b16 %v2708, %v2704
          %v2829 = vpack.c.b16 %v2709, %v2705
          %v2830 = vpack.c.b16 %v2714, %v2710
          %v2831 = vpack.c.b16 %v2715, %v2711
          %v2832 = vpack.c.b16 %v2716, %v2712
          %v2833 = vpack.c.b16 %v2717, %v2713
          %v2834 = vpack.c.b16 %v2722, %v2718
          %v2835 = vpack.c.b16 %v2723, %v2719
          %v2836 = vpack.c.b16 %v2724, %v2720
          %v2837 = vpack.c.b16 %v2725, %v2721
          %v2838 = vpack.c.b16 %v2730, %v2726
          %v2839 = vpack.c.b16 %v2731, %v2727
          %v2840 = vpack.c.b16 %v2732, %v2728
          %v2841 = vpack.c.b16 %v2733, %v2729
          %v2842 = vpack.c.b16 %v2738, %v2734
          %v2843 = vpack.c.b16 %v2739, %v2735
          %v2844 = vpack.c.b16 %v2740, %v2736
          %v2845 = vpack.c.b16 %v2741, %v2737
          %v2846 = vpack.c.b16 %v2746, %v2742
          %v2847 = vpack.c.b16 %v2747, %v2743
          %v2848 = vpack.c.b16 %v2748, %v2744
          %v2849 = vpack.c.b16 %v2749, %v2745
          %v2850 = vpack.c.b16 %v2754, %v2750
          %v2851 = vpack.c.b16 %v2755, %v2751
          %v2852 = vpack.c.b16 %v2756, %v2752
          %v2853 = vpack.c.b16 %v2757, %v2753
          %v2854 = vpack.c.b16 %v2762, %v2758
          %v2855 = vpack.c.b16 %v2763, %v2759
          %v2856 = vpack.c.b16 %v2764, %v2760
          %v2857 = vpack.c.b16 %v2765, %v2761
          %v2858 = vpack.c.b16 %v2770, %v2766
          %v2859 = vpack.c.b16 %v2771, %v2767
          %v2860 = vpack.c.b16 %v2772, %v2768
          %v2861 = vpack.c.b16 %v2773, %v2769
          %v2862 = vpack.c.b16 %v2778, %v2774
          %v2863 = vpack.c.b16 %v2779, %v2775
          %v2864 = vpack.c.b16 %v2780, %v2776
          %v2865 = vpack.c.b16 %v2781, %v2777
          %v2866 = vpack.c.b16 %v2786, %v2782
          %v2867 = vpack.c.b16 %v2787, %v2783
          %v2868 = vpack.c.b16 %v2788, %v2784
          %v2869 = vpack.c.b16 %v2789, %v2785
          %v2870 = vpack.c.b16 %v2794, %v2790
          %v2871 = vpack.c.b16 %v2795, %v2791
          %v2872 = vpack.c.b16 %v2796, %v2792
          %v2873 = vpack.c.b16 %v2797, %v2793
          %v2874 = vpack.c.b16 %v2802, %v2798
          %v2875 = vpack.c.b16 %v2803, %v2799
          %v2876 = vpack.c.b16 %v2804, %v2800
          %v2877 = vpack.c.b16 %v2805, %v2801
          %v2878 = vpack.c.b16 %v2810, %v2806
          %v2879 = vpack.c.b16 %v2811, %v2807
          %v2880 = vpack.c.b16 %v2812, %v2808
          %v2881 = vpack.c.b16 %v2813, %v2809
          %v2882 = vpack.c.b16 %v2818, %v2814
          %v2883 = vpack.c.b16 %v2819, %v2815
          %v2884 = vpack.c.b16 %v2820, %v2816
          %v2885 = vpack.c.b16 %v2821, %v2817
          %v3014 = vunpack.c.l.b16 %v2566
          %v3015 = vunpack.c.l.b16 %v2567
          %v3016 = vunpack.c.l.b16 %v2568
          %v3017 = vunpack.c.l.b16 %v2569
          %v3018 = vunpack.c.l.b16 %v2570
          %v3019 = vunpack.c.l.b16 %v2571
          %v3020 = vunpack.c.l.b16 %v2572
          %v3021 = vunpack.c.l.b16 %v2573
          %v3022 = vunpack.c.l.b16 %v2574
          %v3023 = vunpack.c.l.b16 %v2575
          %v3024 = vunpack.c.l.b16 %v2576
          %v3025 = vunpack.c.l.b16 %v2577
          %v3026 = vunpack.c.l.b16 %v2578
          %v3027 = vunpack.c.l.b16 %v2579
          %v3028 = vunpack.c.l.b16 %v2580
          %v3029 = vunpack.c.l.b16 %v2581
          %v3030 = vunpack.c.l.b16 %v2582
          %v3031 = vunpack.c.l.b16 %v2583
          %v3032 = vunpack.c.l.b16 %v2584
          %v3033 = vunpack.c.l.b16 %v2585
          %v3034 = vunpack.c.l.b16 %v2586
          %v3035 = vunpack.c.l.b16 %v2587
          %v3036 = vunpack.c.l.b16 %v2588
          %v3037 = vunpack.c.l.b16 %v2589
          %v3038 = vunpack.c.l.b16 %v2590
          %v3039 = vunpack.c.l.b16 %v2591
          %v3040 = vunpack.c.l.b16 %v2592
          %v3041 = vunpack.c.l.b16 %v2593
          %v3042 = vunpack.c.l.b16 %v2594
          %v3043 = vunpack.c.l.b16 %v2595
          %v3044 = vunpack.c.l.b16 %v2596
          %v3045 = vunpack.c.l.b16 %v2597
          %v3046 = vunpack.c.l.b16 %v2598
          %v3047 = vunpack.c.l.b16 %v2599
          %v3048 = vunpack.c.l.b16 %v2600
          %v3049 = vunpack.c.l.b16 %v2601
          %v3050 = vunpack.c.l.b16 %v2602
          %v3051 = vunpack.c.l.b16 %v2603
          %v3052 = vunpack.c.l.b16 %v2604
          %v3053 = vunpack.c.l.b16 %v2605
          %v3054 = vunpack.c.l.b16 %v2606
          %v3055 = vunpack.c.l.b16 %v2607
          %v3056 = vunpack.c.l.b16 %v2608
          %v3057 = vunpack.c.l.b16 %v2609
          %v3058 = vunpack.c.l.b16 %v2610
          %v3059 = vunpack.c.l.b16 %v2611
          %v3060 = vunpack.c.l.b16 %v2612
          %v3061 = vunpack.c.l.b16 %v2613
          %v3062 = vunpack.c.l.b16 %v2614
          %v3063 = vunpack.c.l.b16 %v2615
          %v3064 = vunpack.c.l.b16 %v2616
          %v3065 = vunpack.c.l.b16 %v2617
          %v3066 = vunpack.c.l.b16 %v2618
          %v3067 = vunpack.c.l.b16 %v2619
          %v3068 = vunpack.c.l.b16 %v2620
          %v3069 = vunpack.c.l.b16 %v2621
          %v3070 = vunpack.c.l.b16 %v2622
          %v3071 = vunpack.c.l.b16 %v2623
          %v3072 = vunpack.c.l.b16 %v2624
          %v3073 = vunpack.c.l.b16 %v2625
          %v3074 = vunpack.c.l.b16 %v2626
          %v3075 = vunpack.c.l.b16 %v2627
          %v3076 = vunpack.c.l.b16 %v2628
          %v3077 = vunpack.c.l.b16 %v2629
          %v3078 = vpack.c.b16 %v3015, %v3014
          %v3079 = vpack.c.b16 %v3017, %v3016
          %v3080 = vpack.c.b16 %v3019, %v3018
          %v3081 = vpack.c.b16 %v3021, %v3020
          %v3082 = vpack.c.b16 %v3023, %v3022
          %v3083 = vpack.c.b16 %v3025, %v3024
          %v3084 = vpack.c.b16 %v3027, %v3026
          %v3085 = vpack.c.b16 %v3029, %v3028
          %v3086 = vpack.c.b16 %v3031, %v3030
          %v3087 = vpack.c.b16 %v3033, %v3032
          %v3088 = vpack.c.b16 %v3035, %v3034
          %v3089 = vpack.c.b16 %v3037, %v3036
          %v3090 = vpack.c.b16 %v3039, %v3038
          %v3091 = vpack.c.b16 %v3041, %v3040
          %v3092 = vpack.c.b16 %v3043, %v3042
          %v3093 = vpack.c.b16 %v3045, %v3044
          %v3094 = vpack.c.b16 %v3047, %v3046
          %v3095 = vpack.c.b16 %v3049, %v3048
          %v3096 = vpack.c.b16 %v3051, %v3050
          %v3097 = vpack.c.b16 %v3053, %v3052
          %v3098 = vpack.c.b16 %v3055, %v3054
          %v3099 = vpack.c.b16 %v3057, %v3056
          %v3100 = vpack.c.b16 %v3059, %v3058
          %v3101 = vpack.c.b16 %v3061, %v3060
          %v3102 = vpack.c.b16 %v3063, %v3062
          %v3103 = vpack.c.b16 %v3065, %v3064
          %v3104 = vpack.c.b16 %v3067, %v3066
          %v3105 = vpack.c.b16 %v3069, %v3068
          %v3106 = vpack.c.b16 %v3071, %v3070
          %v3107 = vpack.c.b16 %v3073, %v3072
          %v3108 = vpack.c.b16 %v3075, %v3074
          %v3109 = vpack.c.b16 %v3077, %v3076
          %3142 = vmatprep.subr.bf16.mxu0 0
          %3143 = vmatpush1.bf16.msra.mxu0 %v3085
          %3144 = vmatprep.subr.bf16.mxu0 0
          %3145 = vmatpush1.bf16.msra.mxu0 %v3084
          %3146 = vmatprep.subr.bf16.mxu0 0
          %3147 = vmatpush1.bf16.msra.mxu0 %v3083
          %3148 = vmatprep.subr.bf16.mxu0 0
          %3149 = vmatpush1.bf16.msra.mxu0 %v3082
          %3150 = vmatprep.subr.bf16.mxu0 0
          %3151 = vmatpush1.bf16.msra.mxu0 %v3081
          %3152 = vmatprep.subr.bf16.mxu0 0
          %3153 = vmatpush1.bf16.msra.mxu0 %v3080
          %3154 = vmatprep.subr.bf16.mxu0 0
          %3155 = vmatpush1.bf16.msra.mxu0 %v3079
          %3156 = vmatprep.subr.bf16.mxu0 0
          %3157 = vmatpush1.bf16.msra.mxu0 %v3078
          %3158 = vmatprep.subr.bf16.mxu0 0
          %3159 = vmatpush2.bf16.msra.mxu0 %v3093
          %3160 = vmatprep.subr.bf16.mxu0 0
          %3161 = vmatpush2.bf16.msra.mxu0 %v3092
          %3162 = vmatprep.subr.bf16.mxu0 0
          %3163 = vmatpush2.bf16.msra.mxu0 %v3091
          %3164 = vmatprep.subr.bf16.mxu0 0
          %3165 = vmatpush2.bf16.msra.mxu0 %v3090
          %3166 = vmatprep.subr.bf16.mxu0 0
          %3167 = vmatpush2.bf16.msra.mxu0 %v3089
          %3168 = vmatprep.subr.bf16.mxu0 0
          %3169 = vmatpush2.bf16.msra.mxu0 %v3088
          %3170 = vmatprep.subr.bf16.mxu0 0
          %3171 = vmatpush2.bf16.msra.mxu0 %v3087
          %3172 = vmatprep.subr.bf16.mxu0 0
          %3173 = vmatpush2.bf16.msra.mxu0 %v3086
          %3174 = vmatprep.mubr.bf16.mxu0 %v2823
          %3175 = vmatmul.mubr.bf16.gmra.mxu0 %v2822
          %v3176 = vpop.f32.mrf.mxu0
          %v3177 = vadd.f32 0.0, %v3176
          %v3178 = vpop.f32.mrf.mxu0
          %v3179 = vpop.f32.mrf.mxu0
          %v3180 = vadd.f32 0.0, %v3179
          %v3181 = vpop.f32.mrf.mxu0
          %3182 = vmatprep.mubr.bf16.mxu0 %v2827
          %3183 = vmatmul.mubr.bf16.gmra.mxu0 %v2826
          %v3184 = vpop.f32.mrf.mxu0
          %v3185 = vadd.f32 0.0, %v3184
          %v3186 = vpop.f32.mrf.mxu0
          %v3187 = vpop.f32.mrf.mxu0
          %v3188 = vadd.f32 0.0, %v3187
          %v3189 = vpop.f32.mrf.mxu0
          %3190 = vmatprep.mubr.bf16.mxu0 %v2831
          %3191 = vmatmul.mubr.bf16.gmra.mxu0 %v2830
          %v3192 = vpop.f32.mrf.mxu0
          %v3193 = vadd.f32 0.0, %v3192
          %v3194 = vpop.f32.mrf.mxu0
          %v3195 = vpop.f32.mrf.mxu0
          %v3196 = vadd.f32 0.0, %v3195
          %v3197 = vpop.f32.mrf.mxu0
          %3198 = vmatprep.mubr.bf16.mxu0 %v2835
          %3199 = vmatmul.mubr.bf16.gmra.mxu0 %v2834
          %v3200 = vpop.f32.mrf.mxu0
          %v3201 = vadd.f32 0.0, %v3200
          %v3202 = vpop.f32.mrf.mxu0
          %v3203 = vpop.f32.mrf.mxu0
          %v3204 = vadd.f32 0.0, %v3203
          %v3205 = vpop.f32.mrf.mxu0
          %3206 = vmatprep.mubr.bf16.mxu0 %v2839
          %3207 = vmatmul.mubr.bf16.gmra.mxu0 %v2838
          %v3208 = vpop.f32.mrf.mxu0
          %v3209 = vadd.f32 0.0, %v3208
          %v3210 = vpop.f32.mrf.mxu0
          %v3211 = vpop.f32.mrf.mxu0
          %v3212 = vadd.f32 0.0, %v3211
          %v3213 = vpop.f32.mrf.mxu0
          %3214 = vmatprep.mubr.bf16.mxu0 %v2843
          %3215 = vmatmul.mubr.bf16.gmra.mxu0 %v2842
          %v3216 = vpop.f32.mrf.mxu0
          %v3217 = vadd.f32 0.0, %v3216
          %v3218 = vpop.f32.mrf.mxu0
          %v3219 = vpop.f32.mrf.mxu0
          %v3220 = vadd.f32 0.0, %v3219
          %v3221 = vpop.f32.mrf.mxu0
          %3222 = vmatprep.mubr.bf16.mxu0 %v2847
          %3223 = vmatmul.mubr.bf16.gmra.mxu0 %v2846
          %v3224 = vpop.f32.mrf.mxu0
          %v3225 = vadd.f32 0.0, %v3224
          %v3226 = vpop.f32.mrf.mxu0
          %v3227 = vpop.f32.mrf.mxu0
          %v3228 = vadd.f32 0.0, %v3227
          %v3229 = vpop.f32.mrf.mxu0
          %3230 = vmatprep.mubr.bf16.mxu0 %v2851
          %3231 = vmatmul.mubr.bf16.gmra.mxu0 %v2850
          %v3232 = vpop.f32.mrf.mxu0
          %v3233 = vadd.f32 0.0, %v3232
          %v3234 = vpop.f32.mrf.mxu0
          %v3235 = vpop.f32.mrf.mxu0
          %v3236 = vadd.f32 0.0, %v3235
          %v3237 = vpop.f32.mrf.mxu0
          %3238 = vmatprep.mubr.bf16.mxu0 %v2855
          %3239 = vmatmul.mubr.bf16.gmra.mxu0 %v2854
          %v3240 = vpop.f32.mrf.mxu0
          %v3241 = vadd.f32 0.0, %v3240
          %v3242 = vpop.f32.mrf.mxu0
          %v3243 = vpop.f32.mrf.mxu0
          %v3244 = vadd.f32 0.0, %v3243
          %v3245 = vpop.f32.mrf.mxu0
          %3246 = vmatprep.mubr.bf16.mxu0 %v2859
          %3247 = vmatmul.mubr.bf16.gmra.mxu0 %v2858
          %v3248 = vpop.f32.mrf.mxu0
          %v3249 = vadd.f32 0.0, %v3248
          %v3250 = vpop.f32.mrf.mxu0
          %v3251 = vpop.f32.mrf.mxu0
          %v3252 = vadd.f32 0.0, %v3251
          %v3253 = vpop.f32.mrf.mxu0
          %3254 = vmatprep.mubr.bf16.mxu0 %v2863
          %3255 = vmatmul.mubr.bf16.gmra.mxu0 %v2862
          %v3256 = vpop.f32.mrf.mxu0
          %v3257 = vadd.f32 0.0, %v3256
          %v3258 = vpop.f32.mrf.mxu0
          %v3259 = vpop.f32.mrf.mxu0
          %v3260 = vadd.f32 0.0, %v3259
          %v3261 = vpop.f32.mrf.mxu0
          %3262 = vmatprep.mubr.bf16.mxu0 %v2867
          %3263 = vmatmul.mubr.bf16.gmra.mxu0 %v2866
          %v3264 = vpop.f32.mrf.mxu0
          %v3265 = vadd.f32 0.0, %v3264
          %v3266 = vpop.f32.mrf.mxu0
          %v3267 = vpop.f32.mrf.mxu0
          %v3268 = vadd.f32 0.0, %v3267
          %v3269 = vpop.f32.mrf.mxu0
          %3270 = vmatprep.mubr.bf16.mxu0 %v2871
          %3271 = vmatmul.mubr.bf16.gmra.mxu0 %v2870
          %v3272 = vpop.f32.mrf.mxu0
          %v3273 = vadd.f32 0.0, %v3272
          %v3274 = vpop.f32.mrf.mxu0
          %v3275 = vpop.f32.mrf.mxu0
          %v3276 = vadd.f32 0.0, %v3275
          %v3277 = vpop.f32.mrf.mxu0
          %3278 = vmatprep.mubr.bf16.mxu0 %v2875
          %3279 = vmatmul.mubr.bf16.gmra.mxu0 %v2874
          %v3280 = vpop.f32.mrf.mxu0
          %v3281 = vadd.f32 0.0, %v3280
          %v3282 = vpop.f32.mrf.mxu0
          %v3283 = vpop.f32.mrf.mxu0
          %v3284 = vadd.f32 0.0, %v3283
          %v3285 = vpop.f32.mrf.mxu0
          %3286 = vmatprep.mubr.bf16.mxu0 %v2879
          %3287 = vmatmul.mubr.bf16.gmra.mxu0 %v2878
          %v3288 = vpop.f32.mrf.mxu0
          %v3289 = vadd.f32 0.0, %v3288
          %v3290 = vpop.f32.mrf.mxu0
          %v3291 = vpop.f32.mrf.mxu0
          %v3292 = vadd.f32 0.0, %v3291
          %v3293 = vpop.f32.mrf.mxu0
          %3294 = vmatprep.mubr.bf16.mxu0 %v2883
          %3295 = vmatmul.mubr.bf16.gmra.mxu0 %v2882
          %v3296 = vpop.f32.mrf.mxu0
          %v3297 = vadd.f32 0.0, %v3296
          %v3298 = vpop.f32.mrf.mxu0
          %v3299 = vpop.f32.mrf.mxu0
          %v3300 = vadd.f32 0.0, %v3299
          %v3301 = vpop.f32.mrf.mxu0
          %3302 = vdwg.mxu0
          %3303 = vmatprep.subr.bf16.mxu0 0
          %3304 = vmatpush1.bf16.msra.mxu0 %v3101
          %3305 = vmatprep.subr.bf16.mxu0 0
          %3306 = vmatpush1.bf16.msra.mxu0 %v3100
          %3307 = vmatprep.subr.bf16.mxu0 0
          %3308 = vmatpush1.bf16.msra.mxu0 %v3099
          %3309 = vmatprep.subr.bf16.mxu0 0
          %3310 = vmatpush1.bf16.msra.mxu0 %v3098
          %3311 = vmatprep.subr.bf16.mxu0 0
          %3312 = vmatpush1.bf16.msra.mxu0 %v3097
          %3313 = vmatprep.subr.bf16.mxu0 0
          %3314 = vmatpush1.bf16.msra.mxu0 %v3096
          %3315 = vmatprep.subr.bf16.mxu0 0
          %3316 = vmatpush1.bf16.msra.mxu0 %v3095
          %3317 = vmatprep.subr.bf16.mxu0 0
          %3318 = vmatpush1.bf16.msra.mxu0 %v3094
          %3319 = vmatprep.subr.bf16.mxu0 0
          %3320 = vmatpush2.bf16.msra.mxu0 %v3109
          %3321 = vmatprep.subr.bf16.mxu0 0
          %3322 = vmatpush2.bf16.msra.mxu0 %v3108
          %3323 = vmatprep.subr.bf16.mxu0 0
          %3324 = vmatpush2.bf16.msra.mxu0 %v3107
          %3325 = vmatprep.subr.bf16.mxu0 0
          %3326 = vmatpush2.bf16.msra.mxu0 %v3106
          %3327 = vmatprep.subr.bf16.mxu0 0
          %3328 = vmatpush2.bf16.msra.mxu0 %v3105
          %3329 = vmatprep.subr.bf16.mxu0 0
          %3330 = vmatpush2.bf16.msra.mxu0 %v3104
          %3331 = vmatprep.subr.bf16.mxu0 0
          %3332 = vmatpush2.bf16.msra.mxu0 %v3103
          %3333 = vmatprep.subr.bf16.mxu0 0
          %3334 = vmatpush2.bf16.msra.mxu0 %v3102
          %3335 = vmatprep.mubr.bf16.mxu0 %v2825
          %3336 = vmatmul.mubr.bf16.gmra.mxu0 %v2824
          %v3337 = vpop.f32.mrf.mxu0
          %v3338 = vadd.f32 %v3177, %v3337
          %v3339 = vpop.f32.mrf.mxu0
          %v3340 = vpop.f32.mrf.mxu0
          %v3341 = vadd.f32 %v3180, %v3340
          %v3342 = vpop.f32.mrf.mxu0
          %3343 = vmatprep.mubr.bf16.mxu0 %v2829
          %3344 = vmatmul.mubr.bf16.gmra.mxu0 %v2828
          %v3345 = vpop.f32.mrf.mxu0
          %v3346 = vadd.f32 %v3185, %v3345
          %v3347 = vpop.f32.mrf.mxu0
          %v3348 = vpop.f32.mrf.mxu0
          %v3349 = vadd.f32 %v3188, %v3348
          %v3350 = vpop.f32.mrf.mxu0
          %3351 = vmatprep.mubr.bf16.mxu0 %v2833
          %3352 = vmatmul.mubr.bf16.gmra.mxu0 %v2832
          %v3353 = vpop.f32.mrf.mxu0
          %v3354 = vadd.f32 %v3193, %v3353
          %v3355 = vpop.f32.mrf.mxu0
          %v3356 = vpop.f32.mrf.mxu0
          %v3357 = vadd.f32 %v3196, %v3356
          %v3358 = vpop.f32.mrf.mxu0
          %3359 = vmatprep.mubr.bf16.mxu0 %v2837
          %3360 = vmatmul.mubr.bf16.gmra.mxu0 %v2836
          %v3361 = vpop.f32.mrf.mxu0
          %v3362 = vadd.f32 %v3201, %v3361
          %v3363 = vpop.f32.mrf.mxu0
          %v3364 = vpop.f32.mrf.mxu0
          %v3365 = vadd.f32 %v3204, %v3364
          %v3366 = vpop.f32.mrf.mxu0
          %3367 = vmatprep.mubr.bf16.mxu0 %v2841
          %3368 = vmatmul.mubr.bf16.gmra.mxu0 %v2840
          %v3369 = vpop.f32.mrf.mxu0
          %v3370 = vadd.f32 %v3209, %v3369
          %v3371 = vpop.f32.mrf.mxu0
          %v3372 = vpop.f32.mrf.mxu0
          %v3373 = vadd.f32 %v3212, %v3372
          %v3374 = vpop.f32.mrf.mxu0
          %3375 = vmatprep.mubr.bf16.mxu0 %v2845
          %3376 = vmatmul.mubr.bf16.gmra.mxu0 %v2844
          %v3377 = vpop.f32.mrf.mxu0
          %v3378 = vadd.f32 %v3217, %v3377
          %v3379 = vpop.f32.mrf.mxu0
          %v3380 = vpop.f32.mrf.mxu0
          %v3381 = vadd.f32 %v3220, %v3380
          %v3382 = vpop.f32.mrf.mxu0
          %3383 = vmatprep.mubr.bf16.mxu0 %v2849
          %3384 = vmatmul.mubr.bf16.gmra.mxu0 %v2848
          %v3385 = vpop.f32.mrf.mxu0
          %v3386 = vadd.f32 %v3225, %v3385
          %v3387 = vpop.f32.mrf.mxu0
          %v3388 = vpop.f32.mrf.mxu0
          %v3389 = vadd.f32 %v3228, %v3388
          %v3390 = vpop.f32.mrf.mxu0
          %3391 = vmatprep.mubr.bf16.mxu0 %v2853
          %3392 = vmatmul.mubr.bf16.gmra.mxu0 %v2852
          %v3393 = vpop.f32.mrf.mxu0
          %v3394 = vadd.f32 %v3233, %v3393
          %v3395 = vpop.f32.mrf.mxu0
          %v3396 = vpop.f32.mrf.mxu0
          %v3397 = vadd.f32 %v3236, %v3396
          %v3398 = vpop.f32.mrf.mxu0
          %3399 = vmatprep.mubr.bf16.mxu0 %v2857
          %3400 = vmatmul.mubr.bf16.gmra.mxu0 %v2856
          %v3401 = vpop.f32.mrf.mxu0
          %v3402 = vadd.f32 %v3241, %v3401
          %v3403 = vpop.f32.mrf.mxu0
          %v3404 = vpop.f32.mrf.mxu0
          %v3405 = vadd.f32 %v3244, %v3404
          %v3406 = vpop.f32.mrf.mxu0
          %3407 = vmatprep.mubr.bf16.mxu0 %v2861
          %3408 = vmatmul.mubr.bf16.gmra.mxu0 %v2860
          %v3409 = vpop.f32.mrf.mxu0
          %v3410 = vadd.f32 %v3249, %v3409
          %v3411 = vpop.f32.mrf.mxu0
          %v3412 = vpop.f32.mrf.mxu0
          %v3413 = vadd.f32 %v3252, %v3412
          %v3414 = vpop.f32.mrf.mxu0
          %3415 = vmatprep.mubr.bf16.mxu0 %v2865
          %3416 = vmatmul.mubr.bf16.gmra.mxu0 %v2864
          %v3417 = vpop.f32.mrf.mxu0
          %v3418 = vadd.f32 %v3257, %v3417
          %v3419 = vpop.f32.mrf.mxu0
          %v3420 = vpop.f32.mrf.mxu0
          %v3421 = vadd.f32 %v3260, %v3420
          %v3422 = vpop.f32.mrf.mxu0
          %3423 = vmatprep.mubr.bf16.mxu0 %v2869
          %3424 = vmatmul.mubr.bf16.gmra.mxu0 %v2868
          %v3425 = vpop.f32.mrf.mxu0
          %v3426 = vadd.f32 %v3265, %v3425
          %v3427 = vpop.f32.mrf.mxu0
          %v3428 = vpop.f32.mrf.mxu0
          %v3429 = vadd.f32 %v3268, %v3428
          %v3430 = vpop.f32.mrf.mxu0
          %3431 = vmatprep.mubr.bf16.mxu0 %v2873
          %3432 = vmatmul.mubr.bf16.gmra.mxu0 %v2872
          %v3433 = vpop.f32.mrf.mxu0
          %v3434 = vadd.f32 %v3273, %v3433
          %v3435 = vpop.f32.mrf.mxu0
          %v3436 = vpop.f32.mrf.mxu0
          %v3437 = vadd.f32 %v3276, %v3436
          %v3438 = vpop.f32.mrf.mxu0
          %3439 = vmatprep.mubr.bf16.mxu0 %v2877
          %3440 = vmatmul.mubr.bf16.gmra.mxu0 %v2876
          %v3441 = vpop.f32.mrf.mxu0
          %v3442 = vadd.f32 %v3281, %v3441
          %v3443 = vpop.f32.mrf.mxu0
          %v3444 = vpop.f32.mrf.mxu0
          %v3445 = vadd.f32 %v3284, %v3444
          %v3446 = vpop.f32.mrf.mxu0
          %3447 = vmatprep.mubr.bf16.mxu0 %v2881
          %3448 = vmatmul.mubr.bf16.gmra.mxu0 %v2880
          %v3449 = vpop.f32.mrf.mxu0
          %v3450 = vadd.f32 %v3289, %v3449
          %v3451 = vpop.f32.mrf.mxu0
          %v3452 = vpop.f32.mrf.mxu0
          %v3453 = vadd.f32 %v3292, %v3452
          %v3454 = vpop.f32.mrf.mxu0
          %3455 = vmatprep.mubr.bf16.mxu0 %v2885
          %3456 = vmatmul.mubr.bf16.gmra.mxu0 %v2884
          %v3457 = vpop.f32.mrf.mxu0
          %v3458 = vadd.f32 %v3297, %v3457
          %v3459 = vpop.f32.mrf.mxu0
          %v3460 = vpop.f32.mrf.mxu0
          %v3461 = vadd.f32 %v3300, %v3460
          %v3462 = vpop.f32.mrf.mxu0
          %3463 = vdwg.mxu0
          %v3464 = vpack.c.bf16 %v3341, %v3338
          %v3465 = vpack.c.bf16 %v3349, %v3346
          %v3466 = vpack.c.bf16 %v3357, %v3354
          %v3467 = vpack.c.bf16 %v3365, %v3362
          %v3468 = vpack.c.bf16 %v3373, %v3370
          %v3469 = vpack.c.bf16 %v3381, %v3378
          %v3470 = vpack.c.bf16 %v3389, %v3386
          %v3471 = vpack.c.bf16 %v3397, %v3394
          %v3472 = vpack.c.bf16 %v3405, %v3402
          %v3473 = vpack.c.bf16 %v3413, %v3410
          %v3474 = vpack.c.bf16 %v3421, %v3418
          %v3475 = vpack.c.bf16 %v3429, %v3426
          %v3476 = vpack.c.bf16 %v3437, %v3434
          %v3477 = vpack.c.bf16 %v3445, %v3442
          %v3478 = vpack.c.bf16 %v3453, %v3450
          %v3479 = vpack.c.bf16 %v3461, %v3458
          %v3496 = vunpack.c.l.b16 %v3464
          %v3497 = vunpack.c.h.b16 %v3464
          %v3498 = vunpack.c.l.b16 %v3465
          %v3499 = vunpack.c.h.b16 %v3465
          %v3500 = vunpack.c.l.b16 %v3466
          %v3501 = vunpack.c.h.b16 %v3466
          %v3502 = vunpack.c.l.b16 %v3467
          %v3503 = vunpack.c.h.b16 %v3467
          %v3504 = vunpack.c.l.b16 %v3468
          %v3505 = vunpack.c.h.b16 %v3468
          %v3506 = vunpack.c.l.b16 %v3469
          %v3507 = vunpack.c.h.b16 %v3469
          %v3508 = vunpack.c.l.b16 %v3470
          %v3509 = vunpack.c.h.b16 %v3470
          %v3510 = vunpack.c.l.b16 %v3471
          %v3511 = vunpack.c.h.b16 %v3471
          %v3512 = vunpack.c.l.b16 %v3472
          %v3513 = vunpack.c.h.b16 %v3472
          %v3514 = vunpack.c.l.b16 %v3473
          %v3515 = vunpack.c.h.b16 %v3473
          %v3516 = vunpack.c.l.b16 %v3474
          %v3517 = vunpack.c.h.b16 %v3474
          %v3518 = vunpack.c.l.b16 %v3475
          %v3519 = vunpack.c.h.b16 %v3475
          %v3520 = vunpack.c.l.b16 %v3476
          %v3521 = vunpack.c.h.b16 %v3476
          %v3522 = vunpack.c.l.b16 %v3477
          %v3523 = vunpack.c.h.b16 %v3477
          %v3524 = vunpack.c.l.b16 %v3478
          %v3525 = vunpack.c.h.b16 %v3478
          %v3526 = vunpack.c.l.b16 %v3479
          %v3527 = vunpack.c.h.b16 %v3479
          %v3528 = vpack.c.b16 %v3496, %v3496
          %v3529 = vpack.c.b16 %v3497, %v3497
          %v3530 = vpack.c.b16 %v3498, %v3498
          %v3531 = vpack.c.b16 %v3499, %v3499
          %v3532 = vpack.c.b16 %v3500, %v3500
          %v3533 = vpack.c.b16 %v3501, %v3501
          %v3534 = vpack.c.b16 %v3502, %v3502
          %v3535 = vpack.c.b16 %v3503, %v3503
          %v3536 = vpack.c.b16 %v3504, %v3504
          %v3537 = vpack.c.b16 %v3505, %v3505
          %v3538 = vpack.c.b16 %v3506, %v3506
          %v3539 = vpack.c.b16 %v3507, %v3507
          %v3540 = vpack.c.b16 %v3508, %v3508
          %v3541 = vpack.c.b16 %v3509, %v3509
          %v3542 = vpack.c.b16 %v3510, %v3510
          %v3543 = vpack.c.b16 %v3511, %v3511
          %v3544 = vpack.c.b16 %v3512, %v3512
          %v3545 = vpack.c.b16 %v3513, %v3513
          %v3546 = vpack.c.b16 %v3514, %v3514
          %v3547 = vpack.c.b16 %v3515, %v3515
          %v3548 = vpack.c.b16 %v3516, %v3516
          %v3549 = vpack.c.b16 %v3517, %v3517
          %v3550 = vpack.c.b16 %v3518, %v3518
          %v3551 = vpack.c.b16 %v3519, %v3519
          %v3552 = vpack.c.b16 %v3520, %v3520
          %v3553 = vpack.c.b16 %v3521, %v3521
          %v3554 = vpack.c.b16 %v3522, %v3522
          %v3555 = vpack.c.b16 %v3523, %v3523
          %v3556 = vpack.c.b16 %v3524, %v3524
          %v3557 = vpack.c.b16 %v3525, %v3525
          %v3558 = vpack.c.b16 %v3526, %v3526
          %v3559 = vpack.c.b16 %v3527, %v3527
          %s3592 = smul.addr %s1285, 4
          %s3593 = scalar_lea.vmem [#allocation2], %s3592
          %3594 = vst [vmem:[%s3593] sm:$0xf] %v3528
          %3595 = vst [vmem:[%s3593 + $0x4] sm:$0xf] %v3529
          %3596 = vst [vmem:[%s3593 + $0x8] sm:$0xf] %v3530
          %3597 = vst [vmem:[%s3593 + $0xc] sm:$0xf] %v3531
          %3598 = vst [vmem:[%s3593 + $0x10] sm:$0xf] %v3532
          %3599 = vst [vmem:[%s3593 + $0x14] sm:$0xf] %v3533
          %3600 = vst [vmem:[%s3593 + $0x18] sm:$0xf] %v3534
          %3601 = vst [vmem:[%s3593 + $0x1c] sm:$0xf] %v3535
          %3602 = vst [vmem:[%s3593 + $0x20] sm:$0xf] %v3536
          %3603 = vst [vmem:[%s3593 + $0x24] sm:$0xf] %v3537
          %3604 = vst [vmem:[%s3593 + $0x28] sm:$0xf] %v3538
          %3605 = vst [vmem:[%s3593 + $0x2c] sm:$0xf] %v3539
          %3606 = vst [vmem:[%s3593 + $0x30] sm:$0xf] %v3540
          %3607 = vst [vmem:[%s3593 + $0x34] sm:$0xf] %v3541
          %3608 = vst [vmem:[%s3593 + $0x38] sm:$0xf] %v3542
          %3609 = vst [vmem:[%s3593 + $0x3c] sm:$0xf] %v3543
          %3610 = vst [vmem:[%s3593 + $0x40] sm:$0xf] %v3544
          %3611 = vst [vmem:[%s3593 + $0x44] sm:$0xf] %v3545
          %3612 = vst [vmem:[%s3593 + $0x48] sm:$0xf] %v3546
          %3613 = vst [vmem:[%s3593 + $0x4c] sm:$0xf] %v3547
          %3614 = vst [vmem:[%s3593 + $0x50] sm:$0xf] %v3548
          %3615 = vst [vmem:[%s3593 + $0x54] sm:$0xf] %v3549
          %3616 = vst [vmem:[%s3593 + $0x58] sm:$0xf] %v3550
          %3617 = vst [vmem:[%s3593 + $0x5c] sm:$0xf] %v3551
          %3618 = vst [vmem:[%s3593 + $0x60] sm:$0xf] %v3552
          %3619 = vst [vmem:[%s3593 + $0x64] sm:$0xf] %v3553
          %3620 = vst [vmem:[%s3593 + $0x68] sm:$0xf] %v3554
          %3621 = vst [vmem:[%s3593 + $0x6c] sm:$0xf] %v3555
          %3622 = vst [vmem:[%s3593 + $0x70] sm:$0xf] %v3556
          %3623 = vst [vmem:[%s3593 + $0x74] sm:$0xf] %v3557
          %3624 = vst [vmem:[%s3593 + $0x78] sm:$0xf] %v3558
          %3625 = vst [vmem:[%s3593 + $0x7c] sm:$0xf] %v3559
          %s3626 = scalar_lea.vmem %s7, %s273
          %v3627 = vld [vmem:[%s3626] sm:$0xff]
          %v3628 = vld [vmem:[%s3626 + $0x8] sm:$0xff]
          %v3629 = vld [vmem:[%s3626 + $0x10] sm:$0xff]
          %v3630 = vld [vmem:[%s3626 + $0x18] sm:$0xff]
          %v3631 = vld [vmem:[%s3626 + $0x20] sm:$0xff]
          %v3632 = vld [vmem:[%s3626 + $0x28] sm:$0xff]
          %v3633 = vld [vmem:[%s3626 + $0x30] sm:$0xff]
          %v3634 = vld [vmem:[%s3626 + $0x38] sm:$0xff]
          %v3635 = vld [vmem:[%s3626 + $0x40] sm:$0xff]
          %v3636 = vld [vmem:[%s3626 + $0x48] sm:$0xff]
          %v3637 = vld [vmem:[%s3626 + $0x50] sm:$0xff]
          %v3638 = vld [vmem:[%s3626 + $0x58] sm:$0xff]
          %v3639 = vld [vmem:[%s3626 + $0x60] sm:$0xff]
          %v3640 = vld [vmem:[%s3626 + $0x68] sm:$0xff]
          %v3641 = vld [vmem:[%s3626 + $0x70] sm:$0xff]
          %v3642 = vld [vmem:[%s3626 + $0x78] sm:$0xff]
          %v3643 = vld [vmem:[%s3626 + $0x80] sm:$0xff]
          %v3644 = vld [vmem:[%s3626 + $0x88] sm:$0xff]
          %v3645 = vld [vmem:[%s3626 + $0x90] sm:$0xff]
          %v3646 = vld [vmem:[%s3626 + $0x98] sm:$0xff]
          %v3647 = vld [vmem:[%s3626 + $0xa0] sm:$0xff]
          %v3648 = vld [vmem:[%s3626 + $0xa8] sm:$0xff]
          %v3649 = vld [vmem:[%s3626 + $0xb0] sm:$0xff]
          %v3650 = vld [vmem:[%s3626 + $0xb8] sm:$0xff]
          %v3651 = vld [vmem:[%s3626 + $0xc0] sm:$0xff]
          %v3652 = vld [vmem:[%s3626 + $0xc8] sm:$0xff]
          %v3653 = vld [vmem:[%s3626 + $0xd0] sm:$0xff]
          %v3654 = vld [vmem:[%s3626 + $0xd8] sm:$0xff]
          %v3655 = vld [vmem:[%s3626 + $0xe0] sm:$0xff]
          %v3656 = vld [vmem:[%s3626 + $0xe8] sm:$0xff]
          %v3657 = vld [vmem:[%s3626 + $0xf0] sm:$0xff]
          %v3658 = vld [vmem:[%s3626 + $0xf8] sm:$0xff]
          %v3659 = vstv %s1284
          %v3660 = vmul.f32 %v3659, %v3338
          %v3661 = vmul.f32 %v3659, %v3341
          %v3662 = vmul.f32 %v3659, %v3346
          %v3663 = vmul.f32 %v3659, %v3349
          %v3664 = vmul.f32 %v3659, %v3354
          %v3665 = vmul.f32 %v3659, %v3357
          %v3666 = vmul.f32 %v3659, %v3362
          %v3667 = vmul.f32 %v3659, %v3365
          %v3668 = vmul.f32 %v3659, %v3370
          %v3669 = vmul.f32 %v3659, %v3373
          %v3670 = vmul.f32 %v3659, %v3378
          %v3671 = vmul.f32 %v3659, %v3381
          %v3672 = vmul.f32 %v3659, %v3386
          %v3673 = vmul.f32 %v3659, %v3389
          %v3674 = vmul.f32 %v3659, %v3394
          %v3675 = vmul.f32 %v3659, %v3397
          %v3676 = vmul.f32 %v3659, %v3402
          %v3677 = vmul.f32 %v3659, %v3405
          %v3678 = vmul.f32 %v3659, %v3410
          %v3679 = vmul.f32 %v3659, %v3413
          %v3680 = vmul.f32 %v3659, %v3418
          %v3681 = vmul.f32 %v3659, %v3421
          %v3682 = vmul.f32 %v3659, %v3426
          %v3683 = vmul.f32 %v3659, %v3429
          %v3684 = vmul.f32 %v3659, %v3434
          %v3685 = vmul.f32 %v3659, %v3437
          %v3686 = vmul.f32 %v3659, %v3442
          %v3687 = vmul.f32 %v3659, %v3445
          %v3688 = vmul.f32 %v3659, %v3450
          %v3689 = vmul.f32 %v3659, %v3453
          %v3690 = vmul.f32 %v3659, %v3458
          %v3691 = vmul.f32 %v3659, %v3461
          %v3692 = vadd.f32 %v3627, %v3660
          %v3693 = vadd.f32 %v3628, %v3661
          %v3694 = vadd.f32 %v3629, %v3662
          %v3695 = vadd.f32 %v3630, %v3663
          %v3696 = vadd.f32 %v3631, %v3664
          %v3697 = vadd.f32 %v3632, %v3665
          %v3698 = vadd.f32 %v3633, %v3666
          %v3699 = vadd.f32 %v3634, %v3667
          %v3700 = vadd.f32 %v3635, %v3668
          %v3701 = vadd.f32 %v3636, %v3669
          %v3702 = vadd.f32 %v3637, %v3670
          %v3703 = vadd.f32 %v3638, %v3671
          %v3704 = vadd.f32 %v3639, %v3672
          %v3705 = vadd.f32 %v3640, %v3673
          %v3706 = vadd.f32 %v3641, %v3674
          %v3707 = vadd.f32 %v3642, %v3675
          %v3708 = vadd.f32 %v3643, %v3676
          %v3709 = vadd.f32 %v3644, %v3677
          %v3710 = vadd.f32 %v3645, %v3678
          %v3711 = vadd.f32 %v3646, %v3679
          %v3712 = vadd.f32 %v3647, %v3680
          %v3713 = vadd.f32 %v3648, %v3681
          %v3714 = vadd.f32 %v3649, %v3682
          %v3715 = vadd.f32 %v3650, %v3683
          %v3716 = vadd.f32 %v3651, %v3684
          %v3717 = vadd.f32 %v3652, %v3685
          %v3718 = vadd.f32 %v3653, %v3686
          %v3719 = vadd.f32 %v3654, %v3687
          %v3720 = vadd.f32 %v3655, %v3688
          %v3721 = vadd.f32 %v3656, %v3689
          %v3722 = vadd.f32 %v3657, %v3690
          %v3723 = vadd.f32 %v3658, %v3691
          %3724 = vst [vmem:[%s3626] sm:$0xff] %v3692
          %3725 = vst [vmem:[%s3626 + $0x8] sm:$0xff] %v3693
          %3726 = vst [vmem:[%s3626 + $0x10] sm:$0xff] %v3694
          %3727 = vst [vmem:[%s3626 + $0x18] sm:$0xff] %v3695
          %3728 = vst [vmem:[%s3626 + $0x20] sm:$0xff] %v3696
          %3729 = vst [vmem:[%s3626 + $0x28] sm:$0xff] %v3697
          %3730 = vst [vmem:[%s3626 + $0x30] sm:$0xff] %v3698
          %3731 = vst [vmem:[%s3626 + $0x38] sm:$0xff] %v3699
          %3732 = vst [vmem:[%s3626 + $0x40] sm:$0xff] %v3700
          %3733 = vst [vmem:[%s3626 + $0x48] sm:$0xff] %v3701
          %3734 = vst [vmem:[%s3626 + $0x50] sm:$0xff] %v3702
          %3735 = vst [vmem:[%s3626 + $0x58] sm:$0xff] %v3703
          %3736 = vst [vmem:[%s3626 + $0x60] sm:$0xff] %v3704
          %3737 = vst [vmem:[%s3626 + $0x68] sm:$0xff] %v3705
          %3738 = vst [vmem:[%s3626 + $0x70] sm:$0xff] %v3706
          %3739 = vst [vmem:[%s3626 + $0x78] sm:$0xff] %v3707
          %3740 = vst [vmem:[%s3626 + $0x80] sm:$0xff] %v3708
          %3741 = vst [vmem:[%s3626 + $0x88] sm:$0xff] %v3709
          %3742 = vst [vmem:[%s3626 + $0x90] sm:$0xff] %v3710
          %3743 = vst [vmem:[%s3626 + $0x98] sm:$0xff] %v3711
          %3744 = vst [vmem:[%s3626 + $0xa0] sm:$0xff] %v3712
          %3745 = vst [vmem:[%s3626 + $0xa8] sm:$0xff] %v3713
          %3746 = vst [vmem:[%s3626 + $0xb0] sm:$0xff] %v3714
          %3747 = vst [vmem:[%s3626 + $0xb8] sm:$0xff] %v3715
          %3748 = vst [vmem:[%s3626 + $0xc0] sm:$0xff] %v3716
          %3749 = vst [vmem:[%s3626 + $0xc8] sm:$0xff] %v3717
          %3750 = vst [vmem:[%s3626 + $0xd0] sm:$0xff] %v3718
          %3751 = vst [vmem:[%s3626 + $0xd8] sm:$0xff] %v3719
          %3752 = vst [vmem:[%s3626 + $0xe0] sm:$0xff] %v3720
          %3753 = vst [vmem:[%s3626 + $0xe8] sm:$0xff] %v3721
          %3754 = vst [vmem:[%s3626 + $0xf0] sm:$0xff] %v3722
          %3755 = vst [vmem:[%s3626 + $0xf8] sm:$0xff] %v3723
        $region60: #{gprgnn_forward.1} parent=51 // pred_fallthru
          _
      $region52: #{gprgnn_forward.1} parent=43 // pred_fallthru
        _
      // Predicated region
      $region61: #{gprgnn_forward.1} parent=43 // pred_check
        %p3756 = pneg %p184
      $region62: #{gprgnn_forward.1} parent=43 // pred_check_branch
        %3758 = sbr.rel (%p3756) target = $region64
      $region63: #{gprgnn_forward.1} parent=43 // pred_region
        _
      $region64: #{gprgnn_forward.1} parent=43 // pred_fallthru
        _
      // Predicated region
      $region65: #{gprgnn_forward.1} parent=43 // pred_check
        %p3759 = pneg %p184
      $region66: #{gprgnn_forward.1} parent=43 // pred_check_branch
        %3761 = sbr.rel (%p3759) target = $region68
      $region67: #{gprgnn_forward.1} parent=43 // pred_region
        _
      $region68: #{gprgnn_forward.1} parent=43 // pred_fallthru
        _
    $region44: #{gprgnn_forward.1} parent=5 // pred_fallthru
      _
    %p3762 = scmp.le.s32.totalorder 2, %s19
    // Predicated region
    $region69: #{gprgnn_forward.1} parent=5 // pred_check
      %p3763 = pneg %p3762
    $region70: #{gprgnn_forward.1} parent=5 // pred_check_branch
      %3765 = sbr.rel (%p3763) target = $region72
    $region71: #{gprgnn_forward.1} parent=5 // pred_region
      %s3766 = ssub.s32 %s19, 2
    $region72: #{gprgnn_forward.1} parent=5 // pred_fallthru
      _
  $region6: #{gprgnn_forward.1} parent=0 // loop_footer
    %s23 = sadd.s32 1, %s19
  $region7: #{gprgnn_forward.1} parent=0 // loop_footer_branch
    %18 = sbr.rel target = $region3
  $region8: #{gprgnn_forward.1} parent=0 // loop_exit
    _

</llo_original>
